<compile_context>
chip_gen: v5e
topology: v5e:2x2
jax: 0.10.0
libtpu: 0.0.40
codegen_flags: <defaults>
</compile_context>

<pallas_src>
import math
import functools

import jax
import jax.numpy as jnp
from jax.experimental import pallas as pl
from jax.experimental.pallas import tpu as pltpu

KERNEL_SIZES = (3, 5, 7)
K_MAX = max(KERNEL_SIZES)
NUM_BRANCHES = len(KERNEL_SIZES)
BN_EPS = 1e-5
LANE = 128

MXU_DTYPE = jnp.bfloat16          # MXU operand dtype (weights + staged activations)
INTERLEVEL_DTYPE = jnp.bfloat16   # activations written to HBM between levels
TARGET_MXU_ROWS = 256             # fill the MXU M dim (256x256 on v6e/v7x)


def _cdiv(a, b):
    return -(-a // b)


def _round_up(a, m):
    return _cdiv(a, m) * m


def _pad_to_lane(c):
    return _round_up(c, LANE)


# ---------------------------------------------------------------------------
# Fused per-level Pallas kernel
# ---------------------------------------------------------------------------

def _fused_block_kernel(x_ref, w0_ref, s0_ref, w1_ref, s1_ref, *rest,
                        T, dilation, has_downsample, reduce_mean):
    """One whole MultibranchTemporalBlock (+ optional consensus mean) for Bblk
    batch elements.

    x_ref : (Bblk, T, Cin)          activations (f32 level-0, bf16 afterwards)
    w0_ref: (K_MAX, Cin,  Cmid)     stage-0 weights (3 branches stacked on the
                                    output-channel axis, BN folded), bf16
    s0_ref: (1, Cmid)  f32          shift = (bias - running_mean)*scale + beta
    w1_ref: (K_MAX, Cmid, Cout) bf16
    s1_ref: (1, Cout)  f32
    [wd_ref: (Cin, Cout) bf16, bd_ref: (1, Cout) f32]   1x1 residual downsample
    o_ref : (Bblk, T, Cout)  or (Bblk, 1, Cout) when reduce_mean
    pad_ref: VMEM (Bblk, T + pad_store, max(Cin, Cmid)) bf16 scratch, shared by
             both stages (data rows at sublane-aligned offset pad_store).
    """
    if has_downsample:
        wd_ref, bd_ref, o_ref, pad_ref = rest
    else:
        o_ref, pad_ref = rest

    bblk, _, cin = x_ref.shape
    cmid = w0_ref.shape[2]
    cout = w1_ref.shape[2]
    pad = (K_MAX - 1) * dilation
    pad_store = _round_up(pad, 16)          # aligned store offset (bf16 packing)

    # Zero the scratch once: rows [0, pad_store) are the causal left padding
    # for BOTH stages (they are never written again inside this invocation).
    pad_ref[...] = jnp.zeros(pad_ref.shape, pad_ref.dtype)

    def stage(inp3, w_ref, s_ref):
        c = inp3.shape[-1]
        # Stage the activations (bf16) behind the causal zero padding.
        pad_ref[:, pad_store:, :c] = inp3.astype(pad_ref.dtype)
        y = None
        # Per-tap accumulation: each tap is a plain static-offset Ref slice
        # feeding one lane-dense MXU matmul with f32 accumulation — no im2col
        # value materialization, no lane/sublane shuffles.
        # TODO(synk): when MXU-bound at production widths, split taps into
        # per-branch column groups to skip the zero taps of the K=3/5 branches.
        for k in range(K_MAX):
            start = pad_store - pad + k * dilation
            xk = pad_ref[:, start:start + T, :c].reshape(bblk * T, c)
            yk = jnp.dot(xk, w_ref[k], preferred_element_type=jnp.float32)
            y = yk if y is None else y + yk
        return jnp.maximum(y + s_ref[...], 0.0)          # (Bblk*T, n) f32

    x3 = x_ref[...]                                      # (Bblk, T, Cin)
    out0 = stage(x3, w0_ref, s0_ref)                     # dropout0: eval identity

    # Residual path (1x1 conv when n_in != n_out, identity otherwise).  Read
    # the bf16 copy of x from the scratch BEFORE stage 1 overwrites it.
    if has_downsample:
        xb = pad_ref[:, pad_store:, :cin].reshape(bblk * T, cin)
        res = jnp.dot(xb, wd_ref[...],
                      preferred_element_type=jnp.float32) + bd_ref[...]
    else:
        res = x3.reshape(bblk * T, cin).astype(jnp.float32)

    out1 = stage(out0.reshape(bblk, T, cmid), w1_ref, s1_ref)   # dropout1: identity
    out = jnp.maximum(out1 + res, 0.0)                   # residual add + final ReLU

    if reduce_mean:
        # consensus_func = torch.mean over time, fused into the last level.
        o_ref[...] = jnp.mean(out.reshape(bblk, T, cout), axis=1,
                              keepdims=True).astype(o_ref.dtype)
    else:
        o_ref[...] = out.reshape(bblk, T, cout).astype(o_ref.dtype)


def fused_multibranch_block(x, blk, *, dilation, reduce_mean, bblk, out_dtype):
    """One pallas_call for an entire MultibranchTemporalBlock (+ optional mean)."""
    B, T, Cin = x.shape                     # B already a multiple of bblk
    w0, s0, w1, s1 = blk["w0"], blk["s0"], blk["w1"], blk["s1"]
    Cmid, Cout = w0.shape[2], w1.shape[2]
    has_down = blk["downsample"] is not None
    pad = (K_MAX - 1) * dilation
    pad_store = _round_up(pad, 16)
    cmax = max(Cin, Cmid)
    num_steps = B // bblk

    kern = functools.partial(_fused_block_kernel, T=T, dilation=dilation,
                             has_downsample=has_down, reduce_mean=reduce_mean)

    in_specs = [
        pl.BlockSpec((bblk, T, Cin), lambda b: (b, 0, 0)),
        pl.BlockSpec((K_MAX, Cin, Cmid), lambda b: (0, 0, 0)),
        pl.BlockSpec((1, Cmid), lambda b: (0, 0)),
        pl.BlockSpec((K_MAX, Cmid, Cout), lambda b: (0, 0, 0)),
        pl.BlockSpec((1, Cout), lambda b: (0, 0)),
    ]
    args = [x, w0, s0, w1, s1]
    if has_down:
        in_specs += [pl.BlockSpec((Cin, Cout), lambda b: (0, 0)),
                     pl.BlockSpec((1, Cout), lambda b: (0, 0))]
        args += [blk["downsample"]["w"], blk["downsample"]["b"]]

    t_out = 1 if reduce_mean else T
    out_shape = jax.ShapeDtypeStruct((B, t_out, Cout), out_dtype)
    out_specs = pl.BlockSpec((bblk, t_out, Cout), lambda b: (b, 0, 0))

    scratch_shapes = [pltpu.VMEM((bblk, T + pad_store, cmax), MXU_DTYPE)]

    # Advisory cost estimate + explicit VMEM budget (v7x: 64 MiB physical VMEM,
    # 32 MiB default scoped limit).
    out_isz = jnp.dtype(out_dtype).itemsize
    flops = 2 * B * T * K_MAX * (Cin * Cmid + Cmid * Cout)
    if has_down:
        flops += 2 * B * T * Cin * Cout
    w_bytes = 2 * (K_MAX * (Cin * Cmid + Cmid * Cout)
                   + (Cin * Cout if has_down else 0))
    bytes_accessed = (B * T * Cin * x.dtype.itemsize + w_bytes
                      + 4 * (Cmid + 2 * Cout) + B * t_out * Cout * out_isz)
    vmem_est = (2 * bblk * T * Cin * x.dtype.itemsize        # input double-buffer
                + 2 * bblk * t_out * Cout * out_isz          # output double-buffer
                + 2 * w_bytes + 8 * (Cmid + 2 * Cout)        # weights / shifts
                + bblk * (T + pad_store) * cmax * 2          # bf16 scratch
                + bblk * T * (Cmid + 2 * Cout) * 4)          # live f32 values
    vmem_limit = int(min(max(2 * vmem_est, 32 * 1024 * 1024), 60 * 1024 * 1024))

    out = pl.pallas_call(
        kern,
        out_shape=out_shape,
        grid=(num_steps,),
        in_specs=in_specs,
        out_specs=out_specs,
        scratch_shapes=scratch_shapes,
        compiler_params=pltpu.CompilerParams(
            dimension_semantics=("parallel",),
            vmem_limit_bytes=vmem_limit),
        cost_estimate=pl.CostEstimate(flops=flops, transcendentals=0,
                                      bytes_accessed=bytes_accessed),
    )(*args)

    if reduce_mean:
        out = out.reshape(B, Cout)
    return out


# ---------------------------------------------------------------------------
# Deterministic parameter init (fresh-module semantics; eval-mode BatchNorm
# folded into conv weights, branch taps causally padded to K_MAX and stacked,
# channel axes zero-padded to lane-dense multiples of 128, weights in bf16)
# ---------------------------------------------------------------------------

def _init_branch(key, cin, cbranch, K):
    kw, kb = jax.random.split(key)
    bound = 1.0 / math.sqrt(cin * K)
    w = jax.random.uniform(kw, (K, cin, cbranch), jnp.float32, -bound, bound)
    bias = jax.random.uniform(kb, (cbranch,), jnp.float32, -bound, bound)
    # BatchNorm1d default init, eval mode: gamma=1, beta=0, mean=0, var=1
    gamma = jnp.ones((cbranch,), jnp.float32)
    beta = jnp.zeros((cbranch,), jnp.float32)
    mean = jnp.zeros((cbranch,), jnp.float32)
    var = jnp.ones((cbranch,), jnp.float32)
    scale = gamma * jax.lax.rsqrt(var + BN_EPS)
    shift = (bias - mean) * scale + beta
    # Fold BN scale into weights; causal tap-pad to K_MAX (weights occupy the
    # LAST K of the K_MAX tap slots == PyTorch symmetric pad + Chomp1d).
    w_folded = w * scale[None, None, :]
    w_pad = jnp.zeros((K_MAX, cin, cbranch), jnp.float32).at[K_MAX - K:].set(w_folded)
    return w_pad, shift


def _init_stage(keys, cin, cbranch, cin_p, cout_p):
    ws, ss = zip(*[_init_branch(k, cin, cbranch, K)
                   for k, K in zip(keys, KERNEL_SIZES)])
    w = jnp.concatenate(ws, axis=-1)                    # (K_MAX, cin, 3*cbranch)
    s = jnp.concatenate(ss, axis=-1)                    # (3*cbranch,)
    n_out = NUM_BRANCHES * cbranch
    w_p = jnp.zeros((K_MAX, cin_p, cout_p), jnp.float32).at[:, :cin, :n_out].set(w)
    s_p = jnp.zeros((1, cout_p), jnp.float32).at[0, :n_out].set(s)
    return w_p.astype(MXU_DTYPE), s_p


def init_params(key, input_size, num_channels, num_classes):
    assert all(c % NUM_BRANCHES == 0 for c in num_channels)
    blocks = []
    for i, n_out in enumerate(num_channels):
        n_in = input_size if i == 0 else num_channels[i - 1]
        cin_p, cout_p = _pad_to_lane(n_in), _pad_to_lane(n_out)
        c_branch = n_out // NUM_BRANCHES
        key, *ks = jax.random.split(key, 1 + 2 * NUM_BRANCHES + 2)
        w0, s0 = _init_stage(ks[:NUM_BRANCHES], n_in, c_branch, cin_p, cout_p)
        w1, s1 = _init_stage(ks[NUM_BRANCHES:2 * NUM_BRANCHES], n_out, c_branch,
                             cout_p, cout_p)
        if n_in != n_out:   # standard TCN residual downsample (1x1 conv)
            bound = 1.0 / math.sqrt(n_in)
            wd = jax.random.uniform(ks[-2], (n_in, n_out), jnp.float32, -bound, bound)
            bd = jax.random.uniform(ks[-1], (n_out,), jnp.float32, -bound, bound)
            down = {"w": jnp.zeros((cin_p, cout_p), jnp.float32)
                            .at[:n_in, :n_out].set(wd).astype(MXU_DTYPE),
                    "b": jnp.zeros((1, cout_p), jnp.float32).at[0, :n_out].set(bd)}
        else:
            down = None
        blocks.append({"w0": w0, "s0": s0, "w1": w1, "s1": s1, "downsample": down})

    # tcn_output Linear exists in the reference __init__ but is NOT used by
    # forward(); initialized for fidelity, never applied.
    key, kw, kb = jax.random.split(key, 3)
    bound = 1.0 / math.sqrt(num_channels[-1])
    tcn_output = {"w": jax.random.uniform(kw, (num_channels[-1], num_classes),
                                          jnp.float32, -bound, bound),
                  "b": jax.random.uniform(kb, (num_classes,),
                                          jnp.float32, -bound, bound)}
    return {"blocks": blocks, "tcn_output": tcn_output}


# ---------------------------------------------------------------------------
# Forward pass
# ---------------------------------------------------------------------------

def _pick_bblk(B, T):
    """Batch elements per grid step: fill ~256 MXU rows but keep >=2 grid
    steps when B > 1 so both v7x TensorCores get work."""
    bblk = max(1, min(B, _cdiv(TARGET_MXU_ROWS, T)))
    if B > 1 and _cdiv(B, bblk) < 2:
        bblk = _cdiv(B, 2)
    return bblk


def make_forward(input_size, num_channels):
    n_levels = len(num_channels)
    cin_p0 = _pad_to_lane(input_size)
    cout_last = num_channels[-1]

    def forward(params, x):
        # x: (B, T, C_in).  PyTorch transposes to (B, C_in, T) for conv1d; our
        # kernels consume (B, T, C) directly — same tensor, different layout.
        B, T, Cin = x.shape
        # Layout plumbing only: channel lanes padded to 128, batch padded to a
        # multiple of the per-step block.  Padded lanes / rows stay exactly 0.
        x = jnp.pad(x, ((0, 0), (0, 0), (0, cin_p0 - Cin)))
        bblk = _pick_bblk(B, T)
        b_pad = _cdiv(B, bblk) * bblk
        if b_pad != B:
            x = jnp.pad(x, ((0, b_pad - B), (0, 0), (0, 0)))

        out = x
        for i, blk in enumerate(params["blocks"]):
            last = (i == n_levels - 1)
            out = fused_multibranch_block(
                out, blk, dilation=2 ** i, reduce_mean=last, bblk=bblk,
                out_dtype=jnp.float32 if last else INTERLEVEL_DTYPE)
        # consensus torch.mean fused into the last level
        return out[:B, :cout_last]          # (B, num_channels[-1])

    return forward


# ---------------------------------------------------------------------------
# Pure-JAX reference mirroring the kernel numerics (bf16 MXU operands, f32
# accumulation, bf16 inter-level round trip) for a numerical sanity check.
# ---------------------------------------------------------------------------

def _reference_forward(params, x, input_size, num_channels):
    B, T, _ = x.shape
    out = x.astype(jnp.float32)
    n_levels = len(num_channels)
    for i, blk in enumerate(params["blocks"]):
        d = 2 ** i
        pad = (K_MAX - 1) * d
        n_in = input_size if i == 0 else num_channels[i - 1]
        n_out = num_channels[i]
        w0 = blk["w0"][:, :n_in, :n_out]
        s0 = blk["s0"][:, :n_out]
        w1 = blk["w1"][:, :n_out, :n_out]
        s1 = blk["s1"][:, :n_out]

        def stage(inp, w, s):
            p = jnp.pad(inp, ((0, 0), (pad, 0), (0, 0))).astype(jnp.bfloat16)
            y = None
            for k in range(K_MAX):
                yk = jnp.einsum("btc,cn->btn", p[:, k * d:k * d + T, :], w[k],
                                preferred_element_type=jnp.float32)
                y = yk if y is None else y + yk
            return jnp.maximum(y + s, 0.0)

        y0 = stage(out, w0, s0)
        if blk["downsample"] is not None:
            res = jnp.einsum("btc,cn->btn", out.astype(jnp.bfloat16),
                             blk["downsample"]["w"][:n_in, :n_out],
                             preferred_element_type=jnp.float32)
            res = res + blk["downsample"]["b"][:, :n_out]
        else:
            res = out
        y1 = stage(y0, w1, s1)
        out = jnp.maximum(y1 + res, 0.0)
        if i != n_levels - 1:
            out = out.astype(INTERLEVEL_DTYPE).astype(jnp.float32)
    return jnp.mean(out, axis=1)


# ---------------------------------------------------------------------------
# Demo
# ---------------------------------------------------------------------------

if __name__ == "__main__":
    key = jax.random.PRNGKey(0)
    B, T = 2, 16
    input_size = 16
    num_channels = [24, 24]      # each divisible by len(kernel_sizes) = 3
    num_classes = 10             # only used by the (unused) tcn_output Linear

    kx, kp = jax.random.split(key)
    x = jax.random.normal(kx, (B, T, input_size), jnp.float32)
    params = init_params(kp, input_size, num_channels, num_classes)

    fwd = jax.jit(make_forward(input_size, num_channels))
    out = fwd(params, x)
    out = jax.block_until_ready(out)

    assert out.shape == (B, num_channels[-1]), out.shape
    assert bool(jnp.all(jnp.isfinite(out)))

    ref = _reference_forward(params, x, input_size, num_channels)
    max_err = float(jnp.max(jnp.abs(out - ref)))
    assert jnp.allclose(out, ref, rtol=2e-2, atol=2e-2), max_err

    print("KERNEL_OK")
</pallas_src>

<mosaic_0001>
module attributes {stable_mosaic.version = 11 : i64} {
  func.func @_fused_block_kernel(%arg0: i32, %arg1: memref<1x16x128xf32, #tpu.memory_space<vmem>>, %arg2: memref<7x128x128xbf16, #tpu.memory_space<vmem>>, %arg3: memref<1x128xf32, #tpu.memory_space<vmem>>, %arg4: memref<7x128x128xbf16, #tpu.memory_space<vmem>>, %arg5: memref<1x128xf32, #tpu.memory_space<vmem>>, %arg6: memref<128x128xbf16, #tpu.memory_space<vmem>>, %arg7: memref<1x128xf32, #tpu.memory_space<vmem>>, %arg8: memref<1x16x128xbf16, #tpu.memory_space<vmem>>, %arg9: memref<1x32x128xbf16, #tpu.memory_space<vmem>>) attributes {dimension_semantics = [#tpu.dimension_semantics<parallel>], iteration_bounds = array<i64: 2>, scalar_prefetch = 0 : i64, scratch_operands = 1 : i64, tpu.core_type = #tpu.core_type<tc>, window_params = [{transform_indices = @transform_0, window_bounds = array<i64: 1, 16, 128>}, {pipeline_mode = #tpu.pipeline_mode<synchronous>, transform_indices = @transform_1, window_bounds = array<i64: 7, 128, 128>}, {pipeline_mode = #tpu.pipeline_mode<synchronous>, transform_indices = @transform_2, window_bounds = array<i64: 1, 128>}, {pipeline_mode = #tpu.pipeline_mode<synchronous>, transform_indices = @transform_3, window_bounds = array<i64: 7, 128, 128>}, {pipeline_mode = #tpu.pipeline_mode<synchronous>, transform_indices = @transform_4, window_bounds = array<i64: 1, 128>}, {pipeline_mode = #tpu.pipeline_mode<synchronous>, transform_indices = @transform_5, window_bounds = array<i64: 128, 128>}, {pipeline_mode = #tpu.pipeline_mode<synchronous>, transform_indices = @transform_6, window_bounds = array<i64: 1, 128>}, {transform_indices = @transform_7, window_bounds = array<i64: 1, 16, 128>}]} {
    %cst = arith.constant 0.000000e+00 : bf16
    %0 = vector.broadcast %cst : bf16 to vector<1x32x128xbf16>
    %c0 = arith.constant 0 : index
    %c0_0 = arith.constant 0 : index
    %c0_1 = arith.constant 0 : index
    %1 = vector.load %arg9[%c0, %c0_0, %c0_1] : memref<1x32x128xbf16, #tpu.memory_space<vmem>>, vector<1x32x128xbf16>
    tpu.vector_store %arg9[%c0, %c0_0, %c0_1], %0 {strides = array<i32>} : memref<1x32x128xbf16, #tpu.memory_space<vmem>>, vector<1x32x128xbf16>,
    %c0_2 = arith.constant 0 : index
    %c0_3 = arith.constant 0 : index
    %c0_4 = arith.constant 0 : index
    %2 = vector.load %arg1[%c0_2, %c0_3, %c0_4] : memref<1x16x128xf32, #tpu.memory_space<vmem>>, vector<1x16x128xf32>
    %3 = arith.truncf %2 : vector<1x16x128xf32> to vector<1x16x128xbf16>
    %c0_5 = arith.constant 0 : index
    %c16 = arith.constant 16 : index
    %c0_6 = arith.constant 0 : index
    %4 = vector.load %arg9[%c0_5, %c16, %c0_6] : memref<1x32x128xbf16, #tpu.memory_space<vmem>>, vector<1x16x128xbf16>
    tpu.vector_store %arg9[%c0_5, %c16, %c0_6], %3 {strides = array<i32>} : memref<1x32x128xbf16, #tpu.memory_space<vmem>>, vector<1x16x128xbf16>,
    %c0_7 = arith.constant 0 : index
    %c10 = arith.constant 10 : index
    %c0_8 = arith.constant 0 : index
    %5 = vector.load %arg9[%c0_7, %c10, %c0_8] : memref<1x32x128xbf16, #tpu.memory_space<vmem>>, vector<1x16x128xbf16>
    %6 = vector.shape_cast %5 : vector<1x16x128xbf16> to vector<16x128xbf16>
    %c0_9 = arith.constant 0 : index
    %c0_10 = arith.constant 0 : index
    %c0_11 = arith.constant 0 : index
    %7 = vector.load %arg2[%c0_9, %c0_10, %c0_11] : memref<7x128x128xbf16, #tpu.memory_space<vmem>>, vector<1x128x128xbf16>
    %8 = vector.shape_cast %7 : vector<1x128x128xbf16> to vector<128x128xbf16>
    %cst_12 = arith.constant dense<0.000000e+00> : vector<16x128xf32>
    %9 = tpu.matmul %6, %8, %cst_12 {dimension_numbers = #tpu.dot_dimension_numbers<[1], [0], [0], [1], [0, 0, 1, 1], [], []>} : vector<16x128xbf16>, vector<128x128xbf16>, vector<16x128xf32> -> vector<16x128xf32>
    %c0_13 = arith.constant 0 : index
    %c11 = arith.constant 11 : index
    %c0_14 = arith.constant 0 : index
    %10 = vector.load %arg9[%c0_13, %c11, %c0_14] : memref<1x32x128xbf16, #tpu.memory_space<vmem>>, vector<1x16x128xbf16>
    %11 = vector.shape_cast %10 : vector<1x16x128xbf16> to vector<16x128xbf16>
    %c1 = arith.constant 1 : index
    %c0_15 = arith.constant 0 : index
    %c0_16 = arith.constant 0 : index
    %12 = vector.load %arg2[%c1, %c0_15, %c0_16] : memref<7x128x128xbf16, #tpu.memory_space<vmem>>, vector<1x128x128xbf16>
    %13 = vector.shape_cast %12 : vector<1x128x128xbf16> to vector<128x128xbf16>
    %cst_17 = arith.constant dense<0.000000e+00> : vector<16x128xf32>
    %14 = tpu.matmul %11, %13, %cst_17 {dimension_numbers = #tpu.dot_dimension_numbers<[1], [0], [0], [1], [0, 0, 1, 1], [], []>} : vector<16x128xbf16>, vector<128x128xbf16>, vector<16x128xf32> -> vector<16x128xf32>
    %15 = arith.addf %9, %14 : vector<16x128xf32>
    %c0_18 = arith.constant 0 : index
    %c12 = arith.constant 12 : index
    %c0_19 = arith.constant 0 : index
    %16 = vector.load %arg9[%c0_18, %c12, %c0_19] : memref<1x32x128xbf16, #tpu.memory_space<vmem>>, vector<1x16x128xbf16>
    %17 = vector.shape_cast %16 : vector<1x16x128xbf16> to vector<16x128xbf16>
    %c2 = arith.constant 2 : index
    %c0_20 = arith.constant 0 : index
    %c0_21 = arith.constant 0 : index
    %18 = vector.load %arg2[%c2, %c0_20, %c0_21] : memref<7x128x128xbf16, #tpu.memory_space<vmem>>, vector<1x128x128xbf16>
    %19 = vector.shape_cast %18 : vector<1x128x128xbf16> to vector<128x128xbf16>
    %cst_22 = arith.constant dense<0.000000e+00> : vector<16x128xf32>
    %20 = tpu.matmul %17, %19, %cst_22 {dimension_numbers = #tpu.dot_dimension_numbers<[1], [0], [0], [1], [0, 0, 1, 1], [], []>} : vector<16x128xbf16>, vector<128x128xbf16>, vector<16x128xf32> -> vector<16x128xf32>
    %21 = arith.addf %15, %20 : vector<16x128xf32>
    %c0_23 = arith.constant 0 : index
    %c13 = arith.constant 13 : index
    %c0_24 = arith.constant 0 : index
    %22 = vector.load %arg9[%c0_23, %c13, %c0_24] : memref<1x32x128xbf16, #tpu.memory_space<vmem>>, vector<1x16x128xbf16>
    %23 = vector.shape_cast %22 : vector<1x16x128xbf16> to vector<16x128xbf16>
    %c3 = arith.constant 3 : index
    %c0_25 = arith.constant 0 : index
    %c0_26 = arith.constant 0 : index
    %24 = vector.load %arg2[%c3, %c0_25, %c0_26] : memref<7x128x128xbf16, #tpu.memory_space<vmem>>, vector<1x128x128xbf16>
    %25 = vector.shape_cast %24 : vector<1x128x128xbf16> to vector<128x128xbf16>
    %cst_27 = arith.constant dense<0.000000e+00> : vector<16x128xf32>
    %26 = tpu.matmul %23, %25, %cst_27 {dimension_numbers = #tpu.dot_dimension_numbers<[1], [0], [0], [1], [0, 0, 1, 1], [], []>} : vector<16x128xbf16>, vector<128x128xbf16>, vector<16x128xf32> -> vector<16x128xf32>
    %27 = arith.addf %21, %26 : vector<16x128xf32>
    %c0_28 = arith.constant 0 : index
    %c14 = arith.constant 14 : index
    %c0_29 = arith.constant 0 : index
    %28 = vector.load %arg9[%c0_28, %c14, %c0_29] : memref<1x32x128xbf16, #tpu.memory_space<vmem>>, vector<1x16x128xbf16>
    %29 = vector.shape_cast %28 : vector<1x16x128xbf16> to vector<16x128xbf16>
    %c4 = arith.constant 4 : index
    %c0_30 = arith.constant 0 : index
    %c0_31 = arith.constant 0 : index
    %30 = vector.load %arg2[%c4, %c0_30, %c0_31] : memref<7x128x128xbf16, #tpu.memory_space<vmem>>, vector<1x128x128xbf16>
    %31 = vector.shape_cast %30 : vector<1x128x128xbf16> to vector<128x128xbf16>
    %cst_32 = arith.constant dense<0.000000e+00> : vector<16x128xf32>
    %32 = tpu.matmul %29, %31, %cst_32 {dimension_numbers = #tpu.dot_dimension_numbers<[1], [0], [0], [1], [0, 0, 1, 1], [], []>} : vector<16x128xbf16>, vector<128x128xbf16>, vector<16x128xf32> -> vector<16x128xf32>
    %33 = arith.addf %27, %32 : vector<16x128xf32>
    %c0_33 = arith.constant 0 : index
    %c15 = arith.constant 15 : index
    %c0_34 = arith.constant 0 : index
    %34 = vector.load %arg9[%c0_33, %c15, %c0_34] : memref<1x32x128xbf16, #tpu.memory_space<vmem>>, vector<1x16x128xbf16>
    %35 = vector.shape_cast %34 : vector<1x16x128xbf16> to vector<16x128xbf16>
    %c5 = arith.constant 5 : index
    %c0_35 = arith.constant 0 : index
    %c0_36 = arith.constant 0 : index
    %36 = vector.load %arg2[%c5, %c0_35, %c0_36] : memref<7x128x128xbf16, #tpu.memory_space<vmem>>, vector<1x128x128xbf16>
    %37 = vector.shape_cast %36 : vector<1x128x128xbf16> to vector<128x128xbf16>
    %cst_37 = arith.constant dense<0.000000e+00> : vector<16x128xf32>
    %38 = tpu.matmul %35, %37, %cst_37 {dimension_numbers = #tpu.dot_dimension_numbers<[1], [0], [0], [1], [0, 0, 1, 1], [], []>} : vector<16x128xbf16>, vector<128x128xbf16>, vector<16x128xf32> -> vector<16x128xf32>
    %39 = arith.addf %33, %38 : vector<16x128xf32>
    %c0_38 = arith.constant 0 : index
    %c16_39 = arith.constant 16 : index
    %c0_40 = arith.constant 0 : index
    %40 = vector.load %arg9[%c0_38, %c16_39, %c0_40] : memref<1x32x128xbf16, #tpu.memory_space<vmem>>, vector<1x16x128xbf16>
    %41 = vector.shape_cast %40 : vector<1x16x128xbf16> to vector<16x128xbf16>
    %c6 = arith.constant 6 : index
    %c0_41 = arith.constant 0 : index
    %c0_42 = arith.constant 0 : index
    %42 = vector.load %arg2[%c6, %c0_41, %c0_42] : memref<7x128x128xbf16, #tpu.memory_space<vmem>>, vector<1x128x128xbf16>
    %43 = vector.shape_cast %42 : vector<1x128x128xbf16> to vector<128x128xbf16>
    %cst_43 = arith.constant dense<0.000000e+00> : vector<16x128xf32>
    %44 = tpu.matmul %41, %43, %cst_43 {dimension_numbers = #tpu.dot_dimension_numbers<[1], [0], [0], [1], [0, 0, 1, 1], [], []>} : vector<16x128xbf16>, vector<128x128xbf16>, vector<16x128xf32> -> vector<16x128xf32>
    %45 = arith.addf %39, %44 : vector<16x128xf32>
    %c0_44 = arith.constant 0 : index
    %c0_45 = arith.constant 0 : index
    %46 = vector.load %arg3[%c0_44, %c0_45] : memref<1x128xf32, #tpu.memory_space<vmem>>, vector<1x128xf32>
    %47 = vector.broadcast %46 : vector<1x128xf32> to vector<16x128xf32>
    %48 = arith.addf %45, %47 : vector<16x128xf32>
    %cst_46 = arith.constant 0.000000e+00 : f32
    %49 = vector.broadcast %cst_46 : f32 to vector<16x128xf32>
    %50 = arith.maximumf %48, %49 : vector<16x128xf32>
    %c0_47 = arith.constant 0 : index
    %c16_48 = arith.constant 16 : index
    %c0_49 = arith.constant 0 : index
    %51 = vector.load %arg9[%c0_47, %c16_48, %c0_49] : memref<1x32x128xbf16, #tpu.memory_space<vmem>>, vector<1x16x128xbf16>
    %52 = vector.shape_cast %51 : vector<1x16x128xbf16> to vector<16x128xbf16>
    %c0_50 = arith.constant 0 : index
    %c0_51 = arith.constant 0 : index
    %53 = vector.load %arg6[%c0_50, %c0_51] : memref<128x128xbf16, #tpu.memory_space<vmem>>, vector<128x128xbf16>
    %cst_52 = arith.constant dense<0.000000e+00> : vector<16x128xf32>
    %54 = tpu.matmul %52, %53, %cst_52 {dimension_numbers = #tpu.dot_dimension_numbers<[1], [0], [0], [1], [0, 0, 1, 1], [], []>} : vector<16x128xbf16>, vector<128x128xbf16>, vector<16x128xf32> -> vector<16x128xf32>
    %c0_53 = arith.constant 0 : index
    %c0_54 = arith.constant 0 : index
    %55 = vector.load %arg7[%c0_53, %c0_54] : memref<1x128xf32, #tpu.memory_space<vmem>>, vector<1x128xf32>
    %56 = vector.broadcast %55 : vector<1x128xf32> to vector<16x128xf32>
    %57 = arith.addf %54, %56 : vector<16x128xf32>
    %58 = vector.shape_cast %50 : vector<16x128xf32> to vector<1x16x128xf32>
    %59 = arith.truncf %58 : vector<1x16x128xf32> to vector<1x16x128xbf16>
    %c0_55 = arith.constant 0 : index
    %c16_56 = arith.constant 16 : index
    %c0_57 = arith.constant 0 : index
    %60 = vector.load %arg9[%c0_55, %c16_56, %c0_57] : memref<1x32x128xbf16, #tpu.memory_space<vmem>>, vector<1x16x128xbf16>
    tpu.vector_store %arg9[%c0_55, %c16_56, %c0_57], %59 {strides = array<i32>} : memref<1x32x128xbf16, #tpu.memory_space<vmem>>, vector<1x16x128xbf16>,
    %c0_58 = arith.constant 0 : index
    %c10_59 = arith.constant 10 : index
    %c0_60 = arith.constant 0 : index
    %61 = vector.load %arg9[%c0_58, %c10_59, %c0_60] : memref<1x32x128xbf16, #tpu.memory_space<vmem>>, vector<1x16x128xbf16>
    %62 = vector.shape_cast %61 : vector<1x16x128xbf16> to vector<16x128xbf16>
    %c0_61 = arith.constant 0 : index
    %c0_62 = arith.constant 0 : index
    %c0_63 = arith.constant 0 : index
    %63 = vector.load %arg4[%c0_61, %c0_62, %c0_63] : memref<7x128x128xbf16, #tpu.memory_space<vmem>>, vector<1x128x128xbf16>
    %64 = vector.shape_cast %63 : vector<1x128x128xbf16> to vector<128x128xbf16>
    %cst_64 = arith.constant dense<0.000000e+00> : vector<16x128xf32>
    %65 = tpu.matmul %62, %64, %cst_64 {dimension_numbers = #tpu.dot_dimension_numbers<[1], [0], [0], [1], [0, 0, 1, 1], [], []>} : vector<16x128xbf16>, vector<128x128xbf16>, vector<16x128xf32> -> vector<16x128xf32>
    %c0_65 = arith.constant 0 : index
    %c11_66 = arith.constant 11 : index
    %c0_67 = arith.constant 0 : index
    %66 = vector.load %arg9[%c0_65, %c11_66, %c0_67] : memref<1x32x128xbf16, #tpu.memory_space<vmem>>, vector<1x16x128xbf16>
    %67 = vector.shape_cast %66 : vector<1x16x128xbf16> to vector<16x128xbf16>
    %c1_68 = arith.constant 1 : index
    %c0_69 = arith.constant 0 : index
    %c0_70 = arith.constant 0 : index
    %68 = vector.load %arg4[%c1_68, %c0_69, %c0_70] : memref<7x128x128xbf16, #tpu.memory_space<vmem>>, vector<1x128x128xbf16>
    %69 = vector.shape_cast %68 : vector<1x128x128xbf16> to vector<128x128xbf16>
    %cst_71 = arith.constant dense<0.000000e+00> : vector<16x128xf32>
    %70 = tpu.matmul %67, %69, %cst_71 {dimension_numbers = #tpu.dot_dimension_numbers<[1], [0], [0], [1], [0, 0, 1, 1], [], []>} : vector<16x128xbf16>, vector<128x128xbf16>, vector<16x128xf32> -> vector<16x128xf32>
    %71 = arith.addf %65, %70 : vector<16x128xf32>
    %c0_72 = arith.constant 0 : index
    %c12_73 = arith.constant 12 : index
    %c0_74 = arith.constant 0 : index
    %72 = vector.load %arg9[%c0_72, %c12_73, %c0_74] : memref<1x32x128xbf16, #tpu.memory_space<vmem>>, vector<1x16x128xbf16>
    %73 = vector.shape_cast %72 : vector<1x16x128xbf16> to vector<16x128xbf16>
    %c2_75 = arith.constant 2 : index
    %c0_76 = arith.constant 0 : index
    %c0_77 = arith.constant 0 : index
    %74 = vector.load %arg4[%c2_75, %c0_76, %c0_77] : memref<7x128x128xbf16, #tpu.memory_space<vmem>>, vector<1x128x128xbf16>
    %75 = vector.shape_cast %74 : vector<1x128x128xbf16> to vector<128x128xbf16>
    %cst_78 = arith.constant dense<0.000000e+00> : vector<16x128xf32>
    %76 = tpu.matmul %73, %75, %cst_78 {dimension_numbers = #tpu.dot_dimension_numbers<[1], [0], [0], [1], [0, 0, 1, 1], [], []>} : vector<16x128xbf16>, vector<128x128xbf16>, vector<16x128xf32> -> vector<16x128xf32>
    %77 = arith.addf %71, %76 : vector<16x128xf32>
    %c0_79 = arith.constant 0 : index
    %c13_80 = arith.constant 13 : index
    %c0_81 = arith.constant 0 : index
    %78 = vector.load %arg9[%c0_79, %c13_80, %c0_81] : memref<1x32x128xbf16, #tpu.memory_space<vmem>>, vector<1x16x128xbf16>
    %79 = vector.shape_cast %78 : vector<1x16x128xbf16> to vector<16x128xbf16>
    %c3_82 = arith.constant 3 : index
    %c0_83 = arith.constant 0 : index
    %c0_84 = arith.constant 0 : index
    %80 = vector.load %arg4[%c3_82, %c0_83, %c0_84] : memref<7x128x128xbf16, #tpu.memory_space<vmem>>, vector<1x128x128xbf16>
    %81 = vector.shape_cast %80 : vector<1x128x128xbf16> to vector<128x128xbf16>
    %cst_85 = arith.constant dense<0.000000e+00> : vector<16x128xf32>
    %82 = tpu.matmul %79, %81, %cst_85 {dimension_numbers = #tpu.dot_dimension_numbers<[1], [0], [0], [1], [0, 0, 1, 1], [], []>} : vector<16x128xbf16>, vector<128x128xbf16>, vector<16x128xf32> -> vector<16x128xf32>
    %83 = arith.addf %77, %82 : vector<16x128xf32>
    %c0_86 = arith.constant 0 : index
    %c14_87 = arith.constant 14 : index
    %c0_88 = arith.constant 0 : index
    %84 = vector.load %arg9[%c0_86, %c14_87, %c0_88] : memref<1x32x128xbf16, #tpu.memory_space<vmem>>, vector<1x16x128xbf16>
    %85 = vector.shape_cast %84 : vector<1x16x128xbf16> to vector<16x128xbf16>
    %c4_89 = arith.constant 4 : index
    %c0_90 = arith.constant 0 : index
    %c0_91 = arith.constant 0 : index
    %86 = vector.load %arg4[%c4_89, %c0_90, %c0_91] : memref<7x128x128xbf16, #tpu.memory_space<vmem>>, vector<1x128x128xbf16>
    %87 = vector.shape_cast %86 : vector<1x128x128xbf16> to vector<128x128xbf16>
    %cst_92 = arith.constant dense<0.000000e+00> : vector<16x128xf32>
    %88 = tpu.matmul %85, %87, %cst_92 {dimension_numbers = #tpu.dot_dimension_numbers<[1], [0], [0], [1], [0, 0, 1, 1], [], []>} : vector<16x128xbf16>, vector<128x128xbf16>, vector<16x128xf32> -> vector<16x128xf32>
    %89 = arith.addf %83, %88 : vector<16x128xf32>
    %c0_93 = arith.constant 0 : index
    %c15_94 = arith.constant 15 : index
    %c0_95 = arith.constant 0 : index
    %90 = vector.load %arg9[%c0_93, %c15_94, %c0_95] : memref<1x32x128xbf16, #tpu.memory_space<vmem>>, vector<1x16x128xbf16>
    %91 = vector.shape_cast %90 : vector<1x16x128xbf16> to vector<16x128xbf16>
    %c5_96 = arith.constant 5 : index
    %c0_97 = arith.constant 0 : index
    %c0_98 = arith.constant 0 : index
    %92 = vector.load %arg4[%c5_96, %c0_97, %c0_98] : memref<7x128x128xbf16, #tpu.memory_space<vmem>>, vector<1x128x128xbf16>
    %93 = vector.shape_cast %92 : vector<1x128x128xbf16> to vector<128x128xbf16>
    %cst_99 = arith.constant dense<0.000000e+00> : vector<16x128xf32>
    %94 = tpu.matmul %91, %93, %cst_99 {dimension_numbers = #tpu.dot_dimension_numbers<[1], [0], [0], [1], [0, 0, 1, 1], [], []>} : vector<16x128xbf16>, vector<128x128xbf16>, vector<16x128xf32> -> vector<16x128xf32>
    %95 = arith.addf %89, %94 : vector<16x128xf32>
    %c0_100 = arith.constant 0 : index
    %c16_101 = arith.constant 16 : index
    %c0_102 = arith.constant 0 : index
    %96 = vector.load %arg9[%c0_100, %c16_101, %c0_102] : memref<1x32x128xbf16, #tpu.memory_space<vmem>>, vector<1x16x128xbf16>
    %97 = vector.shape_cast %96 : vector<1x16x128xbf16> to vector<16x128xbf16>
    %c6_103 = arith.constant 6 : index
    %c0_104 = arith.constant 0 : index
    %c0_105 = arith.constant 0 : index
    %98 = vector.load %arg4[%c6_103, %c0_104, %c0_105] : memref<7x128x128xbf16, #tpu.memory_space<vmem>>, vector<1x128x128xbf16>
    %99 = vector.shape_cast %98 : vector<1x128x128xbf16> to vector<128x128xbf16>
    %cst_106 = arith.constant dense<0.000000e+00> : vector<16x128xf32>
    %100 = tpu.matmul %97, %99, %cst_106 {dimension_numbers = #tpu.dot_dimension_numbers<[1], [0], [0], [1], [0, 0, 1, 1], [], []>} : vector<16x128xbf16>, vector<128x128xbf16>, vector<16x128xf32> -> vector<16x128xf32>
    %101 = arith.addf %95, %100 : vector<16x128xf32>
    %c0_107 = arith.constant 0 : index
    %c0_108 = arith.constant 0 : index
    %102 = vector.load %arg5[%c0_107, %c0_108] : memref<1x128xf32, #tpu.memory_space<vmem>>, vector<1x128xf32>
    %103 = vector.broadcast %102 : vector<1x128xf32> to vector<16x128xf32>
    %104 = arith.addf %101, %103 : vector<16x128xf32>
    %cst_109 = arith.constant 0.000000e+00 : f32
    %105 = vector.broadcast %cst_109 : f32 to vector<16x128xf32>
    %106 = arith.maximumf %104, %105 : vector<16x128xf32>
    %107 = arith.addf %106, %57 : vector<16x128xf32>
    %cst_110 = arith.constant 0.000000e+00 : f32
    %108 = vector.broadcast %cst_110 : f32 to vector<16x128xf32>
    %109 = arith.maximumf %107, %108 : vector<16x128xf32>
    %110 = vector.shape_cast %109 : vector<16x128xf32> to vector<1x16x128xf32>
    %111 = arith.truncf %110 : vector<1x16x128xf32> to vector<1x16x128xbf16>
    %c0_111 = arith.constant 0 : index
    %c0_112 = arith.constant 0 : index
    %c0_113 = arith.constant 0 : index
    %112 = vector.load %arg8[%c0_111, %c0_112, %c0_113] : memref<1x16x128xbf16, #tpu.memory_space<vmem>>, vector<1x16x128xbf16>
    tpu.vector_store %arg8[%c0_111, %c0_112, %c0_113], %111 {strides = array<i32>} : memref<1x16x128xbf16, #tpu.memory_space<vmem>>, vector<1x16x128xbf16>,
    return
  }
  func.func @transform_0(%arg0: i32) -> (i32, i32, i32) {
    %c0_i32 = arith.constant 0 : i32
    %c0_i32_0 = arith.constant 0 : i32
    %c0_i32_1 = arith.constant 0 : i32
    return %arg0, %c0_i32, %c0_i32_0 : i32, i32, i32
  }
  func.func @transform_1(%arg0: i32) -> (i32, i32, i32) {
    %c0_i32 = arith.constant 0 : i32
    %c0_i32_0 = arith.constant 0 : i32
    %c0_i32_1 = arith.constant 0 : i32
    %c0_i32_2 = arith.constant 0 : i32
    return %c0_i32, %c0_i32_0, %c0_i32_1 : i32, i32, i32
  }
  func.func @transform_2(%arg0: i32) -> (i32, i32) {
    %c0_i32 = arith.constant 0 : i32
    %c0_i32_0 = arith.constant 0 : i32
    %c0_i32_1 = arith.constant 0 : i32
    return %c0_i32, %c0_i32_0 : i32, i32
  }
  func.func @transform_3(%arg0: i32) -> (i32, i32, i32) {
    %c0_i32 = arith.constant 0 : i32
    %c0_i32_0 = arith.constant 0 : i32
    %c0_i32_1 = arith.constant 0 : i32
    %c0_i32_2 = arith.constant 0 : i32
    return %c0_i32, %c0_i32_0, %c0_i32_1 : i32, i32, i32
  }
  func.func @transform_4(%arg0: i32) -> (i32, i32) {
    %c0_i32 = arith.constant 0 : i32
    %c0_i32_0 = arith.constant 0 : i32
    %c0_i32_1 = arith.constant 0 : i32
    return %c0_i32, %c0_i32_0 : i32, i32
  }
  func.func @transform_5(%arg0: i32) -> (i32, i32) {
    %c0_i32 = arith.constant 0 : i32
    %c0_i32_0 = arith.constant 0 : i32
    %c0_i32_1 = arith.constant 0 : i32
    return %c0_i32, %c0_i32_0 : i32, i32
  }
  func.func @transform_6(%arg0: i32) -> (i32, i32) {
    %c0_i32 = arith.constant 0 : i32
    %c0_i32_0 = arith.constant 0 : i32
    %c0_i32_1 = arith.constant 0 : i32
    return %c0_i32, %c0_i32_0 : i32, i32
  }
  func.func @transform_7(%arg0: i32) -> (i32, i32, i32) {
    %c0_i32 = arith.constant 0 : i32
    %c0_i32_0 = arith.constant 0 : i32
    %c0_i32_1 = arith.constant 0 : i32
    return %arg0, %c0_i32, %c0_i32_0 : i32, i32, i32
  }
}

module attributes {stable_mosaic.version = 11 : i64} {
  func.func @_fused_block_kernel(%arg0: i32, %arg1: memref<1x16x128xbf16, #tpu.memory_space<vmem>>, %arg2: memref<7x128x128xbf16, #tpu.memory_space<vmem>>, %arg3: memref<1x128xf32, #tpu.memory_space<vmem>>, %arg4: memref<7x128x128xbf16, #tpu.memory_space<vmem>>, %arg5: memref<1x128xf32, #tpu.memory_space<vmem>>, %arg6: memref<1x1x128xf32, #tpu.memory_space<vmem>>, %arg7: memref<1x32x128xbf16, #tpu.memory_space<vmem>>) attributes {dimension_semantics = [#tpu.dimension_semantics<parallel>], iteration_bounds = array<i64: 2>, scalar_prefetch = 0 : i64, scratch_operands = 1 : i64, tpu.core_type = #tpu.core_type<tc>, window_params = [{transform_indices = @transform_0, window_bounds = array<i64: 1, 16, 128>}, {pipeline_mode = #tpu.pipeline_mode<synchronous>, transform_indices = @transform_1, window_bounds = array<i64: 7, 128, 128>}, {pipeline_mode = #tpu.pipeline_mode<synchronous>, transform_indices = @transform_2, window_bounds = array<i64: 1, 128>}, {pipeline_mode = #tpu.pipeline_mode<synchronous>, transform_indices = @transform_3, window_bounds = array<i64: 7, 128, 128>}, {pipeline_mode = #tpu.pipeline_mode<synchronous>, transform_indices = @transform_4, window_bounds = array<i64: 1, 128>}, {transform_indices = @transform_5, window_bounds = array<i64: 1, 1, 128>}]} {
    %cst = arith.constant 0.000000e+00 : bf16
    %0 = vector.broadcast %cst : bf16 to vector<1x32x128xbf16>
    %c0 = arith.constant 0 : index
    %c0_0 = arith.constant 0 : index
    %c0_1 = arith.constant 0 : index
    %1 = vector.load %arg7[%c0, %c0_0, %c0_1] : memref<1x32x128xbf16, #tpu.memory_space<vmem>>, vector<1x32x128xbf16>
    tpu.vector_store %arg7[%c0, %c0_0, %c0_1], %0 {strides = array<i32>} : memref<1x32x128xbf16, #tpu.memory_space<vmem>>, vector<1x32x128xbf16>,
    %c0_2 = arith.constant 0 : index
    %c0_3 = arith.constant 0 : index
    %c0_4 = arith.constant 0 : index
    %2 = vector.load %arg1[%c0_2, %c0_3, %c0_4] : memref<1x16x128xbf16, #tpu.memory_space<vmem>>, vector<1x16x128xbf16>
    %c0_5 = arith.constant 0 : index
    %c16 = arith.constant 16 : index
    %c0_6 = arith.constant 0 : index
    %3 = vector.load %arg7[%c0_5, %c16, %c0_6] : memref<1x32x128xbf16, #tpu.memory_space<vmem>>, vector<1x16x128xbf16>
    tpu.vector_store %arg7[%c0_5, %c16, %c0_6], %2 {strides = array<i32>} : memref<1x32x128xbf16, #tpu.memory_space<vmem>>, vector<1x16x128xbf16>,
    %c0_7 = arith.constant 0 : index
    %c4 = arith.constant 4 : index
    %c0_8 = arith.constant 0 : index
    %4 = vector.load %arg7[%c0_7, %c4, %c0_8] : memref<1x32x128xbf16, #tpu.memory_space<vmem>>, vector<1x16x128xbf16>
    %5 = vector.shape_cast %4 : vector<1x16x128xbf16> to vector<16x128xbf16>
    %c0_9 = arith.constant 0 : index
    %c0_10 = arith.constant 0 : index
    %c0_11 = arith.constant 0 : index
    %6 = vector.load %arg2[%c0_9, %c0_10, %c0_11] : memref<7x128x128xbf16, #tpu.memory_space<vmem>>, vector<1x128x128xbf16>
    %7 = vector.shape_cast %6 : vector<1x128x128xbf16> to vector<128x128xbf16>
    %cst_12 = arith.constant dense<0.000000e+00> : vector<16x128xf32>
    %8 = tpu.matmul %5, %7, %cst_12 {dimension_numbers = #tpu.dot_dimension_numbers<[1], [0], [0], [1], [0, 0, 1, 1], [], []>} : vector<16x128xbf16>, vector<128x128xbf16>, vector<16x128xf32> -> vector<16x128xf32>
    %c0_13 = arith.constant 0 : index
    %c6 = arith.constant 6 : index
    %c0_14 = arith.constant 0 : index
    %9 = vector.load %arg7[%c0_13, %c6, %c0_14] : memref<1x32x128xbf16, #tpu.memory_space<vmem>>, vector<1x16x128xbf16>
    %10 = vector.shape_cast %9 : vector<1x16x128xbf16> to vector<16x128xbf16>
    %c1 = arith.constant 1 : index
    %c0_15 = arith.constant 0 : index
    %c0_16 = arith.constant 0 : index
    %11 = vector.load %arg2[%c1, %c0_15, %c0_16] : memref<7x128x128xbf16, #tpu.memory_space<vmem>>, vector<1x128x128xbf16>
    %12 = vector.shape_cast %11 : vector<1x128x128xbf16> to vector<128x128xbf16>
    %cst_17 = arith.constant dense<0.000000e+00> : vector<16x128xf32>
    %13 = tpu.matmul %10, %12, %cst_17 {dimension_numbers = #tpu.dot_dimension_numbers<[1], [0], [0], [1], [0, 0, 1, 1], [], []>} : vector<16x128xbf16>, vector<128x128xbf16>, vector<16x128xf32> -> vector<16x128xf32>
    %14 = arith.addf %8, %13 : vector<16x128xf32>
    %c0_18 = arith.constant 0 : index
    %c8 = arith.constant 8 : index
    %c0_19 = arith.constant 0 : index
    %15 = vector.load %arg7[%c0_18, %c8, %c0_19] : memref<1x32x128xbf16, #tpu.memory_space<vmem>>, vector<1x16x128xbf16>
    %16 = vector.shape_cast %15 : vector<1x16x128xbf16> to vector<16x128xbf16>
    %c2 = arith.constant 2 : index
    %c0_20 = arith.constant 0 : index
    %c0_21 = arith.constant 0 : index
    %17 = vector.load %arg2[%c2, %c0_20, %c0_21] : memref<7x128x128xbf16, #tpu.memory_space<vmem>>, vector<1x128x128xbf16>
    %18 = vector.shape_cast %17 : vector<1x128x128xbf16> to vector<128x128xbf16>
    %cst_22 = arith.constant dense<0.000000e+00> : vector<16x128xf32>
    %19 = tpu.matmul %16, %18, %cst_22 {dimension_numbers = #tpu.dot_dimension_numbers<[1], [0], [0], [1], [0, 0, 1, 1], [], []>} : vector<16x128xbf16>, vector<128x128xbf16>, vector<16x128xf32> -> vector<16x128xf32>
    %20 = arith.addf %14, %19 : vector<16x128xf32>
    %c0_23 = arith.constant 0 : index
    %c10 = arith.constant 10 : index
    %c0_24 = arith.constant 0 : index
    %21 = vector.load %arg7[%c0_23, %c10, %c0_24] : memref<1x32x128xbf16, #tpu.memory_space<vmem>>, vector<1x16x128xbf16>
    %22 = vector.shape_cast %21 : vector<1x16x128xbf16> to vector<16x128xbf16>
    %c3 = arith.constant 3 : index
    %c0_25 = arith.constant 0 : index
    %c0_26 = arith.constant 0 : index
    %23 = vector.load %arg2[%c3, %c0_25, %c0_26] : memref<7x128x128xbf16, #tpu.memory_space<vmem>>, vector<1x128x128xbf16>
    %24 = vector.shape_cast %23 : vector<1x128x128xbf16> to vector<128x128xbf16>
    %cst_27 = arith.constant dense<0.000000e+00> : vector<16x128xf32>
    %25 = tpu.matmul %22, %24, %cst_27 {dimension_numbers = #tpu.dot_dimension_numbers<[1], [0], [0], [1], [0, 0, 1, 1], [], []>} : vector<16x128xbf16>, vector<128x128xbf16>, vector<16x128xf32> -> vector<16x128xf32>
    %26 = arith.addf %20, %25 : vector<16x128xf32>
    %c0_28 = arith.constant 0 : index
    %c12 = arith.constant 12 : index
    %c0_29 = arith.constant 0 : index
    %27 = vector.load %arg7[%c0_28, %c12, %c0_29] : memref<1x32x128xbf16, #tpu.memory_space<vmem>>, vector<1x16x128xbf16>
    %28 = vector.shape_cast %27 : vector<1x16x128xbf16> to vector<16x128xbf16>
    %c4_30 = arith.constant 4 : index
    %c0_31 = arith.constant 0 : index
    %c0_32 = arith.constant 0 : index
    %29 = vector.load %arg2[%c4_30, %c0_31, %c0_32] : memref<7x128x128xbf16, #tpu.memory_space<vmem>>, vector<1x128x128xbf16>
    %30 = vector.shape_cast %29 : vector<1x128x128xbf16> to vector<128x128xbf16>
    %cst_33 = arith.constant dense<0.000000e+00> : vector<16x128xf32>
    %31 = tpu.matmul %28, %30, %cst_33 {dimension_numbers = #tpu.dot_dimension_numbers<[1], [0], [0], [1], [0, 0, 1, 1], [], []>} : vector<16x128xbf16>, vector<128x128xbf16>, vector<16x128xf32> -> vector<16x128xf32>
    %32 = arith.addf %26, %31 : vector<16x128xf32>
    %c0_34 = arith.constant 0 : index
    %c14 = arith.constant 14 : index
    %c0_35 = arith.constant 0 : index
    %33 = vector.load %arg7[%c0_34, %c14, %c0_35] : memref<1x32x128xbf16, #tpu.memory_space<vmem>>, vector<1x16x128xbf16>
    %34 = vector.shape_cast %33 : vector<1x16x128xbf16> to vector<16x128xbf16>
    %c5 = arith.constant 5 : index
    %c0_36 = arith.constant 0 : index
    %c0_37 = arith.constant 0 : index
    %35 = vector.load %arg2[%c5, %c0_36, %c0_37] : memref<7x128x128xbf16, #tpu.memory_space<vmem>>, vector<1x128x128xbf16>
    %36 = vector.shape_cast %35 : vector<1x128x128xbf16> to vector<128x128xbf16>
    %cst_38 = arith.constant dense<0.000000e+00> : vector<16x128xf32>
    %37 = tpu.matmul %34, %36, %cst_38 {dimension_numbers = #tpu.dot_dimension_numbers<[1], [0], [0], [1], [0, 0, 1, 1], [], []>} : vector<16x128xbf16>, vector<128x128xbf16>, vector<16x128xf32> -> vector<16x128xf32>
    %38 = arith.addf %32, %37 : vector<16x128xf32>
    %c0_39 = arith.constant 0 : index
    %c16_40 = arith.constant 16 : index
    %c0_41 = arith.constant 0 : index
    %39 = vector.load %arg7[%c0_39, %c16_40, %c0_41] : memref<1x32x128xbf16, #tpu.memory_space<vmem>>, vector<1x16x128xbf16>
    %40 = vector.shape_cast %39 : vector<1x16x128xbf16> to vector<16x128xbf16>
    %c6_42 = arith.constant 6 : index
    %c0_43 = arith.constant 0 : index
    %c0_44 = arith.constant 0 : index
    %41 = vector.load %arg2[%c6_42, %c0_43, %c0_44] : memref<7x128x128xbf16, #tpu.memory_space<vmem>>, vector<1x128x128xbf16>
    %42 = vector.shape_cast %41 : vector<1x128x128xbf16> to vector<128x128xbf16>
    %cst_45 = arith.constant dense<0.000000e+00> : vector<16x128xf32>
    %43 = tpu.matmul %40, %42, %cst_45 {dimension_numbers = #tpu.dot_dimension_numbers<[1], [0], [0], [1], [0, 0, 1, 1], [], []>} : vector<16x128xbf16>, vector<128x128xbf16>, vector<16x128xf32> -> vector<16x128xf32>
    %44 = arith.addf %38, %43 : vector<16x128xf32>
    %c0_46 = arith.constant 0 : index
    %c0_47 = arith.constant 0 : index
    %45 = vector.load %arg3[%c0_46, %c0_47] : memref<1x128xf32, #tpu.memory_space<vmem>>, vector<1x128xf32>
    %46 = vector.broadcast %45 : vector<1x128xf32> to vector<16x128xf32>
    %47 = arith.addf %44, %46 : vector<16x128xf32>
    %cst_48 = arith.constant 0.000000e+00 : f32
    %48 = vector.broadcast %cst_48 : f32 to vector<16x128xf32>
    %49 = arith.maximumf %47, %48 : vector<16x128xf32>
    %50 = vector.shape_cast %2 : vector<1x16x128xbf16> to vector<16x128xbf16>
    %51 = arith.extf %50 : vector<16x128xbf16> to vector<16x128xf32>
    %52 = vector.shape_cast %49 : vector<16x128xf32> to vector<1x16x128xf32>
    %53 = arith.truncf %52 : vector<1x16x128xf32> to vector<1x16x128xbf16>
    %c0_49 = arith.constant 0 : index
    %c16_50 = arith.constant 16 : index
    %c0_51 = arith.constant 0 : index
    %54 = vector.load %arg7[%c0_49, %c16_50, %c0_51] : memref<1x32x128xbf16, #tpu.memory_space<vmem>>, vector<1x16x128xbf16>
    tpu.vector_store %arg7[%c0_49, %c16_50, %c0_51], %53 {strides = array<i32>} : memref<1x32x128xbf16, #tpu.memory_space<vmem>>, vector<1x16x128xbf16>,
    %c0_52 = arith.constant 0 : index
    %c4_53 = arith.constant 4 : index
    %c0_54 = arith.constant 0 : index
    %55 = vector.load %arg7[%c0_52, %c4_53, %c0_54] : memref<1x32x128xbf16, #tpu.memory_space<vmem>>, vector<1x16x128xbf16>
    %56 = vector.shape_cast %55 : vector<1x16x128xbf16> to vector<16x128xbf16>
    %c0_55 = arith.constant 0 : index
    %c0_56 = arith.constant 0 : index
    %c0_57 = arith.constant 0 : index
    %57 = vector.load %arg4[%c0_55, %c0_56, %c0_57] : memref<7x128x128xbf16, #tpu.memory_space<vmem>>, vector<1x128x128xbf16>
    %58 = vector.shape_cast %57 : vector<1x128x128xbf16> to vector<128x128xbf16>
    %cst_58 = arith.constant dense<0.000000e+00> : vector<16x128xf32>
    %59 = tpu.matmul %56, %58, %cst_58 {dimension_numbers = #tpu.dot_dimension_numbers<[1], [0], [0], [1], [0, 0, 1, 1], [], []>} : vector<16x128xbf16>, vector<128x128xbf16>, vector<16x128xf32> -> vector<16x128xf32>
    %c0_59 = arith.constant 0 : index
    %c6_60 = arith.constant 6 : index
    %c0_61 = arith.constant 0 : index
    %60 = vector.load %arg7[%c0_59, %c6_60, %c0_61] : memref<1x32x128xbf16, #tpu.memory_space<vmem>>, vector<1x16x128xbf16>
    %61 = vector.shape_cast %60 : vector<1x16x128xbf16> to vector<16x128xbf16>
    %c1_62 = arith.constant 1 : index
    %c0_63 = arith.constant 0 : index
    %c0_64 = arith.constant 0 : index
    %62 = vector.load %arg4[%c1_62, %c0_63, %c0_64] : memref<7x128x128xbf16, #tpu.memory_space<vmem>>, vector<1x128x128xbf16>
    %63 = vector.shape_cast %62 : vector<1x128x128xbf16> to vector<128x128xbf16>
    %cst_65 = arith.constant dense<0.000000e+00> : vector<16x128xf32>
    %64 = tpu.matmul %61, %63, %cst_65 {dimension_numbers = #tpu.dot_dimension_numbers<[1], [0], [0], [1], [0, 0, 1, 1], [], []>} : vector<16x128xbf16>, vector<128x128xbf16>, vector<16x128xf32> -> vector<16x128xf32>
    %65 = arith.addf %59, %64 : vector<16x128xf32>
    %c0_66 = arith.constant 0 : index
    %c8_67 = arith.constant 8 : index
    %c0_68 = arith.constant 0 : index
    %66 = vector.load %arg7[%c0_66, %c8_67, %c0_68] : memref<1x32x128xbf16, #tpu.memory_space<vmem>>, vector<1x16x128xbf16>
    %67 = vector.shape_cast %66 : vector<1x16x128xbf16> to vector<16x128xbf16>
    %c2_69 = arith.constant 2 : index
    %c0_70 = arith.constant 0 : index
    %c0_71 = arith.constant 0 : index
    %68 = vector.load %arg4[%c2_69, %c0_70, %c0_71] : memref<7x128x128xbf16, #tpu.memory_space<vmem>>, vector<1x128x128xbf16>
    %69 = vector.shape_cast %68 : vector<1x128x128xbf16> to vector<128x128xbf16>
    %cst_72 = arith.constant dense<0.000000e+00> : vector<16x128xf32>
    %70 = tpu.matmul %67, %69, %cst_72 {dimension_numbers = #tpu.dot_dimension_numbers<[1], [0], [0], [1], [0, 0, 1, 1], [], []>} : vector<16x128xbf16>, vector<128x128xbf16>, vector<16x128xf32> -> vector<16x128xf32>
    %71 = arith.addf %65, %70 : vector<16x128xf32>
    %c0_73 = arith.constant 0 : index
    %c10_74 = arith.constant 10 : index
    %c0_75 = arith.constant 0 : index
    %72 = vector.load %arg7[%c0_73, %c10_74, %c0_75] : memref<1x32x128xbf16, #tpu.memory_space<vmem>>, vector<1x16x128xbf16>
    %73 = vector.shape_cast %72 : vector<1x16x128xbf16> to vector<16x128xbf16>
    %c3_76 = arith.constant 3 : index
    %c0_77 = arith.constant 0 : index
    %c0_78 = arith.constant 0 : index
    %74 = vector.load %arg4[%c3_76, %c0_77, %c0_78] : memref<7x128x128xbf16, #tpu.memory_space<vmem>>, vector<1x128x128xbf16>
    %75 = vector.shape_cast %74 : vector<1x128x128xbf16> to vector<128x128xbf16>
    %cst_79 = arith.constant dense<0.000000e+00> : vector<16x128xf32>
    %76 = tpu.matmul %73, %75, %cst_79 {dimension_numbers = #tpu.dot_dimension_numbers<[1], [0], [0], [1], [0, 0, 1, 1], [], []>} : vector<16x128xbf16>, vector<128x128xbf16>, vector<16x128xf32> -> vector<16x128xf32>
    %77 = arith.addf %71, %76 : vector<16x128xf32>
    %c0_80 = arith.constant 0 : index
    %c12_81 = arith.constant 12 : index
    %c0_82 = arith.constant 0 : index
    %78 = vector.load %arg7[%c0_80, %c12_81, %c0_82] : memref<1x32x128xbf16, #tpu.memory_space<vmem>>, vector<1x16x128xbf16>
    %79 = vector.shape_cast %78 : vector<1x16x128xbf16> to vector<16x128xbf16>
    %c4_83 = arith.constant 4 : index
    %c0_84 = arith.constant 0 : index
    %c0_85 = arith.constant 0 : index
    %80 = vector.load %arg4[%c4_83, %c0_84, %c0_85] : memref<7x128x128xbf16, #tpu.memory_space<vmem>>, vector<1x128x128xbf16>
    %81 = vector.shape_cast %80 : vector<1x128x128xbf16> to vector<128x128xbf16>
    %cst_86 = arith.constant dense<0.000000e+00> : vector<16x128xf32>
    %82 = tpu.matmul %79, %81, %cst_86 {dimension_numbers = #tpu.dot_dimension_numbers<[1], [0], [0], [1], [0, 0, 1, 1], [], []>} : vector<16x128xbf16>, vector<128x128xbf16>, vector<16x128xf32> -> vector<16x128xf32>
    %83 = arith.addf %77, %82 : vector<16x128xf32>
    %c0_87 = arith.constant 0 : index
    %c14_88 = arith.constant 14 : index
    %c0_89 = arith.constant 0 : index
    %84 = vector.load %arg7[%c0_87, %c14_88, %c0_89] : memref<1x32x128xbf16, #tpu.memory_space<vmem>>, vector<1x16x128xbf16>
    %85 = vector.shape_cast %84 : vector<1x16x128xbf16> to vector<16x128xbf16>
    %c5_90 = arith.constant 5 : index
    %c0_91 = arith.constant 0 : index
    %c0_92 = arith.constant 0 : index
    %86 = vector.load %arg4[%c5_90, %c0_91, %c0_92] : memref<7x128x128xbf16, #tpu.memory_space<vmem>>, vector<1x128x128xbf16>
    %87 = vector.shape_cast %86 : vector<1x128x128xbf16> to vector<128x128xbf16>
    %cst_93 = arith.constant dense<0.000000e+00> : vector<16x128xf32>
    %88 = tpu.matmul %85, %87, %cst_93 {dimension_numbers = #tpu.dot_dimension_numbers<[1], [0], [0], [1], [0, 0, 1, 1], [], []>} : vector<16x128xbf16>, vector<128x128xbf16>, vector<16x128xf32> -> vector<16x128xf32>
    %89 = arith.addf %83, %88 : vector<16x128xf32>
    %c0_94 = arith.constant 0 : index
    %c16_95 = arith.constant 16 : index
    %c0_96 = arith.constant 0 : index
    %90 = vector.load %arg7[%c0_94, %c16_95, %c0_96] : memref<1x32x128xbf16, #tpu.memory_space<vmem>>, vector<1x16x128xbf16>
    %91 = vector.shape_cast %90 : vector<1x16x128xbf16> to vector<16x128xbf16>
    %c6_97 = arith.constant 6 : index
    %c0_98 = arith.constant 0 : index
    %c0_99 = arith.constant 0 : index
    %92 = vector.load %arg4[%c6_97, %c0_98, %c0_99] : memref<7x128x128xbf16, #tpu.memory_space<vmem>>, vector<1x128x128xbf16>
    %93 = vector.shape_cast %92 : vector<1x128x128xbf16> to vector<128x128xbf16>
    %cst_100 = arith.constant dense<0.000000e+00> : vector<16x128xf32>
    %94 = tpu.matmul %91, %93, %cst_100 {dimension_numbers = #tpu.dot_dimension_numbers<[1], [0], [0], [1], [0, 0, 1, 1], [], []>} : vector<16x128xbf16>, vector<128x128xbf16>, vector<16x128xf32> -> vector<16x128xf32>
    %95 = arith.addf %89, %94 : vector<16x128xf32>
    %c0_101 = arith.constant 0 : index
    %c0_102 = arith.constant 0 : index
    %96 = vector.load %arg5[%c0_101, %c0_102] : memref<1x128xf32, #tpu.memory_space<vmem>>, vector<1x128xf32>
    %97 = vector.broadcast %96 : vector<1x128xf32> to vector<16x128xf32>
    %98 = arith.addf %95, %97 : vector<16x128xf32>
    %cst_103 = arith.constant 0.000000e+00 : f32
    %99 = vector.broadcast %cst_103 : f32 to vector<16x128xf32>
    %100 = arith.maximumf %98, %99 : vector<16x128xf32>
    %101 = arith.addf %100, %51 : vector<16x128xf32>
    %cst_104 = arith.constant 0.000000e+00 : f32
    %102 = vector.broadcast %cst_104 : f32 to vector<16x128xf32>
    %103 = arith.maximumf %101, %102 : vector<16x128xf32>
    %104 = vector.shape_cast %103 : vector<16x128xf32> to vector<1x16x128xf32>
    %cst_105 = arith.constant dense<0.000000e+00> : vector<1x128xf32>
    %105 = vector.multi_reduction <add>, %104, %cst_105 [1] : vector<1x16x128xf32> to vector<1x128xf32>
    %106 = vector.shape_cast %105 : vector<1x128xf32> to vector<1x1x128xf32>
    %cst_106 = arith.constant 1.600000e+01 : f32
    %107 = vector.broadcast %cst_106 : f32 to vector<1x1x128xf32>
    %108 = arith.divf %106, %107 : vector<1x1x128xf32>
    %c0_107 = arith.constant 0 : index
    %c0_108 = arith.constant 0 : index
    %c0_109 = arith.constant 0 : index
    %109 = vector.load %arg6[%c0_107, %c0_108, %c0_109] : memref<1x1x128xf32, #tpu.memory_space<vmem>>, vector<1x1x128xf32>
    tpu.vector_store %arg6[%c0_107, %c0_108, %c0_109], %108 {strides = array<i32>} : memref<1x1x128xf32, #tpu.memory_space<vmem>>, vector<1x1x128xf32>,
    return
  }
  func.func @transform_0(%arg0: i32) -> (i32, i32, i32) {
    %c0_i32 = arith.constant 0 : i32
    %c0_i32_0 = arith.constant 0 : i32
    %c0_i32_1 = arith.constant 0 : i32
    return %arg0, %c0_i32, %c0_i32_0 : i32, i32, i32
  }
  func.func @transform_1(%arg0: i32) -> (i32, i32, i32) {
    %c0_i32 = arith.constant 0 : i32
    %c0_i32_0 = arith.constant 0 : i32
    %c0_i32_1 = arith.constant 0 : i32
    %c0_i32_2 = arith.constant 0 : i32
    return %c0_i32, %c0_i32_0, %c0_i32_1 : i32, i32, i32
  }
  func.func @transform_2(%arg0: i32) -> (i32, i32) {
    %c0_i32 = arith.constant 0 : i32
    %c0_i32_0 = arith.constant 0 : i32
    %c0_i32_1 = arith.constant 0 : i32
    return %c0_i32, %c0_i32_0 : i32, i32
  }
  func.func @transform_3(%arg0: i32) -> (i32, i32, i32) {
    %c0_i32 = arith.constant 0 : i32
    %c0_i32_0 = arith.constant 0 : i32
    %c0_i32_1 = arith.constant 0 : i32
    %c0_i32_2 = arith.constant 0 : i32
    return %c0_i32, %c0_i32_0, %c0_i32_1 : i32, i32, i32
  }
  func.func @transform_4(%arg0: i32) -> (i32, i32) {
    %c0_i32 = arith.constant 0 : i32
    %c0_i32_0 = arith.constant 0 : i32
    %c0_i32_1 = arith.constant 0 : i32
    return %c0_i32, %c0_i32_0 : i32, i32
  }
  func.func @transform_5(%arg0: i32) -> (i32, i32, i32) {
    %c0_i32 = arith.constant 0 : i32
    %c0_i32_0 = arith.constant 0 : i32
    %c0_i32_1 = arith.constant 0 : i32
    return %arg0, %c0_i32, %c0_i32_0 : i32, i32, i32
  }
}

</mosaic_0001>

<llo_original>
// kernel: forward.3
$region0: #{forward.3}
  #allocation0 [shape = 'u32[]', space=smem, size = 0x4, offset = 0x4, fixed_abs, tag = 'smem constant byte address 0x4 - core index']
  #allocation1 [shape = 'u32[72,128]{1,0:T(1,128)}', space=vmem, size = 0x9000, scoped, tag = 'internal scratch']
  #allocation2 [shape = 'bf16[1,32,128]{2,1,0:T(8,128)(2,1)}', space=vmem, size = 0x2000, scoped, tag = 'scratch operand']
  %s0 = inlined_call_operand.vmem [shape: bf16[2,16,128], index: 0, kind: input, shape index: {}]
  %s1 = inlined_call_operand.vmem [shape: bf16[7,128,128], index: 1, kind: input, shape index: {}]
  %s2 = inlined_call_operand.vmem [shape: f32[1,128], index: 2, kind: input, shape index: {}]
  %s3 = inlined_call_operand.vmem [shape: bf16[7,128,128], index: 3, kind: input, shape index: {}]
  %s4 = inlined_call_operand.vmem [shape: f32[1,128], index: 4, kind: input, shape index: {}]
  %s5 = inlined_call_operand.hbm [shape: f32[2,1,128], index: 5, kind: output, shape index: {}]
  %s6 = sld [smem:[#allocation0]]
  $region53: #{forward.3} parent=0
    _
  %s8 = ssub.s32 1, %s6
  %s9 = scalar_select 0, %s8, %s6
  $region1: #{forward.3} parent=0
    #allocation3 [shape = 'u8[1024]{0}', space=vmem, size = 0x400, scoped, tag = 'output window, operand 0']
    #allocation4 [shape = 's32[2]{0}', space=sflag, size = 0x8, scoped, tag = 'scoped memory for forward.3']
    %10 = vsyncpa [#allocation4], 0
    %s11 = scalar_lea.sflag [#allocation4], 1
    %12 = vsyncpa %s11, 0
    loop: start=0, step=1, limit=4
    $region2: #{forward.3} parent=1 // loop_pre_header
      _
    $region3: #{forward.3} parent=1 // loop_header
      %s14 = sphi 0, %s18
      %p15 = scmp.ge.s32.totalorder %s14, 4
      %s24 = sphi 0, %s26
      %s27 = sphi 0, %s24
      %s28 = sphi 0, %s27
      %s44 = sphi 0, %s28
      %s48 = sphi 0, %s48
      %s50 = sphi 0, %s48
      %s51 = sphi 0, %s50
      %s65 = sphi 0, %s51
      %s69 = sphi 0, %s69
      %s71 = sphi 0, %s69
      %s72 = sphi 0, %s71
      %s86 = sphi 0, %s72
      %s90 = sphi 0, %s90
      %s92 = sphi 0, %s90
      %s93 = sphi 0, %s92
      %s107 = sphi 0, %s93
      %s111 = sphi 0, %s111
      %s113 = sphi 0, %s111
      %s114 = sphi 0, %s113
      %s128 = sphi 0, %s114
      %s134 = sphi 0, %s136
      %s137 = sphi 0, %s134
      %s138 = sphi 0, %s137
      %s154 = sphi 0, %s138
    $region4: #{forward.3} parent=1 // loop_header_branch
      %17 = sbr.rel (%p15) target = $region8
    $region5: #{forward.3} parent=1 // loop_body
      %s19 = ssub.s32 %s14, 1
      %s20 = ssub.s32 %s14, 2
      %s21 = sadd.s32 %s14, 1
      %s22 = ssub.s32 %s14, %s21
      %p23 = scmp.eq.s32.totalorder %s22, 0
      %s25 = sadd.s32 %s24, 1
      %s26 = scalar_select %p23, %s24, %s25
      %p29 = pneg %p23
      %p30 = scmp.eq.s32.totalorder %s14, 1
      %p31 = por %p29, %p30
      %p32 = scmp.ne.s32.totalorder %s24, %s27
      %p33 = scmp.eq.s32.totalorder %s14, 0
      %p34 = por %p32, %p33
      %p35 = scmp.ne.s32.totalorder %s24, %s27
      %p36 = scmp.eq.s32.totalorder %s19, 1
      %p37 = por %p35, %p36
      %p38 = scmp.ne.s32.totalorder %s27, %s28
      %p39 = scmp.eq.s32.totalorder %s19, 0
      %p40 = por %p38, %p39
      %p41 = scmp.ne.s32.totalorder %s27, %s28
      %p42 = scmp.eq.s32.totalorder %s20, 1
      %p43 = por %p41, %p42
      %p45 = scmp.ne.s32.totalorder %s28, %s44
      %p46 = scmp.eq.s32.totalorder %s20, 0
      %p47 = por %p45, %p46
      %s49 = sadd.s32 %s48, 1
      %p52 = scmp.eq.s32.totalorder %s14, 1
      %p53 = scmp.ne.s32.totalorder %s48, %s50
      %p54 = scmp.eq.s32.totalorder %s14, 0
      %p55 = por %p53, %p54
      %p56 = scmp.ne.s32.totalorder %s48, %s50
      %p57 = scmp.eq.s32.totalorder %s19, 1
      %p58 = por %p56, %p57
      %p59 = scmp.ne.s32.totalorder %s50, %s51
      %p60 = scmp.eq.s32.totalorder %s19, 0
      %p61 = por %p59, %p60
      %p62 = scmp.ne.s32.totalorder %s50, %s51
      %p63 = scmp.eq.s32.totalorder %s20, 1
      %p64 = por %p62, %p63
      %p66 = scmp.ne.s32.totalorder %s51, %s65
      %p67 = scmp.eq.s32.totalorder %s20, 0
      %p68 = por %p66, %p67
      %s70 = sadd.s32 %s69, 1
      %p73 = scmp.eq.s32.totalorder %s14, 1
      %p74 = scmp.ne.s32.totalorder %s69, %s71
      %p75 = scmp.eq.s32.totalorder %s14, 0
      %p76 = por %p74, %p75
      %p77 = scmp.ne.s32.totalorder %s69, %s71
      %p78 = scmp.eq.s32.totalorder %s19, 1
      %p79 = por %p77, %p78
      %p80 = scmp.ne.s32.totalorder %s71, %s72
      %p81 = scmp.eq.s32.totalorder %s19, 0
      %p82 = por %p80, %p81
      %p83 = scmp.ne.s32.totalorder %s71, %s72
      %p84 = scmp.eq.s32.totalorder %s20, 1
      %p85 = por %p83, %p84
      %p87 = scmp.ne.s32.totalorder %s72, %s86
      %p88 = scmp.eq.s32.totalorder %s20, 0
      %p89 = por %p87, %p88
      %s91 = sadd.s32 %s90, 1
      %p94 = scmp.eq.s32.totalorder %s14, 1
      %p95 = scmp.ne.s32.totalorder %s90, %s92
      %p96 = scmp.eq.s32.totalorder %s14, 0
      %p97 = por %p95, %p96
      %p98 = scmp.ne.s32.totalorder %s90, %s92
      %p99 = scmp.eq.s32.totalorder %s19, 1
      %p100 = por %p98, %p99
      %p101 = scmp.ne.s32.totalorder %s92, %s93
      %p102 = scmp.eq.s32.totalorder %s19, 0
      %p103 = por %p101, %p102
      %p104 = scmp.ne.s32.totalorder %s92, %s93
      %p105 = scmp.eq.s32.totalorder %s20, 1
      %p106 = por %p104, %p105
      %p108 = scmp.ne.s32.totalorder %s93, %s107
      %p109 = scmp.eq.s32.totalorder %s20, 0
      %p110 = por %p108, %p109
      %s112 = sadd.s32 %s111, 1
      %p115 = scmp.eq.s32.totalorder %s14, 1
      %p116 = scmp.ne.s32.totalorder %s111, %s113
      %p117 = scmp.eq.s32.totalorder %s14, 0
      %p118 = por %p116, %p117
      %p119 = scmp.ne.s32.totalorder %s111, %s113
      %p120 = scmp.eq.s32.totalorder %s19, 1
      %p121 = por %p119, %p120
      %p122 = scmp.ne.s32.totalorder %s113, %s114
      %p123 = scmp.eq.s32.totalorder %s19, 0
      %p124 = por %p122, %p123
      %p125 = scmp.ne.s32.totalorder %s113, %s114
      %p126 = scmp.eq.s32.totalorder %s20, 1
      %p127 = por %p125, %p126
      %p129 = scmp.ne.s32.totalorder %s114, %s128
      %p130 = scmp.eq.s32.totalorder %s20, 0
      %p131 = por %p129, %p130
      %s132 = ssub.s32 %s14, %s21
      %p133 = scmp.eq.s32.totalorder %s132, 0
      %s135 = sadd.s32 %s134, 1
      %s136 = scalar_select %p133, %s134, %s135
      %p139 = pneg %p133
      %p140 = scmp.eq.s32.totalorder %s14, 1
      %p141 = por %p139, %p140
      %p142 = scmp.ne.s32.totalorder %s134, %s137
      %p143 = scmp.eq.s32.totalorder %s14, 0
      %p144 = por %p142, %p143
      %p145 = scmp.ne.s32.totalorder %s134, %s137
      %p146 = scmp.eq.s32.totalorder %s19, 1
      %p147 = por %p145, %p146
      %p148 = scmp.ne.s32.totalorder %s137, %s138
      %p149 = scmp.eq.s32.totalorder %s19, 0
      %p150 = por %p148, %p149
      %p151 = scmp.ne.s32.totalorder %s137, %s138
      %p152 = scmp.eq.s32.totalorder %s20, 1
      %p153 = por %p151, %p152
      %p155 = scmp.ne.s32.totalorder %s138, %s154
      %p156 = scmp.eq.s32.totalorder %s20, 0
      %p157 = por %p155, %p156
      %p158 = scmp.le.s32.totalorder 1, %s14
      %p159 = scmp.lt.s32.totalorder %s14, 3
      %p160 = pnand %p158, %p159
      %p161 = pneg %p160
      // Predicated region
      $region9: #{forward.3} parent=5 // pred_check
        _
      $region10: #{forward.3} parent=5 // pred_check_branch
        %163 = sbr.rel (%p160) target = $region12
      $region11: #{forward.3} parent=5 // pred_region
        %s164 = ssub.s32 %s14, 1
        // Predicated region
        $region13: #{forward.3} parent=11 // pred_check
          %p165 = pneg %p61
        $region14: #{forward.3} parent=11 // pred_check_branch
          %167 = sbr.rel (%p165) target = $region16
        $region15: #{forward.3} parent=11 // pred_region
          _
        $region16: #{forward.3} parent=11 // pred_fallthru
          _
        // Predicated region
        $region17: #{forward.3} parent=11 // pred_check
          %p168 = pneg %p82
        $region18: #{forward.3} parent=11 // pred_check_branch
          %170 = sbr.rel (%p168) target = $region20
        $region19: #{forward.3} parent=11 // pred_region
          _
        $region20: #{forward.3} parent=11 // pred_fallthru
          _
        // Predicated region
        $region21: #{forward.3} parent=11 // pred_check
          %p171 = pneg %p103
        $region22: #{forward.3} parent=11 // pred_check_branch
          %173 = sbr.rel (%p171) target = $region24
        $region23: #{forward.3} parent=11 // pred_region
          _
        $region24: #{forward.3} parent=11 // pred_fallthru
          _
        // Predicated region
        $region25: #{forward.3} parent=11 // pred_check
          %p174 = pneg %p124
        $region26: #{forward.3} parent=11 // pred_check_branch
          %176 = sbr.rel (%p174) target = $region28
        $region27: #{forward.3} parent=11 // pred_region
          _
        $region28: #{forward.3} parent=11 // pred_fallthru
          _
      $region12: #{forward.3} parent=5 // pred_fallthru
        _
      %p177 = scmp.lt.s32.totalorder %s14, 2
      // Predicated region
      $region29: #{forward.3} parent=5 // pred_check
        %p178 = pneg %p177
      $region30: #{forward.3} parent=5 // pred_check_branch
        %180 = sbr.rel (%p178) target = $region32
      $region31: #{forward.3} parent=5 // pred_region
        // Predicated region
        $region33: #{forward.3} parent=31 // pred_check
          %p181 = pneg %p34
        $region34: #{forward.3} parent=31 // pred_check_branch
          %183 = sbr.rel (%p181) target = $region36
        $region35: #{forward.3} parent=31 // pred_region
          %p184 = scmp.lt.s32.totalorder %s14, 1
          %s185 = scalar_select %p184, %s14, 1
          %s186 = smul.addr %s185, 2
          %s187 = smul.addr %s186, 4
          %s188 = scalar_lea.vmem %s0, %s187
        $region36: #{forward.3} parent=31 // pred_fallthru
          _
      $region32: #{forward.3} parent=5 // pred_fallthru
        _
      %p189 = scmp.le.s32.totalorder 1, %s14
      %p190 = scmp.lt.s32.totalorder %s14, 3
      %p191 = pnand %p189, %p190
      %p192 = pneg %p191
      // Predicated region
      $region37: #{forward.3} parent=5 // pred_check
        _
      $region38: #{forward.3} parent=5 // pred_check_branch
        %194 = sbr.rel (%p191) target = $region40
      $region39: #{forward.3} parent=5 // pred_region
        %s195 = ssub.s32 %s14, 1
        %p196 = scmp.lt.s32.totalorder %s19, 1
        %s197 = scalar_select %p196, %s19, 1
        %s198 = smul.addr %s197, 2
        %s199 = smul.addr %s198, 4
        %s200 = scalar_lea.vmem %s0, %s199
        %p201 = pneg %p40
        %p202 = pneg %p37
        %p203 = pneg %p61
        %p204 = pneg %p58
        %p205 = pneg %p82
        %p206 = pneg %p79
        %p207 = pneg %p103
        %p208 = pneg %p100
        %p209 = pneg %p124
        %p210 = pneg %p121
        %p211 = pneg %p150
        %p212 = pneg %p147
        %s213 = sand.u32 %s137, 1
        %s214 = scalar_lea.sflag [#allocation4], %s213
        %s215 = sand.u32 %s137, 1
        %s216 = scalar_lea.vmem [#allocation3], %s215
        %p217 = scmp.lt.s32.totalorder %s19, 1
        %s218 = scalar_select %p217, %s19, 1
        %s219 = smul.addr %s218, 2
        %s220 = smul.addr %s219, 4
        %s221 = scalar_lea.vmem %s0, %s220
        %223 = vst [vmem:[#allocation2] sm:$0xf] 0
        %224 = vst [vmem:[#allocation2 + $0x4] sm:$0xf] 0
        %225 = vst [vmem:[#allocation2 + $0x8] sm:$0xf] 0
        %226 = vst [vmem:[#allocation2 + $0xc] sm:$0xf] 0
        %v227 = vld [vmem:[%s221] sm:$0xf]
        %v228 = vld [vmem:[%s221 + $0x4] sm:$0xf]
        %229 = vst [vmem:[#allocation2 + $0x8] sm:$0xf] %v227
        %230 = vst [vmem:[#allocation2 + $0xc] sm:$0xf] %v228
        %v231 = vld [vmem:[#allocation2] sm:$0xc]
        %v232 = vld [vmem:[#allocation2 + $0x4] sm:$0xf]
        %v233 = vld [vmem:[#allocation2 + $0x8] sm:$0x3]
        %v234 = vld [vmem:[%s1] sm:$0xf]
        %v235 = vld [vmem:[%s1 + $0x4] sm:$0xf]
        %v236 = vld [vmem:[%s1 + $0x8] sm:$0xf]
        %v237 = vld [vmem:[%s1 + $0xc] sm:$0xf]
        %v238 = vld [vmem:[%s1 + $0x10] sm:$0xf]
        %v239 = vld [vmem:[%s1 + $0x14] sm:$0xf]
        %v240 = vld [vmem:[%s1 + $0x18] sm:$0xf]
        %v241 = vld [vmem:[%s1 + $0x1c] sm:$0xf]
        %v242 = vld [vmem:[%s1 + $0x20] sm:$0xf]
        %v243 = vld [vmem:[%s1 + $0x24] sm:$0xf]
        %v244 = vld [vmem:[%s1 + $0x28] sm:$0xf]
        %v245 = vld [vmem:[%s1 + $0x2c] sm:$0xf]
        %v246 = vld [vmem:[%s1 + $0x30] sm:$0xf]
        %v247 = vld [vmem:[%s1 + $0x34] sm:$0xf]
        %v248 = vld [vmem:[%s1 + $0x38] sm:$0xf]
        %v249 = vld [vmem:[%s1 + $0x3c] sm:$0xf]
        %v250 = vld [vmem:[#allocation2] sm:$0x8]
        %v251 = vld [vmem:[#allocation2 + $0x8] sm:$0x7]
        %s252 = scalar_lea.vmem %s1, 64
        %v253 = vld [vmem:[%s252] sm:$0xf]
        %v254 = vld [vmem:[%s252 + $0x4] sm:$0xf]
        %v255 = vld [vmem:[%s252 + $0x8] sm:$0xf]
        %v256 = vld [vmem:[%s252 + $0xc] sm:$0xf]
        %v257 = vld [vmem:[%s252 + $0x10] sm:$0xf]
        %v258 = vld [vmem:[%s252 + $0x14] sm:$0xf]
        %v259 = vld [vmem:[%s252 + $0x18] sm:$0xf]
        %v260 = vld [vmem:[%s252 + $0x1c] sm:$0xf]
        %v261 = vld [vmem:[%s252 + $0x20] sm:$0xf]
        %v262 = vld [vmem:[%s252 + $0x24] sm:$0xf]
        %v263 = vld [vmem:[%s252 + $0x28] sm:$0xf]
        %v264 = vld [vmem:[%s252 + $0x2c] sm:$0xf]
        %v265 = vld [vmem:[%s252 + $0x30] sm:$0xf]
        %v266 = vld [vmem:[%s252 + $0x34] sm:$0xf]
        %v267 = vld [vmem:[%s252 + $0x38] sm:$0xf]
        %v268 = vld [vmem:[%s252 + $0x3c] sm:$0xf]
        %v272 = vunpack.c.l.b16 %v250
        %v273 = vunpack.c.l.b16 %v232
        %v274 = vunpack.c.l.b16 %v251
        %v275 = vpack.c.b16 %v273, %v272
        %v276 = vpack.c.b16 %v274, %v274
        %vm277 = vcmask 1044480
        %v278 = vrot.slane %v275, 3
        %v279 = vrot.slane %v276, 3
        %v280 = vsel %vm277, %v278, %v279
        %v298 = vunpack.c.l.b16 %v253
        %v299 = vunpack.c.l.b16 %v254
        %v300 = vunpack.c.l.b16 %v255
        %v301 = vunpack.c.l.b16 %v256
        %v302 = vunpack.c.l.b16 %v257
        %v303 = vunpack.c.l.b16 %v258
        %v304 = vunpack.c.l.b16 %v259
        %v305 = vunpack.c.l.b16 %v260
        %v306 = vunpack.c.l.b16 %v261
        %v307 = vunpack.c.l.b16 %v262
        %v308 = vunpack.c.l.b16 %v263
        %v309 = vunpack.c.l.b16 %v264
        %v310 = vunpack.c.l.b16 %v265
        %v311 = vunpack.c.l.b16 %v266
        %v312 = vunpack.c.l.b16 %v267
        %v313 = vunpack.c.l.b16 %v268
        %v314 = vpack.c.b16 %v299, %v298
        %v315 = vpack.c.b16 %v301, %v300
        %v316 = vpack.c.b16 %v303, %v302
        %v317 = vpack.c.b16 %v305, %v304
        %v318 = vpack.c.b16 %v307, %v306
        %v319 = vpack.c.b16 %v309, %v308
        %v320 = vpack.c.b16 %v311, %v310
        %v321 = vpack.c.b16 %v313, %v312
        %330 = vmatpush.bf16.msra.mxu0 %v321
        %331 = vmatpush.bf16.msra.mxu0 %v320
        %332 = vmatpush.bf16.msra.mxu0 %v319
        %333 = vmatpush.bf16.msra.mxu0 %v318
        %334 = vmatpush.bf16.msra.mxu0 %v317
        %335 = vmatpush.bf16.msra.mxu0 %v316
        %336 = vmatpush.bf16.msra.mxu0 %v315
        %337 = vmatpush.bf16.msra.mxu0 %v314
        %338 = vmatmul.bf16.gmra.mxu0 %v280
        %v339 = vpop.f32.mrf.mxu0
        %v340 = vadd.f32 0.0, %v339
        %v341 = vpop.f32.mrf.mxu0
        %v342 = vadd.f32 0.0, %v341
        %343 = vdwg.mxu0
        %v346 = vunpack.c.l.b16 %v231
        %v347 = vunpack.c.l.b16 %v233
        %v348 = vpack.c.b16 %v273, %v346
        %v349 = vpack.c.b16 %v347, %v347
        %vm350 = vcmask 1045504
        %v351 = vrot.slane %v348, 2
        %v352 = vrot.slane %v349, 2
        %v353 = vsel %vm350, %v351, %v352
        %v371 = vunpack.c.l.b16 %v234
        %v372 = vunpack.c.l.b16 %v235
        %v373 = vunpack.c.l.b16 %v236
        %v374 = vunpack.c.l.b16 %v237
        %v375 = vunpack.c.l.b16 %v238
        %v376 = vunpack.c.l.b16 %v239
        %v377 = vunpack.c.l.b16 %v240
        %v378 = vunpack.c.l.b16 %v241
        %v379 = vunpack.c.l.b16 %v242
        %v380 = vunpack.c.l.b16 %v243
        %v381 = vunpack.c.l.b16 %v244
        %v382 = vunpack.c.l.b16 %v245
        %v383 = vunpack.c.l.b16 %v246
        %v384 = vunpack.c.l.b16 %v247
        %v385 = vunpack.c.l.b16 %v248
        %v386 = vunpack.c.l.b16 %v249
        %v387 = vpack.c.b16 %v372, %v371
        %v388 = vpack.c.b16 %v374, %v373
        %v389 = vpack.c.b16 %v376, %v375
        %v390 = vpack.c.b16 %v378, %v377
        %v391 = vpack.c.b16 %v380, %v379
        %v392 = vpack.c.b16 %v382, %v381
        %v393 = vpack.c.b16 %v384, %v383
        %v394 = vpack.c.b16 %v386, %v385
        %403 = vmatpush.bf16.msra.mxu0 %v394
        %404 = vmatpush.bf16.msra.mxu0 %v393
        %405 = vmatpush.bf16.msra.mxu0 %v392
        %406 = vmatpush.bf16.msra.mxu0 %v391
        %407 = vmatpush.bf16.msra.mxu0 %v390
        %408 = vmatpush.bf16.msra.mxu0 %v389
        %409 = vmatpush.bf16.msra.mxu0 %v388
        %410 = vmatpush.bf16.msra.mxu0 %v387
        %411 = vmatmul.bf16.gmra.mxu0 %v353
        %v412 = vpop.f32.mrf.mxu0
        %v413 = vadd.f32 %v340, %v412
        %v414 = vpop.f32.mrf.mxu0
        %v415 = vadd.f32 %v342, %v414
        %416 = vdwg.mxu0
        %v417 = vld [vmem:[#allocation2 + $0x8] sm:$0xf]
        %s418 = scalar_lea.vmem %s1, 128
        %v419 = vld [vmem:[%s418] sm:$0xf]
        %v420 = vld [vmem:[%s418 + $0x4] sm:$0xf]
        %v421 = vld [vmem:[%s418 + $0x8] sm:$0xf]
        %v422 = vld [vmem:[%s418 + $0xc] sm:$0xf]
        %v423 = vld [vmem:[%s418 + $0x10] sm:$0xf]
        %v424 = vld [vmem:[%s418 + $0x14] sm:$0xf]
        %v425 = vld [vmem:[%s418 + $0x18] sm:$0xf]
        %v426 = vld [vmem:[%s418 + $0x1c] sm:$0xf]
        %v427 = vld [vmem:[%s418 + $0x20] sm:$0xf]
        %v428 = vld [vmem:[%s418 + $0x24] sm:$0xf]
        %v429 = vld [vmem:[%s418 + $0x28] sm:$0xf]
        %v430 = vld [vmem:[%s418 + $0x2c] sm:$0xf]
        %v431 = vld [vmem:[%s418 + $0x30] sm:$0xf]
        %v432 = vld [vmem:[%s418 + $0x34] sm:$0xf]
        %v433 = vld [vmem:[%s418 + $0x38] sm:$0xf]
        %v434 = vld [vmem:[%s418 + $0x3c] sm:$0xf]
        %v436 = vunpack.c.l.b16 %v417
        %v437 = vpack.c.b16 %v436, %v273
        %v455 = vunpack.c.l.b16 %v419
        %v456 = vunpack.c.l.b16 %v420
        %v457 = vunpack.c.l.b16 %v421
        %v458 = vunpack.c.l.b16 %v422
        %v459 = vunpack.c.l.b16 %v423
        %v460 = vunpack.c.l.b16 %v424
        %v461 = vunpack.c.l.b16 %v425
        %v462 = vunpack.c.l.b16 %v426
        %v463 = vunpack.c.l.b16 %v427
        %v464 = vunpack.c.l.b16 %v428
        %v465 = vunpack.c.l.b16 %v429
        %v466 = vunpack.c.l.b16 %v430
        %v467 = vunpack.c.l.b16 %v431
        %v468 = vunpack.c.l.b16 %v432
        %v469 = vunpack.c.l.b16 %v433
        %v470 = vunpack.c.l.b16 %v434
        %v471 = vpack.c.b16 %v456, %v455
        %v472 = vpack.c.b16 %v458, %v457
        %v473 = vpack.c.b16 %v460, %v459
        %v474 = vpack.c.b16 %v462, %v461
        %v475 = vpack.c.b16 %v464, %v463
        %v476 = vpack.c.b16 %v466, %v465
        %v477 = vpack.c.b16 %v468, %v467
        %v478 = vpack.c.b16 %v470, %v469
        %487 = vmatpush.bf16.msra.mxu0 %v478
        %488 = vmatpush.bf16.msra.mxu0 %v477
        %489 = vmatpush.bf16.msra.mxu0 %v476
        %490 = vmatpush.bf16.msra.mxu0 %v475
        %491 = vmatpush.bf16.msra.mxu0 %v474
        %492 = vmatpush.bf16.msra.mxu0 %v473
        %493 = vmatpush.bf16.msra.mxu0 %v472
        %494 = vmatpush.bf16.msra.mxu0 %v471
        %495 = vmatmul.bf16.gmra.mxu0 %v437
        %v496 = vpop.f32.mrf.mxu0
        %v497 = vadd.f32 0.0, %v496
        %v498 = vpop.f32.mrf.mxu0
        %v499 = vadd.f32 0.0, %v498
        %500 = vdwg.mxu0
        %v501 = vadd.f32 %v413, %v497
        %v502 = vadd.f32 %v415, %v499
        %v503 = vld [vmem:[#allocation2 + $0x4] sm:$0xe]
        %v504 = vld [vmem:[#allocation2 + $0x8] sm:$0xf]
        %v505 = vld [vmem:[#allocation2 + $0xc] sm:$0x1]
        %s506 = scalar_lea.vmem %s1, 192
        %v507 = vld [vmem:[%s506] sm:$0xf]
        %v508 = vld [vmem:[%s506 + $0x4] sm:$0xf]
        %v509 = vld [vmem:[%s506 + $0x8] sm:$0xf]
        %v510 = vld [vmem:[%s506 + $0xc] sm:$0xf]
        %v511 = vld [vmem:[%s506 + $0x10] sm:$0xf]
        %v512 = vld [vmem:[%s506 + $0x14] sm:$0xf]
        %v513 = vld [vmem:[%s506 + $0x18] sm:$0xf]
        %v514 = vld [vmem:[%s506 + $0x1c] sm:$0xf]
        %v515 = vld [vmem:[%s506 + $0x20] sm:$0xf]
        %v516 = vld [vmem:[%s506 + $0x24] sm:$0xf]
        %v517 = vld [vmem:[%s506 + $0x28] sm:$0xf]
        %v518 = vld [vmem:[%s506 + $0x2c] sm:$0xf]
        %v519 = vld [vmem:[%s506 + $0x30] sm:$0xf]
        %v520 = vld [vmem:[%s506 + $0x34] sm:$0xf]
        %v521 = vld [vmem:[%s506 + $0x38] sm:$0xf]
        %v522 = vld [vmem:[%s506 + $0x3c] sm:$0xf]
        %v526 = vunpack.c.l.b16 %v503
        %v527 = vunpack.c.l.b16 %v504
        %v528 = vunpack.c.l.b16 %v505
        %v529 = vpack.c.b16 %v527, %v526
        %v530 = vpack.c.b16 %v528, %v528
        %vm531 = vcmask 1046528
        %v532 = vrot.slane %v529, 1
        %v533 = vrot.slane %v530, 1
        %v534 = vsel %vm531, %v532, %v533
        %v552 = vunpack.c.l.b16 %v507
        %v553 = vunpack.c.l.b16 %v508
        %v554 = vunpack.c.l.b16 %v509
        %v555 = vunpack.c.l.b16 %v510
        %v556 = vunpack.c.l.b16 %v511
        %v557 = vunpack.c.l.b16 %v512
        %v558 = vunpack.c.l.b16 %v513
        %v559 = vunpack.c.l.b16 %v514
        %v560 = vunpack.c.l.b16 %v515
        %v561 = vunpack.c.l.b16 %v516
        %v562 = vunpack.c.l.b16 %v517
        %v563 = vunpack.c.l.b16 %v518
        %v564 = vunpack.c.l.b16 %v519
        %v565 = vunpack.c.l.b16 %v520
        %v566 = vunpack.c.l.b16 %v521
        %v567 = vunpack.c.l.b16 %v522
        %v568 = vpack.c.b16 %v553, %v552
        %v569 = vpack.c.b16 %v555, %v554
        %v570 = vpack.c.b16 %v557, %v556
        %v571 = vpack.c.b16 %v559, %v558
        %v572 = vpack.c.b16 %v561, %v560
        %v573 = vpack.c.b16 %v563, %v562
        %v574 = vpack.c.b16 %v565, %v564
        %v575 = vpack.c.b16 %v567, %v566
        %584 = vmatpush.bf16.msra.mxu0 %v575
        %585 = vmatpush.bf16.msra.mxu0 %v574
        %586 = vmatpush.bf16.msra.mxu0 %v573
        %587 = vmatpush.bf16.msra.mxu0 %v572
        %588 = vmatpush.bf16.msra.mxu0 %v571
        %589 = vmatpush.bf16.msra.mxu0 %v570
        %590 = vmatpush.bf16.msra.mxu0 %v569
        %591 = vmatpush.bf16.msra.mxu0 %v568
        %592 = vmatmul.bf16.gmra.mxu0 %v534
        %v593 = vpop.f32.mrf.mxu0
        %v594 = vadd.f32 0.0, %v593
        %v595 = vpop.f32.mrf.mxu0
        %v596 = vadd.f32 0.0, %v595
        %597 = vdwg.mxu0
        %v598 = vadd.f32 %v501, %v594
        %v599 = vadd.f32 %v502, %v596
        %v600 = vld [vmem:[#allocation2 + $0x4] sm:$0xc]
        %v601 = vld [vmem:[#allocation2 + $0xc] sm:$0x3]
        %s602 = scalar_lea.vmem %s1, 256
        %v603 = vld [vmem:[%s602] sm:$0xf]
        %v604 = vld [vmem:[%s602 + $0x4] sm:$0xf]
        %v605 = vld [vmem:[%s602 + $0x8] sm:$0xf]
        %v606 = vld [vmem:[%s602 + $0xc] sm:$0xf]
        %v607 = vld [vmem:[%s602 + $0x10] sm:$0xf]
        %v608 = vld [vmem:[%s602 + $0x14] sm:$0xf]
        %v609 = vld [vmem:[%s602 + $0x18] sm:$0xf]
        %v610 = vld [vmem:[%s602 + $0x1c] sm:$0xf]
        %v611 = vld [vmem:[%s602 + $0x20] sm:$0xf]
        %v612 = vld [vmem:[%s602 + $0x24] sm:$0xf]
        %v613 = vld [vmem:[%s602 + $0x28] sm:$0xf]
        %v614 = vld [vmem:[%s602 + $0x2c] sm:$0xf]
        %v615 = vld [vmem:[%s602 + $0x30] sm:$0xf]
        %v616 = vld [vmem:[%s602 + $0x34] sm:$0xf]
        %v617 = vld [vmem:[%s602 + $0x38] sm:$0xf]
        %v618 = vld [vmem:[%s602 + $0x3c] sm:$0xf]
        %v621 = vunpack.c.l.b16 %v600
        %v622 = vunpack.c.l.b16 %v601
        %v623 = vpack.c.b16 %v527, %v621
        %v624 = vpack.c.b16 %v622, %v622
        %v625 = vrot.slane %v623, 2
        %v626 = vrot.slane %v624, 2
        %v627 = vsel %vm350, %v625, %v626
        %v645 = vunpack.c.l.b16 %v603
        %v646 = vunpack.c.l.b16 %v604
        %v647 = vunpack.c.l.b16 %v605
        %v648 = vunpack.c.l.b16 %v606
        %v649 = vunpack.c.l.b16 %v607
        %v650 = vunpack.c.l.b16 %v608
        %v651 = vunpack.c.l.b16 %v609
        %v652 = vunpack.c.l.b16 %v610
        %v653 = vunpack.c.l.b16 %v611
        %v654 = vunpack.c.l.b16 %v612
        %v655 = vunpack.c.l.b16 %v613
        %v656 = vunpack.c.l.b16 %v614
        %v657 = vunpack.c.l.b16 %v615
        %v658 = vunpack.c.l.b16 %v616
        %v659 = vunpack.c.l.b16 %v617
        %v660 = vunpack.c.l.b16 %v618
        %v661 = vpack.c.b16 %v646, %v645
        %v662 = vpack.c.b16 %v648, %v647
        %v663 = vpack.c.b16 %v650, %v649
        %v664 = vpack.c.b16 %v652, %v651
        %v665 = vpack.c.b16 %v654, %v653
        %v666 = vpack.c.b16 %v656, %v655
        %v667 = vpack.c.b16 %v658, %v657
        %v668 = vpack.c.b16 %v660, %v659
        %677 = vmatpush.bf16.msra.mxu0 %v668
        %678 = vmatpush.bf16.msra.mxu0 %v667
        %679 = vmatpush.bf16.msra.mxu0 %v666
        %680 = vmatpush.bf16.msra.mxu0 %v665
        %681 = vmatpush.bf16.msra.mxu0 %v664
        %682 = vmatpush.bf16.msra.mxu0 %v663
        %683 = vmatpush.bf16.msra.mxu0 %v662
        %684 = vmatpush.bf16.msra.mxu0 %v661
        %685 = vmatmul.bf16.gmra.mxu0 %v627
        %v686 = vpop.f32.mrf.mxu0
        %v687 = vadd.f32 0.0, %v686
        %v688 = vpop.f32.mrf.mxu0
        %v689 = vadd.f32 0.0, %v688
        %690 = vdwg.mxu0
        %v691 = vadd.f32 %v598, %v687
        %v692 = vadd.f32 %v599, %v689
        %v693 = vld [vmem:[#allocation2 + $0x4] sm:$0x8]
        %v694 = vld [vmem:[#allocation2 + $0xc] sm:$0x7]
        %s695 = scalar_lea.vmem %s1, 320
        %v696 = vld [vmem:[%s695] sm:$0xf]
        %v697 = vld [vmem:[%s695 + $0x4] sm:$0xf]
        %v698 = vld [vmem:[%s695 + $0x8] sm:$0xf]
        %v699 = vld [vmem:[%s695 + $0xc] sm:$0xf]
        %v700 = vld [vmem:[%s695 + $0x10] sm:$0xf]
        %v701 = vld [vmem:[%s695 + $0x14] sm:$0xf]
        %v702 = vld [vmem:[%s695 + $0x18] sm:$0xf]
        %v703 = vld [vmem:[%s695 + $0x1c] sm:$0xf]
        %v704 = vld [vmem:[%s695 + $0x20] sm:$0xf]
        %v705 = vld [vmem:[%s695 + $0x24] sm:$0xf]
        %v706 = vld [vmem:[%s695 + $0x28] sm:$0xf]
        %v707 = vld [vmem:[%s695 + $0x2c] sm:$0xf]
        %v708 = vld [vmem:[%s695 + $0x30] sm:$0xf]
        %v709 = vld [vmem:[%s695 + $0x34] sm:$0xf]
        %v710 = vld [vmem:[%s695 + $0x38] sm:$0xf]
        %v711 = vld [vmem:[%s695 + $0x3c] sm:$0xf]
        %v714 = vunpack.c.l.b16 %v693
        %v715 = vunpack.c.l.b16 %v694
        %v716 = vpack.c.b16 %v527, %v714
        %v717 = vpack.c.b16 %v715, %v715
        %v718 = vrot.slane %v716, 3
        %v719 = vrot.slane %v717, 3
        %v720 = vsel %vm277, %v718, %v719
        %v738 = vunpack.c.l.b16 %v696
        %v739 = vunpack.c.l.b16 %v697
        %v740 = vunpack.c.l.b16 %v698
        %v741 = vunpack.c.l.b16 %v699
        %v742 = vunpack.c.l.b16 %v700
        %v743 = vunpack.c.l.b16 %v701
        %v744 = vunpack.c.l.b16 %v702
        %v745 = vunpack.c.l.b16 %v703
        %v746 = vunpack.c.l.b16 %v704
        %v747 = vunpack.c.l.b16 %v705
        %v748 = vunpack.c.l.b16 %v706
        %v749 = vunpack.c.l.b16 %v707
        %v750 = vunpack.c.l.b16 %v708
        %v751 = vunpack.c.l.b16 %v709
        %v752 = vunpack.c.l.b16 %v710
        %v753 = vunpack.c.l.b16 %v711
        %v754 = vpack.c.b16 %v739, %v738
        %v755 = vpack.c.b16 %v741, %v740
        %v756 = vpack.c.b16 %v743, %v742
        %v757 = vpack.c.b16 %v745, %v744
        %v758 = vpack.c.b16 %v747, %v746
        %v759 = vpack.c.b16 %v749, %v748
        %v760 = vpack.c.b16 %v751, %v750
        %v761 = vpack.c.b16 %v753, %v752
        %770 = vmatpush.bf16.msra.mxu0 %v761
        %771 = vmatpush.bf16.msra.mxu0 %v760
        %772 = vmatpush.bf16.msra.mxu0 %v759
        %773 = vmatpush.bf16.msra.mxu0 %v758
        %774 = vmatpush.bf16.msra.mxu0 %v757
        %775 = vmatpush.bf16.msra.mxu0 %v756
        %776 = vmatpush.bf16.msra.mxu0 %v755
        %777 = vmatpush.bf16.msra.mxu0 %v754
        %778 = vmatmul.bf16.gmra.mxu0 %v720
        %v779 = vpop.f32.mrf.mxu0
        %v780 = vadd.f32 0.0, %v779
        %v781 = vpop.f32.mrf.mxu0
        %v782 = vadd.f32 0.0, %v781
        %783 = vdwg.mxu0
        %v784 = vadd.f32 %v691, %v780
        %v785 = vadd.f32 %v692, %v782
        %v786 = vld [vmem:[#allocation2 + $0xc] sm:$0xf]
        %s787 = scalar_lea.vmem %s1, 384
        %v788 = vld [vmem:[%s787] sm:$0xf]
        %v789 = vld [vmem:[%s787 + $0x4] sm:$0xf]
        %v790 = vld [vmem:[%s787 + $0x8] sm:$0xf]
        %v791 = vld [vmem:[%s787 + $0xc] sm:$0xf]
        %v792 = vld [vmem:[%s787 + $0x10] sm:$0xf]
        %v793 = vld [vmem:[%s787 + $0x14] sm:$0xf]
        %v794 = vld [vmem:[%s787 + $0x18] sm:$0xf]
        %v795 = vld [vmem:[%s787 + $0x1c] sm:$0xf]
        %v796 = vld [vmem:[%s787 + $0x20] sm:$0xf]
        %v797 = vld [vmem:[%s787 + $0x24] sm:$0xf]
        %v798 = vld [vmem:[%s787 + $0x28] sm:$0xf]
        %v799 = vld [vmem:[%s787 + $0x2c] sm:$0xf]
        %v800 = vld [vmem:[%s787 + $0x30] sm:$0xf]
        %v801 = vld [vmem:[%s787 + $0x34] sm:$0xf]
        %v802 = vld [vmem:[%s787 + $0x38] sm:$0xf]
        %v803 = vld [vmem:[%s787 + $0x3c] sm:$0xf]
        %v805 = vunpack.c.l.b16 %v786
        %v806 = vpack.c.b16 %v805, %v527
        %v824 = vunpack.c.l.b16 %v788
        %v825 = vunpack.c.l.b16 %v789
        %v826 = vunpack.c.l.b16 %v790
        %v827 = vunpack.c.l.b16 %v791
        %v828 = vunpack.c.l.b16 %v792
        %v829 = vunpack.c.l.b16 %v793
        %v830 = vunpack.c.l.b16 %v794
        %v831 = vunpack.c.l.b16 %v795
        %v832 = vunpack.c.l.b16 %v796
        %v833 = vunpack.c.l.b16 %v797
        %v834 = vunpack.c.l.b16 %v798
        %v835 = vunpack.c.l.b16 %v799
        %v836 = vunpack.c.l.b16 %v800
        %v837 = vunpack.c.l.b16 %v801
        %v838 = vunpack.c.l.b16 %v802
        %v839 = vunpack.c.l.b16 %v803
        %v840 = vpack.c.b16 %v825, %v824
        %v841 = vpack.c.b16 %v827, %v826
        %v842 = vpack.c.b16 %v829, %v828
        %v843 = vpack.c.b16 %v831, %v830
        %v844 = vpack.c.b16 %v833, %v832
        %v845 = vpack.c.b16 %v835, %v834
        %v846 = vpack.c.b16 %v837, %v836
        %v847 = vpack.c.b16 %v839, %v838
        %856 = vmatpush.bf16.msra.mxu0 %v847
        %857 = vmatpush.bf16.msra.mxu0 %v846
        %858 = vmatpush.bf16.msra.mxu0 %v845
        %859 = vmatpush.bf16.msra.mxu0 %v844
        %860 = vmatpush.bf16.msra.mxu0 %v843
        %861 = vmatpush.bf16.msra.mxu0 %v842
        %862 = vmatpush.bf16.msra.mxu0 %v841
        %863 = vmatpush.bf16.msra.mxu0 %v840
        %864 = vmatmul.bf16.gmra.mxu0 %v806
        %v865 = vpop.f32.mrf.mxu0
        %v866 = vadd.f32 0.0, %v865
        %v867 = vpop.f32.mrf.mxu0
        %v868 = vadd.f32 0.0, %v867
        %869 = vdwg.mxu0
        %v870 = vadd.f32 %v784, %v866
        %v871 = vadd.f32 %v785, %v868
        %v872 = vld [vmem:[%s2] sm:$0x1]
        %v874 = vperm.slane %v872, 0
        %v876 = vadd.f32 %v870, %v874
        %v877 = vadd.f32 %v871, %v874
        %v878 = vmax.f32 %v876, 0.0
        %v879 = vmax.f32 %v877, 0.0
        %v880 = vunpack.c.l.bf16 %v227
        %v881 = vunpack.c.l.bf16 %v228
        %v882 = vpack.c.bf16 %v878, %v878
        %v883 = vpack.c.bf16 %v879, %v879
        %884 = vst [vmem:[#allocation2 + $0x8] sm:$0xf] %v882
        %885 = vst [vmem:[#allocation2 + $0xc] sm:$0xf] %v883
        %v886 = vld [vmem:[#allocation2] sm:$0xc]
        %v887 = vld [vmem:[#allocation2 + $0x4] sm:$0xf]
        %v888 = vld [vmem:[#allocation2 + $0x8] sm:$0x3]
        %v889 = vld [vmem:[%s3] sm:$0xf]
        %v890 = vld [vmem:[%s3 + $0x4] sm:$0xf]
        %v891 = vld [vmem:[%s3 + $0x8] sm:$0xf]
        %v892 = vld [vmem:[%s3 + $0xc] sm:$0xf]
        %v893 = vld [vmem:[%s3 + $0x10] sm:$0xf]
        %v894 = vld [vmem:[%s3 + $0x14] sm:$0xf]
        %v895 = vld [vmem:[%s3 + $0x18] sm:$0xf]
        %v896 = vld [vmem:[%s3 + $0x1c] sm:$0xf]
        %v897 = vld [vmem:[%s3 + $0x20] sm:$0xf]
        %v898 = vld [vmem:[%s3 + $0x24] sm:$0xf]
        %v899 = vld [vmem:[%s3 + $0x28] sm:$0xf]
        %v900 = vld [vmem:[%s3 + $0x2c] sm:$0xf]
        %v901 = vld [vmem:[%s3 + $0x30] sm:$0xf]
        %v902 = vld [vmem:[%s3 + $0x34] sm:$0xf]
        %v903 = vld [vmem:[%s3 + $0x38] sm:$0xf]
        %v904 = vld [vmem:[%s3 + $0x3c] sm:$0xf]
        %v905 = vld [vmem:[#allocation2] sm:$0x8]
        %v906 = vld [vmem:[#allocation2 + $0x8] sm:$0x7]
        %s907 = scalar_lea.vmem %s3, 64
        %v908 = vld [vmem:[%s907] sm:$0xf]
        %v909 = vld [vmem:[%s907 + $0x4] sm:$0xf]
        %v910 = vld [vmem:[%s907 + $0x8] sm:$0xf]
        %v911 = vld [vmem:[%s907 + $0xc] sm:$0xf]
        %v912 = vld [vmem:[%s907 + $0x10] sm:$0xf]
        %v913 = vld [vmem:[%s907 + $0x14] sm:$0xf]
        %v914 = vld [vmem:[%s907 + $0x18] sm:$0xf]
        %v915 = vld [vmem:[%s907 + $0x1c] sm:$0xf]
        %v916 = vld [vmem:[%s907 + $0x20] sm:$0xf]
        %v917 = vld [vmem:[%s907 + $0x24] sm:$0xf]
        %v918 = vld [vmem:[%s907 + $0x28] sm:$0xf]
        %v919 = vld [vmem:[%s907 + $0x2c] sm:$0xf]
        %v920 = vld [vmem:[%s907 + $0x30] sm:$0xf]
        %v921 = vld [vmem:[%s907 + $0x34] sm:$0xf]
        %v922 = vld [vmem:[%s907 + $0x38] sm:$0xf]
        %v923 = vld [vmem:[%s907 + $0x3c] sm:$0xf]
        %v927 = vunpack.c.l.b16 %v905
        %v928 = vunpack.c.l.b16 %v887
        %v929 = vunpack.c.l.b16 %v906
        %v930 = vpack.c.b16 %v928, %v927
        %v931 = vpack.c.b16 %v929, %v929
        %v932 = vrot.slane %v930, 3
        %v933 = vrot.slane %v931, 3
        %v934 = vsel %vm277, %v932, %v933
        %v952 = vunpack.c.l.b16 %v908
        %v953 = vunpack.c.l.b16 %v909
        %v954 = vunpack.c.l.b16 %v910
        %v955 = vunpack.c.l.b16 %v911
        %v956 = vunpack.c.l.b16 %v912
        %v957 = vunpack.c.l.b16 %v913
        %v958 = vunpack.c.l.b16 %v914
        %v959 = vunpack.c.l.b16 %v915
        %v960 = vunpack.c.l.b16 %v916
        %v961 = vunpack.c.l.b16 %v917
        %v962 = vunpack.c.l.b16 %v918
        %v963 = vunpack.c.l.b16 %v919
        %v964 = vunpack.c.l.b16 %v920
        %v965 = vunpack.c.l.b16 %v921
        %v966 = vunpack.c.l.b16 %v922
        %v967 = vunpack.c.l.b16 %v923
        %v968 = vpack.c.b16 %v953, %v952
        %v969 = vpack.c.b16 %v955, %v954
        %v970 = vpack.c.b16 %v957, %v956
        %v971 = vpack.c.b16 %v959, %v958
        %v972 = vpack.c.b16 %v961, %v960
        %v973 = vpack.c.b16 %v963, %v962
        %v974 = vpack.c.b16 %v965, %v964
        %v975 = vpack.c.b16 %v967, %v966
        %984 = vmatpush.bf16.msra.mxu0 %v975
        %985 = vmatpush.bf16.msra.mxu0 %v974
        %986 = vmatpush.bf16.msra.mxu0 %v973
        %987 = vmatpush.bf16.msra.mxu0 %v972
        %988 = vmatpush.bf16.msra.mxu0 %v971
        %989 = vmatpush.bf16.msra.mxu0 %v970
        %990 = vmatpush.bf16.msra.mxu0 %v969
        %991 = vmatpush.bf16.msra.mxu0 %v968
        %992 = vmatmul.bf16.gmra.mxu0 %v934
        %v993 = vpop.f32.mrf.mxu0
        %v994 = vadd.f32 0.0, %v993
        %v995 = vpop.f32.mrf.mxu0
        %v996 = vadd.f32 0.0, %v995
        %997 = vdwg.mxu0
        %v1000 = vunpack.c.l.b16 %v886
        %v1001 = vunpack.c.l.b16 %v888
        %v1002 = vpack.c.b16 %v928, %v1000
        %v1003 = vpack.c.b16 %v1001, %v1001
        %v1004 = vrot.slane %v1002, 2
        %v1005 = vrot.slane %v1003, 2
        %v1006 = vsel %vm350, %v1004, %v1005
        %v1024 = vunpack.c.l.b16 %v889
        %v1025 = vunpack.c.l.b16 %v890
        %v1026 = vunpack.c.l.b16 %v891
        %v1027 = vunpack.c.l.b16 %v892
        %v1028 = vunpack.c.l.b16 %v893
        %v1029 = vunpack.c.l.b16 %v894
        %v1030 = vunpack.c.l.b16 %v895
        %v1031 = vunpack.c.l.b16 %v896
        %v1032 = vunpack.c.l.b16 %v897
        %v1033 = vunpack.c.l.b16 %v898
        %v1034 = vunpack.c.l.b16 %v899
        %v1035 = vunpack.c.l.b16 %v900
        %v1036 = vunpack.c.l.b16 %v901
        %v1037 = vunpack.c.l.b16 %v902
        %v1038 = vunpack.c.l.b16 %v903
        %v1039 = vunpack.c.l.b16 %v904
        %v1040 = vpack.c.b16 %v1025, %v1024
        %v1041 = vpack.c.b16 %v1027, %v1026
        %v1042 = vpack.c.b16 %v1029, %v1028
        %v1043 = vpack.c.b16 %v1031, %v1030
        %v1044 = vpack.c.b16 %v1033, %v1032
        %v1045 = vpack.c.b16 %v1035, %v1034
        %v1046 = vpack.c.b16 %v1037, %v1036
        %v1047 = vpack.c.b16 %v1039, %v1038
        %1056 = vmatpush.bf16.msra.mxu0 %v1047
        %1057 = vmatpush.bf16.msra.mxu0 %v1046
        %1058 = vmatpush.bf16.msra.mxu0 %v1045
        %1059 = vmatpush.bf16.msra.mxu0 %v1044
        %1060 = vmatpush.bf16.msra.mxu0 %v1043
        %1061 = vmatpush.bf16.msra.mxu0 %v1042
        %1062 = vmatpush.bf16.msra.mxu0 %v1041
        %1063 = vmatpush.bf16.msra.mxu0 %v1040
        %1064 = vmatmul.bf16.gmra.mxu0 %v1006
        %v1065 = vpop.f32.mrf.mxu0
        %v1066 = vadd.f32 %v994, %v1065
        %v1067 = vpop.f32.mrf.mxu0
        %v1068 = vadd.f32 %v996, %v1067
        %1069 = vdwg.mxu0
        %v1070 = vld [vmem:[#allocation2 + $0x8] sm:$0xf]
        %s1071 = scalar_lea.vmem %s3, 128
        %v1072 = vld [vmem:[%s1071] sm:$0xf]
        %v1073 = vld [vmem:[%s1071 + $0x4] sm:$0xf]
        %v1074 = vld [vmem:[%s1071 + $0x8] sm:$0xf]
        %v1075 = vld [vmem:[%s1071 + $0xc] sm:$0xf]
        %v1076 = vld [vmem:[%s1071 + $0x10] sm:$0xf]
        %v1077 = vld [vmem:[%s1071 + $0x14] sm:$0xf]
        %v1078 = vld [vmem:[%s1071 + $0x18] sm:$0xf]
        %v1079 = vld [vmem:[%s1071 + $0x1c] sm:$0xf]
        %v1080 = vld [vmem:[%s1071 + $0x20] sm:$0xf]
        %v1081 = vld [vmem:[%s1071 + $0x24] sm:$0xf]
        %v1082 = vld [vmem:[%s1071 + $0x28] sm:$0xf]
        %v1083 = vld [vmem:[%s1071 + $0x2c] sm:$0xf]
        %v1084 = vld [vmem:[%s1071 + $0x30] sm:$0xf]
        %v1085 = vld [vmem:[%s1071 + $0x34] sm:$0xf]
        %v1086 = vld [vmem:[%s1071 + $0x38] sm:$0xf]
        %v1087 = vld [vmem:[%s1071 + $0x3c] sm:$0xf]
        %v1089 = vunpack.c.l.b16 %v1070
        %v1090 = vpack.c.b16 %v1089, %v928
        %v1108 = vunpack.c.l.b16 %v1072
        %v1109 = vunpack.c.l.b16 %v1073
        %v1110 = vunpack.c.l.b16 %v1074
        %v1111 = vunpack.c.l.b16 %v1075
        %v1112 = vunpack.c.l.b16 %v1076
        %v1113 = vunpack.c.l.b16 %v1077
        %v1114 = vunpack.c.l.b16 %v1078
        %v1115 = vunpack.c.l.b16 %v1079
        %v1116 = vunpack.c.l.b16 %v1080
        %v1117 = vunpack.c.l.b16 %v1081
        %v1118 = vunpack.c.l.b16 %v1082
        %v1119 = vunpack.c.l.b16 %v1083
        %v1120 = vunpack.c.l.b16 %v1084
        %v1121 = vunpack.c.l.b16 %v1085
        %v1122 = vunpack.c.l.b16 %v1086
        %v1123 = vunpack.c.l.b16 %v1087
        %v1124 = vpack.c.b16 %v1109, %v1108
        %v1125 = vpack.c.b16 %v1111, %v1110
        %v1126 = vpack.c.b16 %v1113, %v1112
        %v1127 = vpack.c.b16 %v1115, %v1114
        %v1128 = vpack.c.b16 %v1117, %v1116
        %v1129 = vpack.c.b16 %v1119, %v1118
        %v1130 = vpack.c.b16 %v1121, %v1120
        %v1131 = vpack.c.b16 %v1123, %v1122
        %1140 = vmatpush.bf16.msra.mxu0 %v1131
        %1141 = vmatpush.bf16.msra.mxu0 %v1130
        %1142 = vmatpush.bf16.msra.mxu0 %v1129
        %1143 = vmatpush.bf16.msra.mxu0 %v1128
        %1144 = vmatpush.bf16.msra.mxu0 %v1127
        %1145 = vmatpush.bf16.msra.mxu0 %v1126
        %1146 = vmatpush.bf16.msra.mxu0 %v1125
        %1147 = vmatpush.bf16.msra.mxu0 %v1124
        %1148 = vmatmul.bf16.gmra.mxu0 %v1090
        %v1149 = vpop.f32.mrf.mxu0
        %v1150 = vadd.f32 0.0, %v1149
        %v1151 = vpop.f32.mrf.mxu0
        %v1152 = vadd.f32 0.0, %v1151
        %1153 = vdwg.mxu0
        %v1154 = vadd.f32 %v1066, %v1150
        %v1155 = vadd.f32 %v1068, %v1152
        %v1156 = vld [vmem:[#allocation2 + $0x4] sm:$0xe]
        %v1157 = vld [vmem:[#allocation2 + $0x8] sm:$0xf]
        %v1158 = vld [vmem:[#allocation2 + $0xc] sm:$0x1]
        %s1159 = scalar_lea.vmem %s3, 192
        %v1160 = vld [vmem:[%s1159] sm:$0xf]
        %v1161 = vld [vmem:[%s1159 + $0x4] sm:$0xf]
        %v1162 = vld [vmem:[%s1159 + $0x8] sm:$0xf]
        %v1163 = vld [vmem:[%s1159 + $0xc] sm:$0xf]
        %v1164 = vld [vmem:[%s1159 + $0x10] sm:$0xf]
        %v1165 = vld [vmem:[%s1159 + $0x14] sm:$0xf]
        %v1166 = vld [vmem:[%s1159 + $0x18] sm:$0xf]
        %v1167 = vld [vmem:[%s1159 + $0x1c] sm:$0xf]
        %v1168 = vld [vmem:[%s1159 + $0x20] sm:$0xf]
        %v1169 = vld [vmem:[%s1159 + $0x24] sm:$0xf]
        %v1170 = vld [vmem:[%s1159 + $0x28] sm:$0xf]
        %v1171 = vld [vmem:[%s1159 + $0x2c] sm:$0xf]
        %v1172 = vld [vmem:[%s1159 + $0x30] sm:$0xf]
        %v1173 = vld [vmem:[%s1159 + $0x34] sm:$0xf]
        %v1174 = vld [vmem:[%s1159 + $0x38] sm:$0xf]
        %v1175 = vld [vmem:[%s1159 + $0x3c] sm:$0xf]
        %v1179 = vunpack.c.l.b16 %v1156
        %v1180 = vunpack.c.l.b16 %v1157
        %v1181 = vunpack.c.l.b16 %v1158
        %v1182 = vpack.c.b16 %v1180, %v1179
        %v1183 = vpack.c.b16 %v1181, %v1181
        %v1184 = vrot.slane %v1182, 1
        %v1185 = vrot.slane %v1183, 1
        %v1186 = vsel %vm531, %v1184, %v1185
        %v1204 = vunpack.c.l.b16 %v1160
        %v1205 = vunpack.c.l.b16 %v1161
        %v1206 = vunpack.c.l.b16 %v1162
        %v1207 = vunpack.c.l.b16 %v1163
        %v1208 = vunpack.c.l.b16 %v1164
        %v1209 = vunpack.c.l.b16 %v1165
        %v1210 = vunpack.c.l.b16 %v1166
        %v1211 = vunpack.c.l.b16 %v1167
        %v1212 = vunpack.c.l.b16 %v1168
        %v1213 = vunpack.c.l.b16 %v1169
        %v1214 = vunpack.c.l.b16 %v1170
        %v1215 = vunpack.c.l.b16 %v1171
        %v1216 = vunpack.c.l.b16 %v1172
        %v1217 = vunpack.c.l.b16 %v1173
        %v1218 = vunpack.c.l.b16 %v1174
        %v1219 = vunpack.c.l.b16 %v1175
        %v1220 = vpack.c.b16 %v1205, %v1204
        %v1221 = vpack.c.b16 %v1207, %v1206
        %v1222 = vpack.c.b16 %v1209, %v1208
        %v1223 = vpack.c.b16 %v1211, %v1210
        %v1224 = vpack.c.b16 %v1213, %v1212
        %v1225 = vpack.c.b16 %v1215, %v1214
        %v1226 = vpack.c.b16 %v1217, %v1216
        %v1227 = vpack.c.b16 %v1219, %v1218
        %1236 = vmatpush.bf16.msra.mxu0 %v1227
        %1237 = vmatpush.bf16.msra.mxu0 %v1226
        %1238 = vmatpush.bf16.msra.mxu0 %v1225
        %1239 = vmatpush.bf16.msra.mxu0 %v1224
        %1240 = vmatpush.bf16.msra.mxu0 %v1223
        %1241 = vmatpush.bf16.msra.mxu0 %v1222
        %1242 = vmatpush.bf16.msra.mxu0 %v1221
        %1243 = vmatpush.bf16.msra.mxu0 %v1220
        %1244 = vmatmul.bf16.gmra.mxu0 %v1186
        %v1245 = vpop.f32.mrf.mxu0
        %v1246 = vadd.f32 0.0, %v1245
        %v1247 = vpop.f32.mrf.mxu0
        %v1248 = vadd.f32 0.0, %v1247
        %1249 = vdwg.mxu0
        %v1250 = vadd.f32 %v1154, %v1246
        %v1251 = vadd.f32 %v1155, %v1248
        %v1252 = vld [vmem:[#allocation2 + $0x4] sm:$0xc]
        %v1253 = vld [vmem:[#allocation2 + $0xc] sm:$0x3]
        %s1254 = scalar_lea.vmem %s3, 256
        %v1255 = vld [vmem:[%s1254] sm:$0xf]
        %v1256 = vld [vmem:[%s1254 + $0x4] sm:$0xf]
        %v1257 = vld [vmem:[%s1254 + $0x8] sm:$0xf]
        %v1258 = vld [vmem:[%s1254 + $0xc] sm:$0xf]
        %v1259 = vld [vmem:[%s1254 + $0x10] sm:$0xf]
        %v1260 = vld [vmem:[%s1254 + $0x14] sm:$0xf]
        %v1261 = vld [vmem:[%s1254 + $0x18] sm:$0xf]
        %v1262 = vld [vmem:[%s1254 + $0x1c] sm:$0xf]
        %v1263 = vld [vmem:[%s1254 + $0x20] sm:$0xf]
        %v1264 = vld [vmem:[%s1254 + $0x24] sm:$0xf]
        %v1265 = vld [vmem:[%s1254 + $0x28] sm:$0xf]
        %v1266 = vld [vmem:[%s1254 + $0x2c] sm:$0xf]
        %v1267 = vld [vmem:[%s1254 + $0x30] sm:$0xf]
        %v1268 = vld [vmem:[%s1254 + $0x34] sm:$0xf]
        %v1269 = vld [vmem:[%s1254 + $0x38] sm:$0xf]
        %v1270 = vld [vmem:[%s1254 + $0x3c] sm:$0xf]
        %v1273 = vunpack.c.l.b16 %v1252
        %v1274 = vunpack.c.l.b16 %v1253
        %v1275 = vpack.c.b16 %v1180, %v1273
        %v1276 = vpack.c.b16 %v1274, %v1274
        %v1277 = vrot.slane %v1275, 2
        %v1278 = vrot.slane %v1276, 2
        %v1279 = vsel %vm350, %v1277, %v1278
        %v1297 = vunpack.c.l.b16 %v1255
        %v1298 = vunpack.c.l.b16 %v1256
        %v1299 = vunpack.c.l.b16 %v1257
        %v1300 = vunpack.c.l.b16 %v1258
        %v1301 = vunpack.c.l.b16 %v1259
        %v1302 = vunpack.c.l.b16 %v1260
        %v1303 = vunpack.c.l.b16 %v1261
        %v1304 = vunpack.c.l.b16 %v1262
        %v1305 = vunpack.c.l.b16 %v1263
        %v1306 = vunpack.c.l.b16 %v1264
        %v1307 = vunpack.c.l.b16 %v1265
        %v1308 = vunpack.c.l.b16 %v1266
        %v1309 = vunpack.c.l.b16 %v1267
        %v1310 = vunpack.c.l.b16 %v1268
        %v1311 = vunpack.c.l.b16 %v1269
        %v1312 = vunpack.c.l.b16 %v1270
        %v1313 = vpack.c.b16 %v1298, %v1297
        %v1314 = vpack.c.b16 %v1300, %v1299
        %v1315 = vpack.c.b16 %v1302, %v1301
        %v1316 = vpack.c.b16 %v1304, %v1303
        %v1317 = vpack.c.b16 %v1306, %v1305
        %v1318 = vpack.c.b16 %v1308, %v1307
        %v1319 = vpack.c.b16 %v1310, %v1309
        %v1320 = vpack.c.b16 %v1312, %v1311
        %1329 = vmatpush.bf16.msra.mxu0 %v1320
        %1330 = vmatpush.bf16.msra.mxu0 %v1319
        %1331 = vmatpush.bf16.msra.mxu0 %v1318
        %1332 = vmatpush.bf16.msra.mxu0 %v1317
        %1333 = vmatpush.bf16.msra.mxu0 %v1316
        %1334 = vmatpush.bf16.msra.mxu0 %v1315
        %1335 = vmatpush.bf16.msra.mxu0 %v1314
        %1336 = vmatpush.bf16.msra.mxu0 %v1313
        %1337 = vmatmul.bf16.gmra.mxu0 %v1279
        %v1338 = vpop.f32.mrf.mxu0
        %v1339 = vadd.f32 0.0, %v1338
        %v1340 = vpop.f32.mrf.mxu0
        %v1341 = vadd.f32 0.0, %v1340
        %1342 = vdwg.mxu0
        %v1343 = vadd.f32 %v1250, %v1339
        %v1344 = vadd.f32 %v1251, %v1341
        %v1345 = vld [vmem:[#allocation2 + $0x4] sm:$0x8]
        %v1346 = vld [vmem:[#allocation2 + $0xc] sm:$0x7]
        %s1347 = scalar_lea.vmem %s3, 320
        %v1348 = vld [vmem:[%s1347] sm:$0xf]
        %v1349 = vld [vmem:[%s1347 + $0x4] sm:$0xf]
        %v1350 = vld [vmem:[%s1347 + $0x8] sm:$0xf]
        %v1351 = vld [vmem:[%s1347 + $0xc] sm:$0xf]
        %v1352 = vld [vmem:[%s1347 + $0x10] sm:$0xf]
        %v1353 = vld [vmem:[%s1347 + $0x14] sm:$0xf]
        %v1354 = vld [vmem:[%s1347 + $0x18] sm:$0xf]
        %v1355 = vld [vmem:[%s1347 + $0x1c] sm:$0xf]
        %v1356 = vld [vmem:[%s1347 + $0x20] sm:$0xf]
        %v1357 = vld [vmem:[%s1347 + $0x24] sm:$0xf]
        %v1358 = vld [vmem:[%s1347 + $0x28] sm:$0xf]
        %v1359 = vld [vmem:[%s1347 + $0x2c] sm:$0xf]
        %v1360 = vld [vmem:[%s1347 + $0x30] sm:$0xf]
        %v1361 = vld [vmem:[%s1347 + $0x34] sm:$0xf]
        %v1362 = vld [vmem:[%s1347 + $0x38] sm:$0xf]
        %v1363 = vld [vmem:[%s1347 + $0x3c] sm:$0xf]
        %v1366 = vunpack.c.l.b16 %v1345
        %v1367 = vunpack.c.l.b16 %v1346
        %v1368 = vpack.c.b16 %v1180, %v1366
        %v1369 = vpack.c.b16 %v1367, %v1367
        %v1370 = vrot.slane %v1368, 3
        %v1371 = vrot.slane %v1369, 3
        %v1372 = vsel %vm277, %v1370, %v1371
        %v1390 = vunpack.c.l.b16 %v1348
        %v1391 = vunpack.c.l.b16 %v1349
        %v1392 = vunpack.c.l.b16 %v1350
        %v1393 = vunpack.c.l.b16 %v1351
        %v1394 = vunpack.c.l.b16 %v1352
        %v1395 = vunpack.c.l.b16 %v1353
        %v1396 = vunpack.c.l.b16 %v1354
        %v1397 = vunpack.c.l.b16 %v1355
        %v1398 = vunpack.c.l.b16 %v1356
        %v1399 = vunpack.c.l.b16 %v1357
        %v1400 = vunpack.c.l.b16 %v1358
        %v1401 = vunpack.c.l.b16 %v1359
        %v1402 = vunpack.c.l.b16 %v1360
        %v1403 = vunpack.c.l.b16 %v1361
        %v1404 = vunpack.c.l.b16 %v1362
        %v1405 = vunpack.c.l.b16 %v1363
        %v1406 = vpack.c.b16 %v1391, %v1390
        %v1407 = vpack.c.b16 %v1393, %v1392
        %v1408 = vpack.c.b16 %v1395, %v1394
        %v1409 = vpack.c.b16 %v1397, %v1396
        %v1410 = vpack.c.b16 %v1399, %v1398
        %v1411 = vpack.c.b16 %v1401, %v1400
        %v1412 = vpack.c.b16 %v1403, %v1402
        %v1413 = vpack.c.b16 %v1405, %v1404
        %1422 = vmatpush.bf16.msra.mxu0 %v1413
        %1423 = vmatpush.bf16.msra.mxu0 %v1412
        %1424 = vmatpush.bf16.msra.mxu0 %v1411
        %1425 = vmatpush.bf16.msra.mxu0 %v1410
        %1426 = vmatpush.bf16.msra.mxu0 %v1409
        %1427 = vmatpush.bf16.msra.mxu0 %v1408
        %1428 = vmatpush.bf16.msra.mxu0 %v1407
        %1429 = vmatpush.bf16.msra.mxu0 %v1406
        %1430 = vmatmul.bf16.gmra.mxu0 %v1372
        %v1431 = vpop.f32.mrf.mxu0
        %v1432 = vadd.f32 0.0, %v1431
        %v1433 = vpop.f32.mrf.mxu0
        %v1434 = vadd.f32 0.0, %v1433
        %1435 = vdwg.mxu0
        %v1436 = vadd.f32 %v1343, %v1432
        %v1437 = vadd.f32 %v1344, %v1434
        %v1438 = vld [vmem:[#allocation2 + $0xc] sm:$0xf]
        %s1439 = scalar_lea.vmem %s3, 384
        %v1440 = vld [vmem:[%s1439] sm:$0xf]
        %v1441 = vld [vmem:[%s1439 + $0x4] sm:$0xf]
        %v1442 = vld [vmem:[%s1439 + $0x8] sm:$0xf]
        %v1443 = vld [vmem:[%s1439 + $0xc] sm:$0xf]
        %v1444 = vld [vmem:[%s1439 + $0x10] sm:$0xf]
        %v1445 = vld [vmem:[%s1439 + $0x14] sm:$0xf]
        %v1446 = vld [vmem:[%s1439 + $0x18] sm:$0xf]
        %v1447 = vld [vmem:[%s1439 + $0x1c] sm:$0xf]
        %v1448 = vld [vmem:[%s1439 + $0x20] sm:$0xf]
        %v1449 = vld [vmem:[%s1439 + $0x24] sm:$0xf]
        %v1450 = vld [vmem:[%s1439 + $0x28] sm:$0xf]
        %v1451 = vld [vmem:[%s1439 + $0x2c] sm:$0xf]
        %v1452 = vld [vmem:[%s1439 + $0x30] sm:$0xf]
        %v1453 = vld [vmem:[%s1439 + $0x34] sm:$0xf]
        %v1454 = vld [vmem:[%s1439 + $0x38] sm:$0xf]
        %v1455 = vld [vmem:[%s1439 + $0x3c] sm:$0xf]
        %v1457 = vunpack.c.l.b16 %v1438
        %v1458 = vpack.c.b16 %v1457, %v1180
        %v1476 = vunpack.c.l.b16 %v1440
        %v1477 = vunpack.c.l.b16 %v1441
        %v1478 = vunpack.c.l.b16 %v1442
        %v1479 = vunpack.c.l.b16 %v1443
        %v1480 = vunpack.c.l.b16 %v1444
        %v1481 = vunpack.c.l.b16 %v1445
        %v1482 = vunpack.c.l.b16 %v1446
        %v1483 = vunpack.c.l.b16 %v1447
        %v1484 = vunpack.c.l.b16 %v1448
        %v1485 = vunpack.c.l.b16 %v1449
        %v1486 = vunpack.c.l.b16 %v1450
        %v1487 = vunpack.c.l.b16 %v1451
        %v1488 = vunpack.c.l.b16 %v1452
        %v1489 = vunpack.c.l.b16 %v1453
        %v1490 = vunpack.c.l.b16 %v1454
        %v1491 = vunpack.c.l.b16 %v1455
        %v1492 = vpack.c.b16 %v1477, %v1476
        %v1493 = vpack.c.b16 %v1479, %v1478
        %v1494 = vpack.c.b16 %v1481, %v1480
        %v1495 = vpack.c.b16 %v1483, %v1482
        %v1496 = vpack.c.b16 %v1485, %v1484
        %v1497 = vpack.c.b16 %v1487, %v1486
        %v1498 = vpack.c.b16 %v1489, %v1488
        %v1499 = vpack.c.b16 %v1491, %v1490
        %1508 = vmatpush.bf16.msra.mxu0 %v1499
        %1509 = vmatpush.bf16.msra.mxu0 %v1498
        %1510 = vmatpush.bf16.msra.mxu0 %v1497
        %1511 = vmatpush.bf16.msra.mxu0 %v1496
        %1512 = vmatpush.bf16.msra.mxu0 %v1495
        %1513 = vmatpush.bf16.msra.mxu0 %v1494
        %1514 = vmatpush.bf16.msra.mxu0 %v1493
        %1515 = vmatpush.bf16.msra.mxu0 %v1492
        %1516 = vmatmul.bf16.gmra.mxu0 %v1458
        %v1517 = vpop.f32.mrf.mxu0
        %v1518 = vadd.f32 0.0, %v1517
        %v1519 = vpop.f32.mrf.mxu0
        %v1520 = vadd.f32 0.0, %v1519
        %1521 = vdwg.mxu0
        %v1522 = vadd.f32 %v1436, %v1518
        %v1523 = vadd.f32 %v1437, %v1520
        %v1524 = vld [vmem:[%s4] sm:$0x1]
        %v1526 = vperm.slane %v1524, 0
        %v1528 = vadd.f32 %v1522, %v1526
        %v1529 = vadd.f32 %v1523, %v1526
        %v1530 = vmax.f32 %v1528, 0.0
        %v1531 = vmax.f32 %v1529, 0.0
        %v1532 = vadd.f32 %v1530, %v880
        %v1533 = vadd.f32 %v1531, %v881
        %v1534 = vmax.f32 %v1532, 0.0
        %v1535 = vmax.f32 %v1533, 0.0
        %v1536 = vadd.f32 %v1534, %v1535
        %v1537 = vrot.slane %v1536, 4
        %v1538 = vadd.f32 %v1536, %v1537
        %v1539 = vrot.slane %v1538, 2
        %v1540 = vadd.f32 %v1538, %v1539
        %v1541 = vrot.slane %v1540, 1
        %v1542 = vadd.f32 %v1540, %v1541
        %v1543 = vrcp.pop 16.0
        %v1544 = vmul.f32 16.0, %v1543
        %v1545 = vsub.f32 1.0, %v1544
        %v1546 = vmul.f32 %v1543, %v1545
        %v1547 = vadd.f32 %v1543, %v1546
        %vm1548 = vweird.f32 %v1543
        %v1549 = vsel %vm1548, %v1543, %v1547
        %v1550 = vmul.f32 %v1542, %v1549
        %1551 = vst [vmem:[%s216] sm:$0x1] %v1550
        %s1552 = sand.u32 %s137, 1
        %s1553 = scalar_lea.sflag [#allocation4], %s1552
        %s1554 = sand.u32 %s137, 1
        %s1555 = scalar_lea.vmem [#allocation3], %s1554
        // Predicated region
        $region41: #{forward.3} parent=39 // pred_check
          %p1556 = pneg %p147
        $region42: #{forward.3} parent=39 // pred_check_branch
          %1558 = sbr.rel (%p1556) target = $region44
        $region43: #{forward.3} parent=39 // pred_region
          %1560 = vsyncadd %s1553, 0
          %s1561 = scalar_lea.hbm %s5, %s19
          %s1563 = sshll.u32 %s1555, 4
          %s1564 = int_to_ptr.vmem [resolvable:$true] %s1563
          %s1565 = sshll.u32 %s1561, 4
          %s1566 = int_to_ptr.hbm [resolvable:$true] %s1565
          %1568 = dma.vmem_to_hbm [thread:$0]  %s1564, 16, %s1566, %s1553
        $region44: #{forward.3} parent=39 // pred_fallthru
          _
      $region40: #{forward.3} parent=5 // pred_fallthru
        _
      %p1569 = scmp.le.s32.totalorder 2, %s14
      // Predicated region
      $region45: #{forward.3} parent=5 // pred_check
        %p1570 = pneg %p1569
      $region46: #{forward.3} parent=5 // pred_check_branch
        %1572 = sbr.rel (%p1570) target = $region48
      $region47: #{forward.3} parent=5 // pred_region
        %s1573 = ssub.s32 %s14, 2
        // Predicated region
        $region49: #{forward.3} parent=47 // pred_check
          %p1574 = pneg %p153
        $region50: #{forward.3} parent=47 // pred_check_branch
          %1576 = sbr.rel (%p1574) target = $region52
        $region51: #{forward.3} parent=47 // pred_region
          %s1577 = sand.u32 %s138, 1
          %s1578 = scalar_lea.sflag [#allocation4], %s1577
          %s1579 = sand.u32 %s138, 1
          %s1580 = scalar_lea.vmem [#allocation3], %s1579
          %1582 = dma.done %s1578, 16
        $region52: #{forward.3} parent=47 // pred_fallthru
          _
      $region48: #{forward.3} parent=5 // pred_fallthru
        _
    $region6: #{forward.3} parent=1 // loop_footer
      %s18 = sadd.s32 1, %s14
    $region7: #{forward.3} parent=1 // loop_footer_branch
      %13 = sbr.rel target = $region3
    $region8: #{forward.3} parent=1 // loop_exit
      _
    %1583 = vsyncpa [#allocation4], 1
    %s1584 = scalar_lea.sflag [#allocation4], 1
    %1585 = vsyncpa %s1584, 1

// kernel: forward.2
$region0: #{forward.2}
  #allocation0 [shape = 'u32[]', space=smem, size = 0x4, offset = 0x4, fixed_abs, tag = 'smem constant byte address 0x4 - core index']
  #allocation1 [shape = 'u32[72,128]{1,0:T(1,128)}', space=vmem, size = 0x9000, scoped, tag = 'internal scratch']
  #allocation2 [shape = 'bf16[1,32,128]{2,1,0:T(8,128)(2,1)}', space=vmem, size = 0x2000, scoped, tag = 'scratch operand']
  %s0 = inlined_call_operand.vmem [shape: f32[2,16,128], index: 0, kind: input, shape index: {}]
  %s1 = inlined_call_operand.hbm [shape: bf16[7,128,128], index: 1, kind: input, shape index: {}]
  %s2 = inlined_call_operand.vmem [shape: f32[1,128], index: 2, kind: input, shape index: {}]
  %s3 = inlined_call_operand.hbm [shape: bf16[7,128,128], index: 3, kind: input, shape index: {}]
  %s4 = inlined_call_operand.vmem [shape: f32[1,128], index: 4, kind: input, shape index: {}]
  %s5 = inlined_call_operand.vmem [shape: bf16[128,128], index: 5, kind: input, shape index: {}]
  %s6 = inlined_call_operand.hbm [shape: f32[1,128], index: 6, kind: input, shape index: {}]
  %s7 = inlined_call_operand.vmem [shape: bf16[2,16,128], index: 7, kind: output, shape index: {}]
  %s8 = sld [smem:[#allocation0]]
  $region73: #{forward.2} parent=0
    _
  %s10 = ssub.s32 1, %s8
  %s11 = scalar_select 0, %s10, %s8
  $region1: #{forward.2} parent=0
    #allocation3 [shape = 'u8[229376]{0}', space=vmem, size = 0x38000, scoped, tag = 'input window, operand 1, single buffered']
    #allocation4 [shape = 's32[2]{0}', space=sflag, size = 0x8, scoped, tag = 'scoped memory for forward.2']
    #allocation5 [shape = 'u8[229376]{0}', space=vmem, size = 0x38000, scoped, tag = 'input window, operand 3, single buffered']
    #allocation6 [shape = 's32[1]{0}', space=sflag, size = 0x4, scoped, tag = 'scoped memory for forward.2']
    #allocation7 [shape = 'u8[512]{0}', space=vmem, size = 0x400, scoped, tag = 'input window, operand 6, single buffered']
    %12 = vsyncpa [#allocation4], 0
    %13 = vsyncpa [#allocation6], 0
    loop: start=0, step=1, limit=4
    $region2: #{forward.2} parent=1 // loop_pre_header
      _
    $region3: #{forward.2} parent=1 // loop_header
      %s15 = sphi 0, %s19
      %p16 = scmp.ge.s32.totalorder %s15, 4
      %s25 = sphi 0, %s27
      %s28 = sphi 0, %s25
      %s29 = sphi 0, %s28
      %s45 = sphi 0, %s29
      %s49 = sphi 0, %s49
      %s51 = sphi 0, %s49
      %s52 = sphi 0, %s51
      %s66 = sphi 0, %s52
      %s70 = sphi 0, %s70
      %s72 = sphi 0, %s70
      %s73 = sphi 0, %s72
      %s87 = sphi 0, %s73
      %s91 = sphi 0, %s91
      %s93 = sphi 0, %s91
      %s94 = sphi 0, %s93
      %s108 = sphi 0, %s94
      %s112 = sphi 0, %s112
      %s114 = sphi 0, %s112
      %s115 = sphi 0, %s114
      %s129 = sphi 0, %s115
      %s133 = sphi 0, %s133
      %s135 = sphi 0, %s133
      %s136 = sphi 0, %s135
      %s150 = sphi 0, %s136
      %s154 = sphi 0, %s154
      %s156 = sphi 0, %s154
      %s157 = sphi 0, %s156
      %s171 = sphi 0, %s157
      %s177 = sphi 0, %s179
      %s180 = sphi 0, %s177
      %s181 = sphi 0, %s180
      %s197 = sphi 0, %s181
    $region4: #{forward.2} parent=1 // loop_header_branch
      %18 = sbr.rel (%p16) target = $region8
    $region5: #{forward.2} parent=1 // loop_body
      %s20 = ssub.s32 %s15, 1
      %s21 = ssub.s32 %s15, 2
      %s22 = sadd.s32 %s15, 1
      %s23 = ssub.s32 %s15, %s22
      %p24 = scmp.eq.s32.totalorder %s23, 0
      %s26 = sadd.s32 %s25, 1
      %s27 = scalar_select %p24, %s25, %s26
      %p30 = pneg %p24
      %p31 = scmp.eq.s32.totalorder %s15, 1
      %p32 = por %p30, %p31
      %p33 = scmp.ne.s32.totalorder %s25, %s28
      %p34 = scmp.eq.s32.totalorder %s15, 0
      %p35 = por %p33, %p34
      %p36 = scmp.ne.s32.totalorder %s25, %s28
      %p37 = scmp.eq.s32.totalorder %s20, 1
      %p38 = por %p36, %p37
      %p39 = scmp.ne.s32.totalorder %s28, %s29
      %p40 = scmp.eq.s32.totalorder %s20, 0
      %p41 = por %p39, %p40
      %p42 = scmp.ne.s32.totalorder %s28, %s29
      %p43 = scmp.eq.s32.totalorder %s21, 1
      %p44 = por %p42, %p43
      %p46 = scmp.ne.s32.totalorder %s29, %s45
      %p47 = scmp.eq.s32.totalorder %s21, 0
      %p48 = por %p46, %p47
      %s50 = sadd.s32 %s49, 1
      %p53 = scmp.eq.s32.totalorder %s15, 1
      %p54 = scmp.ne.s32.totalorder %s49, %s51
      %p55 = scmp.eq.s32.totalorder %s15, 0
      %p56 = por %p54, %p55
      %p57 = scmp.ne.s32.totalorder %s49, %s51
      %p58 = scmp.eq.s32.totalorder %s20, 1
      %p59 = por %p57, %p58
      %p60 = scmp.ne.s32.totalorder %s51, %s52
      %p61 = scmp.eq.s32.totalorder %s20, 0
      %p62 = por %p60, %p61
      %p63 = scmp.ne.s32.totalorder %s51, %s52
      %p64 = scmp.eq.s32.totalorder %s21, 1
      %p65 = por %p63, %p64
      %p67 = scmp.ne.s32.totalorder %s52, %s66
      %p68 = scmp.eq.s32.totalorder %s21, 0
      %p69 = por %p67, %p68
      %s71 = sadd.s32 %s70, 1
      %p74 = scmp.eq.s32.totalorder %s15, 1
      %p75 = scmp.ne.s32.totalorder %s70, %s72
      %p76 = scmp.eq.s32.totalorder %s15, 0
      %p77 = por %p75, %p76
      %p78 = scmp.ne.s32.totalorder %s70, %s72
      %p79 = scmp.eq.s32.totalorder %s20, 1
      %p80 = por %p78, %p79
      %p81 = scmp.ne.s32.totalorder %s72, %s73
      %p82 = scmp.eq.s32.totalorder %s20, 0
      %p83 = por %p81, %p82
      %p84 = scmp.ne.s32.totalorder %s72, %s73
      %p85 = scmp.eq.s32.totalorder %s21, 1
      %p86 = por %p84, %p85
      %p88 = scmp.ne.s32.totalorder %s73, %s87
      %p89 = scmp.eq.s32.totalorder %s21, 0
      %p90 = por %p88, %p89
      %s92 = sadd.s32 %s91, 1
      %p95 = scmp.eq.s32.totalorder %s15, 1
      %p96 = scmp.ne.s32.totalorder %s91, %s93
      %p97 = scmp.eq.s32.totalorder %s15, 0
      %p98 = por %p96, %p97
      %p99 = scmp.ne.s32.totalorder %s91, %s93
      %p100 = scmp.eq.s32.totalorder %s20, 1
      %p101 = por %p99, %p100
      %p102 = scmp.ne.s32.totalorder %s93, %s94
      %p103 = scmp.eq.s32.totalorder %s20, 0
      %p104 = por %p102, %p103
      %p105 = scmp.ne.s32.totalorder %s93, %s94
      %p106 = scmp.eq.s32.totalorder %s21, 1
      %p107 = por %p105, %p106
      %p109 = scmp.ne.s32.totalorder %s94, %s108
      %p110 = scmp.eq.s32.totalorder %s21, 0
      %p111 = por %p109, %p110
      %s113 = sadd.s32 %s112, 1
      %p116 = scmp.eq.s32.totalorder %s15, 1
      %p117 = scmp.ne.s32.totalorder %s112, %s114
      %p118 = scmp.eq.s32.totalorder %s15, 0
      %p119 = por %p117, %p118
      %p120 = scmp.ne.s32.totalorder %s112, %s114
      %p121 = scmp.eq.s32.totalorder %s20, 1
      %p122 = por %p120, %p121
      %p123 = scmp.ne.s32.totalorder %s114, %s115
      %p124 = scmp.eq.s32.totalorder %s20, 0
      %p125 = por %p123, %p124
      %p126 = scmp.ne.s32.totalorder %s114, %s115
      %p127 = scmp.eq.s32.totalorder %s21, 1
      %p128 = por %p126, %p127
      %p130 = scmp.ne.s32.totalorder %s115, %s129
      %p131 = scmp.eq.s32.totalorder %s21, 0
      %p132 = por %p130, %p131
      %s134 = sadd.s32 %s133, 1
      %p137 = scmp.eq.s32.totalorder %s15, 1
      %p138 = scmp.ne.s32.totalorder %s133, %s135
      %p139 = scmp.eq.s32.totalorder %s15, 0
      %p140 = por %p138, %p139
      %p141 = scmp.ne.s32.totalorder %s133, %s135
      %p142 = scmp.eq.s32.totalorder %s20, 1
      %p143 = por %p141, %p142
      %p144 = scmp.ne.s32.totalorder %s135, %s136
      %p145 = scmp.eq.s32.totalorder %s20, 0
      %p146 = por %p144, %p145
      %p147 = scmp.ne.s32.totalorder %s135, %s136
      %p148 = scmp.eq.s32.totalorder %s21, 1
      %p149 = por %p147, %p148
      %p151 = scmp.ne.s32.totalorder %s136, %s150
      %p152 = scmp.eq.s32.totalorder %s21, 0
      %p153 = por %p151, %p152
      %s155 = sadd.s32 %s154, 1
      %p158 = scmp.eq.s32.totalorder %s15, 1
      %p159 = scmp.ne.s32.totalorder %s154, %s156
      %p160 = scmp.eq.s32.totalorder %s15, 0
      %p161 = por %p159, %p160
      %p162 = scmp.ne.s32.totalorder %s154, %s156
      %p163 = scmp.eq.s32.totalorder %s20, 1
      %p164 = por %p162, %p163
      %p165 = scmp.ne.s32.totalorder %s156, %s157
      %p166 = scmp.eq.s32.totalorder %s20, 0
      %p167 = por %p165, %p166
      %p168 = scmp.ne.s32.totalorder %s156, %s157
      %p169 = scmp.eq.s32.totalorder %s21, 1
      %p170 = por %p168, %p169
      %p172 = scmp.ne.s32.totalorder %s157, %s171
      %p173 = scmp.eq.s32.totalorder %s21, 0
      %p174 = por %p172, %p173
      %s175 = ssub.s32 %s15, %s22
      %p176 = scmp.eq.s32.totalorder %s175, 0
      %s178 = sadd.s32 %s177, 1
      %s179 = scalar_select %p176, %s177, %s178
      %p182 = pneg %p176
      %p183 = scmp.eq.s32.totalorder %s15, 1
      %p184 = por %p182, %p183
      %p185 = scmp.ne.s32.totalorder %s177, %s180
      %p186 = scmp.eq.s32.totalorder %s15, 0
      %p187 = por %p185, %p186
      %p188 = scmp.ne.s32.totalorder %s177, %s180
      %p189 = scmp.eq.s32.totalorder %s20, 1
      %p190 = por %p188, %p189
      %p191 = scmp.ne.s32.totalorder %s180, %s181
      %p192 = scmp.eq.s32.totalorder %s20, 0
      %p193 = por %p191, %p192
      %p194 = scmp.ne.s32.totalorder %s180, %s181
      %p195 = scmp.eq.s32.totalorder %s21, 1
      %p196 = por %p194, %p195
      %p198 = scmp.ne.s32.totalorder %s181, %s197
      %p199 = scmp.eq.s32.totalorder %s21, 0
      %p200 = por %p198, %p199
      %p201 = scmp.le.s32.totalorder 1, %s15
      %p202 = scmp.lt.s32.totalorder %s15, 3
      %p203 = pnand %p201, %p202
      %p204 = pneg %p203
      // Predicated region
      $region9: #{forward.2} parent=5 // pred_check
        _
      $region10: #{forward.2} parent=5 // pred_check_branch
        %206 = sbr.rel (%p203) target = $region12
      $region11: #{forward.2} parent=5 // pred_region
        %s207 = ssub.s32 %s15, 1
        // Predicated region
        $region13: #{forward.2} parent=11 // pred_check
          %p208 = pneg %p62
        $region14: #{forward.2} parent=11 // pred_check_branch
          %210 = sbr.rel (%p208) target = $region16
        $region15: #{forward.2} parent=11 // pred_region
          %212 = vsyncadd [#allocation4], 0
          %s213 = sshll.u32 %s1, 4
          %s214 = int_to_ptr.hbm [resolvable:$true] %s213
          %s215 = sshll.u32 [#allocation3], 4
          %s216 = int_to_ptr.vmem [resolvable:$true] %s215
          %221 = dma.hbm_to_vmem [thread:$0]  %s214, 7168, %s216, [#allocation4], 64, 64, 4
        $region16: #{forward.2} parent=11 // pred_fallthru
          _
        // Predicated region
        $region17: #{forward.2} parent=11 // pred_check
          %p222 = pneg %p83
        $region18: #{forward.2} parent=11 // pred_check_branch
          %224 = sbr.rel (%p222) target = $region20
        $region19: #{forward.2} parent=11 // pred_region
          _
        $region20: #{forward.2} parent=11 // pred_fallthru
          _
        // Predicated region
        $region21: #{forward.2} parent=11 // pred_check
          %p225 = pneg %p104
        $region22: #{forward.2} parent=11 // pred_check_branch
          %227 = sbr.rel (%p225) target = $region24
        $region23: #{forward.2} parent=11 // pred_region
          %229 = vsyncadd [#allocation6], 0
          %s230 = sshll.u32 %s3, 4
          %s231 = int_to_ptr.hbm [resolvable:$true] %s230
          %s232 = sshll.u32 [#allocation5], 4
          %s233 = int_to_ptr.vmem [resolvable:$true] %s232
          %238 = dma.hbm_to_vmem [thread:$0]  %s231, 7168, %s233, [#allocation6], 64, 64, 4
        $region24: #{forward.2} parent=11 // pred_fallthru
          _
        // Predicated region
        $region25: #{forward.2} parent=11 // pred_check
          %p239 = pneg %p125
        $region26: #{forward.2} parent=11 // pred_check_branch
          %241 = sbr.rel (%p239) target = $region28
        $region27: #{forward.2} parent=11 // pred_region
          _
        $region28: #{forward.2} parent=11 // pred_fallthru
          _
        // Predicated region
        $region29: #{forward.2} parent=11 // pred_check
          %p242 = pneg %p146
        $region30: #{forward.2} parent=11 // pred_check_branch
          %244 = sbr.rel (%p242) target = $region32
        $region31: #{forward.2} parent=11 // pred_region
          _
        $region32: #{forward.2} parent=11 // pred_fallthru
          _
        // Predicated region
        $region33: #{forward.2} parent=11 // pred_check
          %p245 = pneg %p167
        $region34: #{forward.2} parent=11 // pred_check_branch
          %247 = sbr.rel (%p245) target = $region36
        $region35: #{forward.2} parent=11 // pred_region
          %249 = vsyncadd [#allocation6], 0
          %s251 = sshll.u32 %s6, 4
          %s252 = int_to_ptr.hbm [resolvable:$true] %s251
          %s253 = sshll.u32 [#allocation7], 4
          %s254 = int_to_ptr.vmem [resolvable:$true] %s253
          %256 = dma.hbm_to_vmem [thread:$0]  %s252, 16, %s254, [#allocation6]
        $region36: #{forward.2} parent=11 // pred_fallthru
          _
      $region12: #{forward.2} parent=5 // pred_fallthru
        _
      %p257 = scmp.lt.s32.totalorder %s15, 2
      // Predicated region
      $region37: #{forward.2} parent=5 // pred_check
        %p258 = pneg %p257
      $region38: #{forward.2} parent=5 // pred_check_branch
        %260 = sbr.rel (%p258) target = $region40
      $region39: #{forward.2} parent=5 // pred_region
        // Predicated region
        $region41: #{forward.2} parent=39 // pred_check
          %p261 = pneg %p35
        $region42: #{forward.2} parent=39 // pred_check_branch
          %263 = sbr.rel (%p261) target = $region44
        $region43: #{forward.2} parent=39 // pred_region
          %p264 = scmp.lt.s32.totalorder %s15, 1
          %s265 = scalar_select %p264, %s15, 1
          %s266 = smul.addr %s265, 2
          %s267 = smul.addr %s266, 8
          %s268 = scalar_lea.vmem %s0, %s267
        $region44: #{forward.2} parent=39 // pred_fallthru
          _
      $region40: #{forward.2} parent=5 // pred_fallthru
        _
      %p269 = scmp.le.s32.totalorder 1, %s15
      %p270 = scmp.lt.s32.totalorder %s15, 3
      %p271 = pnand %p269, %p270
      %p272 = pneg %p271
      // Predicated region
      $region45: #{forward.2} parent=5 // pred_check
        _
      $region46: #{forward.2} parent=5 // pred_check_branch
        %274 = sbr.rel (%p271) target = $region48
      $region47: #{forward.2} parent=5 // pred_region
        %s275 = ssub.s32 %s15, 1
        // Predicated region
        $region49: #{forward.2} parent=47 // pred_check
          %p276 = pneg %p62
        $region50: #{forward.2} parent=47 // pred_check_branch
          %278 = sbr.rel (%p276) target = $region52
        $region51: #{forward.2} parent=47 // pred_region
          %280 = dma.done [#allocation4], 7168
        $region52: #{forward.2} parent=47 // pred_fallthru
          _
        // Predicated region
        $region53: #{forward.2} parent=47 // pred_check
          %p281 = pneg %p104
        $region54: #{forward.2} parent=47 // pred_check_branch
          %283 = sbr.rel (%p281) target = $region56
        $region55: #{forward.2} parent=47 // pred_region
          %285 = dma.done [#allocation6], 7168
        $region56: #{forward.2} parent=47 // pred_fallthru
          _
        // Predicated region
        $region57: #{forward.2} parent=47 // pred_check
          %p286 = pneg %p167
        $region58: #{forward.2} parent=47 // pred_check_branch
          %288 = sbr.rel (%p286) target = $region60
        $region59: #{forward.2} parent=47 // pred_region
          %290 = dma.done [#allocation6], 16
        $region60: #{forward.2} parent=47 // pred_fallthru
          _
        %p291 = scmp.lt.s32.totalorder %s20, 1
        %s292 = scalar_select %p291, %s20, 1
        %s293 = smul.addr %s292, 2
        %s294 = smul.addr %s293, 8
        %s295 = scalar_lea.vmem %s0, %s294
        %p296 = pneg %p41
        %p297 = pneg %p38
        %p298 = pneg %p62
        %p299 = pneg %p59
        %p300 = pneg %p83
        %p301 = pneg %p80
        %p302 = pneg %p104
        %p303 = pneg %p101
        %p304 = pneg %p125
        %p305 = pneg %p122
        %p306 = pneg %p146
        %p307 = pneg %p143
        %p308 = pneg %p167
        %p309 = pneg %p164
        %p310 = pneg %p193
        %p311 = pneg %p190
        %p312 = scmp.lt.s32.totalorder %s20, 1
        %s313 = scalar_select %p312, %s20, 1
        %s314 = smul.addr %s313, 2
        %s315 = smul.addr %s314, 4
        %s316 = scalar_lea.vmem %s7, %s315
        %p317 = scmp.lt.s32.totalorder %s20, 1
        %s318 = scalar_select %p317, %s20, 1
        %s319 = smul.addr %s318, 2
        %s320 = smul.addr %s319, 8
        %s321 = scalar_lea.vmem %s0, %s320
        %p322 = scmp.lt.s32.totalorder %s20, 1
        %s323 = scalar_select %p322, %s20, 1
        %s324 = smul.addr %s323, 2
        %s325 = smul.addr %s324, 4
        %s326 = scalar_lea.vmem %s7, %s325
        %328 = vst [vmem:[#allocation2] sm:$0xf] 0
        %329 = vst [vmem:[#allocation2 + $0x4] sm:$0xf] 0
        %330 = vst [vmem:[#allocation2 + $0x8] sm:$0xf] 0
        %331 = vst [vmem:[#allocation2 + $0xc] sm:$0xf] 0
        %v332 = vld [vmem:[%s321] sm:$0xff]
        %v333 = vld [vmem:[%s321 + $0x8] sm:$0xff]
        %v334 = vpack.c.bf16 %v332, %v332
        %v335 = vpack.c.bf16 %v333, %v333
        %336 = vst [vmem:[#allocation2 + $0x8] sm:$0xf] %v334
        %337 = vst [vmem:[#allocation2 + $0xc] sm:$0xf] %v335
        %v338 = vld [vmem:[#allocation2 + $0x4] sm:$0xe]
        %v339 = vld [vmem:[#allocation2 + $0x8] sm:$0xf]
        %v340 = vld [vmem:[#allocation2 + $0xc] sm:$0x1]
        %v341 = vld [vmem:[#allocation3] sm:$0xf]
        %v342 = vld [vmem:[#allocation3 + $0x4] sm:$0xf]
        %v343 = vld [vmem:[#allocation3 + $0x8] sm:$0xf]
        %v344 = vld [vmem:[#allocation3 + $0xc] sm:$0xf]
        %v345 = vld [vmem:[#allocation3 + $0x10] sm:$0xf]
        %v346 = vld [vmem:[#allocation3 + $0x14] sm:$0xf]
        %v347 = vld [vmem:[#allocation3 + $0x18] sm:$0xf]
        %v348 = vld [vmem:[#allocation3 + $0x1c] sm:$0xf]
        %v349 = vld [vmem:[#allocation3 + $0x20] sm:$0xf]
        %v350 = vld [vmem:[#allocation3 + $0x24] sm:$0xf]
        %v351 = vld [vmem:[#allocation3 + $0x28] sm:$0xf]
        %v352 = vld [vmem:[#allocation3 + $0x2c] sm:$0xf]
        %v353 = vld [vmem:[#allocation3 + $0x30] sm:$0xf]
        %v354 = vld [vmem:[#allocation3 + $0x34] sm:$0xf]
        %v355 = vld [vmem:[#allocation3 + $0x38] sm:$0xf]
        %v356 = vld [vmem:[#allocation3 + $0x3c] sm:$0xf]
        %v357 = vld [vmem:[#allocation2 + $0xc] sm:$0x3]
        %s358 = scalar_lea.vmem [#allocation3], 64
        %v359 = vld [vmem:[%s358] sm:$0xf]
        %v360 = vld [vmem:[%s358 + $0x4] sm:$0xf]
        %v361 = vld [vmem:[%s358 + $0x8] sm:$0xf]
        %v362 = vld [vmem:[%s358 + $0xc] sm:$0xf]
        %v363 = vld [vmem:[%s358 + $0x10] sm:$0xf]
        %v364 = vld [vmem:[%s358 + $0x14] sm:$0xf]
        %v365 = vld [vmem:[%s358 + $0x18] sm:$0xf]
        %v366 = vld [vmem:[%s358 + $0x1c] sm:$0xf]
        %v367 = vld [vmem:[%s358 + $0x20] sm:$0xf]
        %v368 = vld [vmem:[%s358 + $0x24] sm:$0xf]
        %v369 = vld [vmem:[%s358 + $0x28] sm:$0xf]
        %v370 = vld [vmem:[%s358 + $0x2c] sm:$0xf]
        %v371 = vld [vmem:[%s358 + $0x30] sm:$0xf]
        %v372 = vld [vmem:[%s358 + $0x34] sm:$0xf]
        %v373 = vld [vmem:[%s358 + $0x38] sm:$0xf]
        %v374 = vld [vmem:[%s358 + $0x3c] sm:$0xf]
        %v378 = vunpack.c.l.b16 %v338
        %v379 = vunpack.c.l.b16 %v339
        %v380 = vunpack.c.l.b16 %v357
        %v381 = vpack.c.b16 %v379, %v378
        %v382 = vpack.c.b16 %v380, %v380
        %vm383 = vsmask.f32 6400
        %v385 = vshrl.u32 %v381, 16
        %v387 = vrot.slane %v385, 1
        %v388 = vshll.u32 %v381, 16
        %v390 = vrot.slane %v388, 2
        %v391 = vor.u32 %v387, %v390
        %v393 = vshrl.u32 %v382, 16
        %v395 = vrot.slane %v393, 1
        %v396 = vshll.u32 %v382, 16
        %v398 = vrot.slane %v396, 2
        %v399 = vor.u32 %v395, %v398
        %v400 = vsel %vm383, %v391, %v399
        %v418 = vunpack.c.l.b16 %v359
        %v419 = vunpack.c.l.b16 %v360
        %v420 = vunpack.c.l.b16 %v361
        %v421 = vunpack.c.l.b16 %v362
        %v422 = vunpack.c.l.b16 %v363
        %v423 = vunpack.c.l.b16 %v364
        %v424 = vunpack.c.l.b16 %v365
        %v425 = vunpack.c.l.b16 %v366
        %v426 = vunpack.c.l.b16 %v367
        %v427 = vunpack.c.l.b16 %v368
        %v428 = vunpack.c.l.b16 %v369
        %v429 = vunpack.c.l.b16 %v370
        %v430 = vunpack.c.l.b16 %v371
        %v431 = vunpack.c.l.b16 %v372
        %v432 = vunpack.c.l.b16 %v373
        %v433 = vunpack.c.l.b16 %v374
        %v434 = vpack.c.b16 %v419, %v418
        %v435 = vpack.c.b16 %v421, %v420
        %v436 = vpack.c.b16 %v423, %v422
        %v437 = vpack.c.b16 %v425, %v424
        %v438 = vpack.c.b16 %v427, %v426
        %v439 = vpack.c.b16 %v429, %v428
        %v440 = vpack.c.b16 %v431, %v430
        %v441 = vpack.c.b16 %v433, %v432
        %450 = vmatpush.bf16.msra.mxu0 %v441
        %451 = vmatpush.bf16.msra.mxu0 %v440
        %452 = vmatpush.bf16.msra.mxu0 %v439
        %453 = vmatpush.bf16.msra.mxu0 %v438
        %454 = vmatpush.bf16.msra.mxu0 %v437
        %455 = vmatpush.bf16.msra.mxu0 %v436
        %456 = vmatpush.bf16.msra.mxu0 %v435
        %457 = vmatpush.bf16.msra.mxu0 %v434
        %458 = vmatmul.bf16.gmra.mxu0 %v400
        %v459 = vpop.f32.mrf.mxu0
        %v460 = vadd.f32 0.0, %v459
        %v461 = vpop.f32.mrf.mxu0
        %v462 = vadd.f32 0.0, %v461
        %463 = vdwg.mxu0
        %v465 = vunpack.c.l.b16 %v340
        %v466 = vpack.c.b16 %v465, %v465
        %vm467 = vcmask 1046528
        %v468 = vrot.slane %v381, 1
        %v469 = vrot.slane %v466, 1
        %v470 = vsel %vm467, %v468, %v469
        %v488 = vunpack.c.l.b16 %v341
        %v489 = vunpack.c.l.b16 %v342
        %v490 = vunpack.c.l.b16 %v343
        %v491 = vunpack.c.l.b16 %v344
        %v492 = vunpack.c.l.b16 %v345
        %v493 = vunpack.c.l.b16 %v346
        %v494 = vunpack.c.l.b16 %v347
        %v495 = vunpack.c.l.b16 %v348
        %v496 = vunpack.c.l.b16 %v349
        %v497 = vunpack.c.l.b16 %v350
        %v498 = vunpack.c.l.b16 %v351
        %v499 = vunpack.c.l.b16 %v352
        %v500 = vunpack.c.l.b16 %v353
        %v501 = vunpack.c.l.b16 %v354
        %v502 = vunpack.c.l.b16 %v355
        %v503 = vunpack.c.l.b16 %v356
        %v504 = vpack.c.b16 %v489, %v488
        %v505 = vpack.c.b16 %v491, %v490
        %v506 = vpack.c.b16 %v493, %v492
        %v507 = vpack.c.b16 %v495, %v494
        %v508 = vpack.c.b16 %v497, %v496
        %v509 = vpack.c.b16 %v499, %v498
        %v510 = vpack.c.b16 %v501, %v500
        %v511 = vpack.c.b16 %v503, %v502
        %520 = vmatpush.bf16.msra.mxu0 %v511
        %521 = vmatpush.bf16.msra.mxu0 %v510
        %522 = vmatpush.bf16.msra.mxu0 %v509
        %523 = vmatpush.bf16.msra.mxu0 %v508
        %524 = vmatpush.bf16.msra.mxu0 %v507
        %525 = vmatpush.bf16.msra.mxu0 %v506
        %526 = vmatpush.bf16.msra.mxu0 %v505
        %527 = vmatpush.bf16.msra.mxu0 %v504
        %528 = vmatmul.bf16.gmra.mxu0 %v470
        %v529 = vpop.f32.mrf.mxu0
        %v530 = vadd.f32 %v460, %v529
        %v531 = vpop.f32.mrf.mxu0
        %v532 = vadd.f32 %v462, %v531
        %533 = vdwg.mxu0
        %v534 = vld [vmem:[#allocation2 + $0x4] sm:$0xc]
        %s535 = scalar_lea.vmem [#allocation3], 128
        %v536 = vld [vmem:[%s535] sm:$0xf]
        %v537 = vld [vmem:[%s535 + $0x4] sm:$0xf]
        %v538 = vld [vmem:[%s535 + $0x8] sm:$0xf]
        %v539 = vld [vmem:[%s535 + $0xc] sm:$0xf]
        %v540 = vld [vmem:[%s535 + $0x10] sm:$0xf]
        %v541 = vld [vmem:[%s535 + $0x14] sm:$0xf]
        %v542 = vld [vmem:[%s535 + $0x18] sm:$0xf]
        %v543 = vld [vmem:[%s535 + $0x1c] sm:$0xf]
        %v544 = vld [vmem:[%s535 + $0x20] sm:$0xf]
        %v545 = vld [vmem:[%s535 + $0x24] sm:$0xf]
        %v546 = vld [vmem:[%s535 + $0x28] sm:$0xf]
        %v547 = vld [vmem:[%s535 + $0x2c] sm:$0xf]
        %v548 = vld [vmem:[%s535 + $0x30] sm:$0xf]
        %v549 = vld [vmem:[%s535 + $0x34] sm:$0xf]
        %v550 = vld [vmem:[%s535 + $0x38] sm:$0xf]
        %v551 = vld [vmem:[%s535 + $0x3c] sm:$0xf]
        %v553 = vunpack.c.l.b16 %v534
        %v554 = vpack.c.b16 %v379, %v553
        %vm555 = vcmask 1045504
        %v556 = vrot.slane %v554, 2
        %v557 = vrot.slane %v382, 2
        %v558 = vsel %vm555, %v556, %v557
        %v576 = vunpack.c.l.b16 %v536
        %v577 = vunpack.c.l.b16 %v537
        %v578 = vunpack.c.l.b16 %v538
        %v579 = vunpack.c.l.b16 %v539
        %v580 = vunpack.c.l.b16 %v540
        %v581 = vunpack.c.l.b16 %v541
        %v582 = vunpack.c.l.b16 %v542
        %v583 = vunpack.c.l.b16 %v543
        %v584 = vunpack.c.l.b16 %v544
        %v585 = vunpack.c.l.b16 %v545
        %v586 = vunpack.c.l.b16 %v546
        %v587 = vunpack.c.l.b16 %v547
        %v588 = vunpack.c.l.b16 %v548
        %v589 = vunpack.c.l.b16 %v549
        %v590 = vunpack.c.l.b16 %v550
        %v591 = vunpack.c.l.b16 %v551
        %v592 = vpack.c.b16 %v577, %v576
        %v593 = vpack.c.b16 %v579, %v578
        %v594 = vpack.c.b16 %v581, %v580
        %v595 = vpack.c.b16 %v583, %v582
        %v596 = vpack.c.b16 %v585, %v584
        %v597 = vpack.c.b16 %v587, %v586
        %v598 = vpack.c.b16 %v589, %v588
        %v599 = vpack.c.b16 %v591, %v590
        %608 = vmatpush.bf16.msra.mxu0 %v599
        %609 = vmatpush.bf16.msra.mxu0 %v598
        %610 = vmatpush.bf16.msra.mxu0 %v597
        %611 = vmatpush.bf16.msra.mxu0 %v596
        %612 = vmatpush.bf16.msra.mxu0 %v595
        %613 = vmatpush.bf16.msra.mxu0 %v594
        %614 = vmatpush.bf16.msra.mxu0 %v593
        %615 = vmatpush.bf16.msra.mxu0 %v592
        %616 = vmatmul.bf16.gmra.mxu0 %v558
        %v617 = vpop.f32.mrf.mxu0
        %v618 = vadd.f32 0.0, %v617
        %v619 = vpop.f32.mrf.mxu0
        %v620 = vadd.f32 0.0, %v619
        %621 = vdwg.mxu0
        %v622 = vadd.f32 %v530, %v618
        %v623 = vadd.f32 %v532, %v620
        %v624 = vld [vmem:[#allocation2 + $0xc] sm:$0x7]
        %s625 = scalar_lea.vmem [#allocation3], 192
        %v626 = vld [vmem:[%s625] sm:$0xf]
        %v627 = vld [vmem:[%s625 + $0x4] sm:$0xf]
        %v628 = vld [vmem:[%s625 + $0x8] sm:$0xf]
        %v629 = vld [vmem:[%s625 + $0xc] sm:$0xf]
        %v630 = vld [vmem:[%s625 + $0x10] sm:$0xf]
        %v631 = vld [vmem:[%s625 + $0x14] sm:$0xf]
        %v632 = vld [vmem:[%s625 + $0x18] sm:$0xf]
        %v633 = vld [vmem:[%s625 + $0x1c] sm:$0xf]
        %v634 = vld [vmem:[%s625 + $0x20] sm:$0xf]
        %v635 = vld [vmem:[%s625 + $0x24] sm:$0xf]
        %v636 = vld [vmem:[%s625 + $0x28] sm:$0xf]
        %v637 = vld [vmem:[%s625 + $0x2c] sm:$0xf]
        %v638 = vld [vmem:[%s625 + $0x30] sm:$0xf]
        %v639 = vld [vmem:[%s625 + $0x34] sm:$0xf]
        %v640 = vld [vmem:[%s625 + $0x38] sm:$0xf]
        %v641 = vld [vmem:[%s625 + $0x3c] sm:$0xf]
        %v643 = vunpack.c.l.b16 %v624
        %v644 = vpack.c.b16 %v643, %v643
        %vm645 = vsmask.f32 5376
        %v647 = vshrl.u32 %v554, 16
        %v649 = vrot.slane %v647, 2
        %v650 = vshll.u32 %v554, 16
        %v652 = vrot.slane %v650, 3
        %v653 = vor.u32 %v649, %v652
        %v655 = vshrl.u32 %v644, 16
        %v657 = vrot.slane %v655, 2
        %v658 = vshll.u32 %v644, 16
        %v660 = vrot.slane %v658, 3
        %v661 = vor.u32 %v657, %v660
        %v662 = vsel %vm645, %v653, %v661
        %v680 = vunpack.c.l.b16 %v626
        %v681 = vunpack.c.l.b16 %v627
        %v682 = vunpack.c.l.b16 %v628
        %v683 = vunpack.c.l.b16 %v629
        %v684 = vunpack.c.l.b16 %v630
        %v685 = vunpack.c.l.b16 %v631
        %v686 = vunpack.c.l.b16 %v632
        %v687 = vunpack.c.l.b16 %v633
        %v688 = vunpack.c.l.b16 %v634
        %v689 = vunpack.c.l.b16 %v635
        %v690 = vunpack.c.l.b16 %v636
        %v691 = vunpack.c.l.b16 %v637
        %v692 = vunpack.c.l.b16 %v638
        %v693 = vunpack.c.l.b16 %v639
        %v694 = vunpack.c.l.b16 %v640
        %v695 = vunpack.c.l.b16 %v641
        %v696 = vpack.c.b16 %v681, %v680
        %v697 = vpack.c.b16 %v683, %v682
        %v698 = vpack.c.b16 %v685, %v684
        %v699 = vpack.c.b16 %v687, %v686
        %v700 = vpack.c.b16 %v689, %v688
        %v701 = vpack.c.b16 %v691, %v690
        %v702 = vpack.c.b16 %v693, %v692
        %v703 = vpack.c.b16 %v695, %v694
        %712 = vmatpush.bf16.msra.mxu0 %v703
        %713 = vmatpush.bf16.msra.mxu0 %v702
        %714 = vmatpush.bf16.msra.mxu0 %v701
        %715 = vmatpush.bf16.msra.mxu0 %v700
        %716 = vmatpush.bf16.msra.mxu0 %v699
        %717 = vmatpush.bf16.msra.mxu0 %v698
        %718 = vmatpush.bf16.msra.mxu0 %v697
        %719 = vmatpush.bf16.msra.mxu0 %v696
        %720 = vmatmul.bf16.gmra.mxu0 %v662
        %v721 = vpop.f32.mrf.mxu0
        %v722 = vadd.f32 0.0, %v721
        %v723 = vpop.f32.mrf.mxu0
        %v724 = vadd.f32 0.0, %v723
        %725 = vdwg.mxu0
        %v726 = vadd.f32 %v622, %v722
        %v727 = vadd.f32 %v623, %v724
        %v728 = vld [vmem:[#allocation2 + $0x4] sm:$0x8]
        %s729 = scalar_lea.vmem [#allocation3], 256
        %v730 = vld [vmem:[%s729] sm:$0xf]
        %v731 = vld [vmem:[%s729 + $0x4] sm:$0xf]
        %v732 = vld [vmem:[%s729 + $0x8] sm:$0xf]
        %v733 = vld [vmem:[%s729 + $0xc] sm:$0xf]
        %v734 = vld [vmem:[%s729 + $0x10] sm:$0xf]
        %v735 = vld [vmem:[%s729 + $0x14] sm:$0xf]
        %v736 = vld [vmem:[%s729 + $0x18] sm:$0xf]
        %v737 = vld [vmem:[%s729 + $0x1c] sm:$0xf]
        %v738 = vld [vmem:[%s729 + $0x20] sm:$0xf]
        %v739 = vld [vmem:[%s729 + $0x24] sm:$0xf]
        %v740 = vld [vmem:[%s729 + $0x28] sm:$0xf]
        %v741 = vld [vmem:[%s729 + $0x2c] sm:$0xf]
        %v742 = vld [vmem:[%s729 + $0x30] sm:$0xf]
        %v743 = vld [vmem:[%s729 + $0x34] sm:$0xf]
        %v744 = vld [vmem:[%s729 + $0x38] sm:$0xf]
        %v745 = vld [vmem:[%s729 + $0x3c] sm:$0xf]
        %v747 = vunpack.c.l.b16 %v728
        %v748 = vpack.c.b16 %v379, %v747
        %vm749 = vcmask 1044480
        %v750 = vrot.slane %v748, 3
        %v751 = vrot.slane %v644, 3
        %v752 = vsel %vm749, %v750, %v751
        %v770 = vunpack.c.l.b16 %v730
        %v771 = vunpack.c.l.b16 %v731
        %v772 = vunpack.c.l.b16 %v732
        %v773 = vunpack.c.l.b16 %v733
        %v774 = vunpack.c.l.b16 %v734
        %v775 = vunpack.c.l.b16 %v735
        %v776 = vunpack.c.l.b16 %v736
        %v777 = vunpack.c.l.b16 %v737
        %v778 = vunpack.c.l.b16 %v738
        %v779 = vunpack.c.l.b16 %v739
        %v780 = vunpack.c.l.b16 %v740
        %v781 = vunpack.c.l.b16 %v741
        %v782 = vunpack.c.l.b16 %v742
        %v783 = vunpack.c.l.b16 %v743
        %v784 = vunpack.c.l.b16 %v744
        %v785 = vunpack.c.l.b16 %v745
        %v786 = vpack.c.b16 %v771, %v770
        %v787 = vpack.c.b16 %v773, %v772
        %v788 = vpack.c.b16 %v775, %v774
        %v789 = vpack.c.b16 %v777, %v776
        %v790 = vpack.c.b16 %v779, %v778
        %v791 = vpack.c.b16 %v781, %v780
        %v792 = vpack.c.b16 %v783, %v782
        %v793 = vpack.c.b16 %v785, %v784
        %802 = vmatpush.bf16.msra.mxu0 %v793
        %803 = vmatpush.bf16.msra.mxu0 %v792
        %804 = vmatpush.bf16.msra.mxu0 %v791
        %805 = vmatpush.bf16.msra.mxu0 %v790
        %806 = vmatpush.bf16.msra.mxu0 %v789
        %807 = vmatpush.bf16.msra.mxu0 %v788
        %808 = vmatpush.bf16.msra.mxu0 %v787
        %809 = vmatpush.bf16.msra.mxu0 %v786
        %810 = vmatmul.bf16.gmra.mxu0 %v752
        %v811 = vpop.f32.mrf.mxu0
        %v812 = vadd.f32 0.0, %v811
        %v813 = vpop.f32.mrf.mxu0
        %v814 = vadd.f32 0.0, %v813
        %815 = vdwg.mxu0
        %v816 = vadd.f32 %v726, %v812
        %v817 = vadd.f32 %v727, %v814
        %v818 = vld [vmem:[#allocation2 + $0xc] sm:$0xf]
        %s819 = scalar_lea.vmem [#allocation3], 320
        %v820 = vld [vmem:[%s819] sm:$0xf]
        %v821 = vld [vmem:[%s819 + $0x4] sm:$0xf]
        %v822 = vld [vmem:[%s819 + $0x8] sm:$0xf]
        %v823 = vld [vmem:[%s819 + $0xc] sm:$0xf]
        %v824 = vld [vmem:[%s819 + $0x10] sm:$0xf]
        %v825 = vld [vmem:[%s819 + $0x14] sm:$0xf]
        %v826 = vld [vmem:[%s819 + $0x18] sm:$0xf]
        %v827 = vld [vmem:[%s819 + $0x1c] sm:$0xf]
        %v828 = vld [vmem:[%s819 + $0x20] sm:$0xf]
        %v829 = vld [vmem:[%s819 + $0x24] sm:$0xf]
        %v830 = vld [vmem:[%s819 + $0x28] sm:$0xf]
        %v831 = vld [vmem:[%s819 + $0x2c] sm:$0xf]
        %v832 = vld [vmem:[%s819 + $0x30] sm:$0xf]
        %v833 = vld [vmem:[%s819 + $0x34] sm:$0xf]
        %v834 = vld [vmem:[%s819 + $0x38] sm:$0xf]
        %v835 = vld [vmem:[%s819 + $0x3c] sm:$0xf]
        %v837 = vunpack.c.l.b16 %v818
        %v838 = vpack.c.b16 %v837, %v837
        %vm839 = vsmask.f32 4352
        %v841 = vshrl.u32 %v748, 16
        %v843 = vrot.slane %v841, 3
        %v844 = vshll.u32 %v748, 16
        %v846 = vrot.slane %v844, 4
        %v847 = vor.u32 %v843, %v846
        %v849 = vshrl.u32 %v838, 16
        %v851 = vrot.slane %v849, 3
        %v852 = vshll.u32 %v838, 16
        %v854 = vrot.slane %v852, 4
        %v855 = vor.u32 %v851, %v854
        %v856 = vsel %vm839, %v847, %v855
        %v874 = vunpack.c.l.b16 %v820
        %v875 = vunpack.c.l.b16 %v821
        %v876 = vunpack.c.l.b16 %v822
        %v877 = vunpack.c.l.b16 %v823
        %v878 = vunpack.c.l.b16 %v824
        %v879 = vunpack.c.l.b16 %v825
        %v880 = vunpack.c.l.b16 %v826
        %v881 = vunpack.c.l.b16 %v827
        %v882 = vunpack.c.l.b16 %v828
        %v883 = vunpack.c.l.b16 %v829
        %v884 = vunpack.c.l.b16 %v830
        %v885 = vunpack.c.l.b16 %v831
        %v886 = vunpack.c.l.b16 %v832
        %v887 = vunpack.c.l.b16 %v833
        %v888 = vunpack.c.l.b16 %v834
        %v889 = vunpack.c.l.b16 %v835
        %v890 = vpack.c.b16 %v875, %v874
        %v891 = vpack.c.b16 %v877, %v876
        %v892 = vpack.c.b16 %v879, %v878
        %v893 = vpack.c.b16 %v881, %v880
        %v894 = vpack.c.b16 %v883, %v882
        %v895 = vpack.c.b16 %v885, %v884
        %v896 = vpack.c.b16 %v887, %v886
        %v897 = vpack.c.b16 %v889, %v888
        %906 = vmatpush.bf16.msra.mxu0 %v897
        %907 = vmatpush.bf16.msra.mxu0 %v896
        %908 = vmatpush.bf16.msra.mxu0 %v895
        %909 = vmatpush.bf16.msra.mxu0 %v894
        %910 = vmatpush.bf16.msra.mxu0 %v893
        %911 = vmatpush.bf16.msra.mxu0 %v892
        %912 = vmatpush.bf16.msra.mxu0 %v891
        %913 = vmatpush.bf16.msra.mxu0 %v890
        %914 = vmatmul.bf16.gmra.mxu0 %v856
        %v915 = vpop.f32.mrf.mxu0
        %v916 = vadd.f32 0.0, %v915
        %v917 = vpop.f32.mrf.mxu0
        %v918 = vadd.f32 0.0, %v917
        %919 = vdwg.mxu0
        %v920 = vadd.f32 %v816, %v916
        %v921 = vadd.f32 %v817, %v918
        %s922 = scalar_lea.vmem [#allocation3], 384
        %v923 = vld [vmem:[%s922] sm:$0xf]
        %v924 = vld [vmem:[%s922 + $0x4] sm:$0xf]
        %v925 = vld [vmem:[%s922 + $0x8] sm:$0xf]
        %v926 = vld [vmem:[%s922 + $0xc] sm:$0xf]
        %v927 = vld [vmem:[%s922 + $0x10] sm:$0xf]
        %v928 = vld [vmem:[%s922 + $0x14] sm:$0xf]
        %v929 = vld [vmem:[%s922 + $0x18] sm:$0xf]
        %v930 = vld [vmem:[%s922 + $0x1c] sm:$0xf]
        %v931 = vld [vmem:[%s922 + $0x20] sm:$0xf]
        %v932 = vld [vmem:[%s922 + $0x24] sm:$0xf]
        %v933 = vld [vmem:[%s922 + $0x28] sm:$0xf]
        %v934 = vld [vmem:[%s922 + $0x2c] sm:$0xf]
        %v935 = vld [vmem:[%s922 + $0x30] sm:$0xf]
        %v936 = vld [vmem:[%s922 + $0x34] sm:$0xf]
        %v937 = vld [vmem:[%s922 + $0x38] sm:$0xf]
        %v938 = vld [vmem:[%s922 + $0x3c] sm:$0xf]
        %v939 = vpack.c.b16 %v837, %v379
        %v957 = vunpack.c.l.b16 %v923
        %v958 = vunpack.c.l.b16 %v924
        %v959 = vunpack.c.l.b16 %v925
        %v960 = vunpack.c.l.b16 %v926
        %v961 = vunpack.c.l.b16 %v927
        %v962 = vunpack.c.l.b16 %v928
        %v963 = vunpack.c.l.b16 %v929
        %v964 = vunpack.c.l.b16 %v930
        %v965 = vunpack.c.l.b16 %v931
        %v966 = vunpack.c.l.b16 %v932
        %v967 = vunpack.c.l.b16 %v933
        %v968 = vunpack.c.l.b16 %v934
        %v969 = vunpack.c.l.b16 %v935
        %v970 = vunpack.c.l.b16 %v936
        %v971 = vunpack.c.l.b16 %v937
        %v972 = vunpack.c.l.b16 %v938
        %v973 = vpack.c.b16 %v958, %v957
        %v974 = vpack.c.b16 %v960, %v959
        %v975 = vpack.c.b16 %v962, %v961
        %v976 = vpack.c.b16 %v964, %v963
        %v977 = vpack.c.b16 %v966, %v965
        %v978 = vpack.c.b16 %v968, %v967
        %v979 = vpack.c.b16 %v970, %v969
        %v980 = vpack.c.b16 %v972, %v971
        %989 = vmatpush.bf16.msra.mxu0 %v980
        %990 = vmatpush.bf16.msra.mxu0 %v979
        %991 = vmatpush.bf16.msra.mxu0 %v978
        %992 = vmatpush.bf16.msra.mxu0 %v977
        %993 = vmatpush.bf16.msra.mxu0 %v976
        %994 = vmatpush.bf16.msra.mxu0 %v975
        %995 = vmatpush.bf16.msra.mxu0 %v974
        %996 = vmatpush.bf16.msra.mxu0 %v973
        %997 = vmatmul.bf16.gmra.mxu0 %v939
        %v998 = vpop.f32.mrf.mxu0
        %v999 = vadd.f32 0.0, %v998
        %v1000 = vpop.f32.mrf.mxu0
        %v1001 = vadd.f32 0.0, %v1000
        %1002 = vdwg.mxu0
        %v1003 = vadd.f32 %v920, %v999
        %v1004 = vadd.f32 %v921, %v1001
        %v1005 = vld [vmem:[%s2] sm:$0x1]
        %v1007 = vperm.slane %v1005, 0
        %v1009 = vadd.f32 %v1003, %v1007
        %v1010 = vadd.f32 %v1004, %v1007
        %v1011 = vmax.f32 %v1009, 0.0
        %v1012 = vmax.f32 %v1010, 0.0
        %v1013 = vld [vmem:[%s5] sm:$0xf]
        %v1014 = vld [vmem:[%s5 + $0x4] sm:$0xf]
        %v1015 = vld [vmem:[%s5 + $0x8] sm:$0xf]
        %v1016 = vld [vmem:[%s5 + $0xc] sm:$0xf]
        %v1017 = vld [vmem:[%s5 + $0x10] sm:$0xf]
        %v1018 = vld [vmem:[%s5 + $0x14] sm:$0xf]
        %v1019 = vld [vmem:[%s5 + $0x18] sm:$0xf]
        %v1020 = vld [vmem:[%s5 + $0x1c] sm:$0xf]
        %v1021 = vld [vmem:[%s5 + $0x20] sm:$0xf]
        %v1022 = vld [vmem:[%s5 + $0x24] sm:$0xf]
        %v1023 = vld [vmem:[%s5 + $0x28] sm:$0xf]
        %v1024 = vld [vmem:[%s5 + $0x2c] sm:$0xf]
        %v1025 = vld [vmem:[%s5 + $0x30] sm:$0xf]
        %v1026 = vld [vmem:[%s5 + $0x34] sm:$0xf]
        %v1027 = vld [vmem:[%s5 + $0x38] sm:$0xf]
        %v1028 = vld [vmem:[%s5 + $0x3c] sm:$0xf]
        %v1029 = vld [vmem:[#allocation7] sm:$0x1]
        %v1031 = vperm.slane %v1029, 0
        %v1049 = vunpack.c.l.b16 %v1013
        %v1050 = vunpack.c.l.b16 %v1014
        %v1051 = vunpack.c.l.b16 %v1015
        %v1052 = vunpack.c.l.b16 %v1016
        %v1053 = vunpack.c.l.b16 %v1017
        %v1054 = vunpack.c.l.b16 %v1018
        %v1055 = vunpack.c.l.b16 %v1019
        %v1056 = vunpack.c.l.b16 %v1020
        %v1057 = vunpack.c.l.b16 %v1021
        %v1058 = vunpack.c.l.b16 %v1022
        %v1059 = vunpack.c.l.b16 %v1023
        %v1060 = vunpack.c.l.b16 %v1024
        %v1061 = vunpack.c.l.b16 %v1025
        %v1062 = vunpack.c.l.b16 %v1026
        %v1063 = vunpack.c.l.b16 %v1027
        %v1064 = vunpack.c.l.b16 %v1028
        %v1065 = vpack.c.b16 %v1050, %v1049
        %v1066 = vpack.c.b16 %v1052, %v1051
        %v1067 = vpack.c.b16 %v1054, %v1053
        %v1068 = vpack.c.b16 %v1056, %v1055
        %v1069 = vpack.c.b16 %v1058, %v1057
        %v1070 = vpack.c.b16 %v1060, %v1059
        %v1071 = vpack.c.b16 %v1062, %v1061
        %v1072 = vpack.c.b16 %v1064, %v1063
        %1081 = vmatpush.bf16.msra.mxu0 %v1072
        %1082 = vmatpush.bf16.msra.mxu0 %v1071
        %1083 = vmatpush.bf16.msra.mxu0 %v1070
        %1084 = vmatpush.bf16.msra.mxu0 %v1069
        %1085 = vmatpush.bf16.msra.mxu0 %v1068
        %1086 = vmatpush.bf16.msra.mxu0 %v1067
        %1087 = vmatpush.bf16.msra.mxu0 %v1066
        %1088 = vmatpush.bf16.msra.mxu0 %v1065
        %1089 = vmatmul.bf16.gmra.mxu0 %v939
        %v1090 = vpop.f32.mrf.mxu0
        %v1091 = vadd.f32 %v1031, %v1090
        %v1092 = vpop.f32.mrf.mxu0
        %v1093 = vadd.f32 %v1031, %v1092
        %1094 = vdwg.mxu0
        %v1095 = vpack.c.bf16 %v1011, %v1011
        %v1096 = vpack.c.bf16 %v1012, %v1012
        %1097 = vst [vmem:[#allocation2 + $0x8] sm:$0xf] %v1095
        %1098 = vst [vmem:[#allocation2 + $0xc] sm:$0xf] %v1096
        %v1099 = vld [vmem:[#allocation2 + $0x4] sm:$0xe]
        %v1100 = vld [vmem:[#allocation2 + $0x8] sm:$0xf]
        %v1101 = vld [vmem:[#allocation2 + $0xc] sm:$0x1]
        %v1102 = vld [vmem:[#allocation5] sm:$0xf]
        %v1103 = vld [vmem:[#allocation5 + $0x4] sm:$0xf]
        %v1104 = vld [vmem:[#allocation5 + $0x8] sm:$0xf]
        %v1105 = vld [vmem:[#allocation5 + $0xc] sm:$0xf]
        %v1106 = vld [vmem:[#allocation5 + $0x10] sm:$0xf]
        %v1107 = vld [vmem:[#allocation5 + $0x14] sm:$0xf]
        %v1108 = vld [vmem:[#allocation5 + $0x18] sm:$0xf]
        %v1109 = vld [vmem:[#allocation5 + $0x1c] sm:$0xf]
        %v1110 = vld [vmem:[#allocation5 + $0x20] sm:$0xf]
        %v1111 = vld [vmem:[#allocation5 + $0x24] sm:$0xf]
        %v1112 = vld [vmem:[#allocation5 + $0x28] sm:$0xf]
        %v1113 = vld [vmem:[#allocation5 + $0x2c] sm:$0xf]
        %v1114 = vld [vmem:[#allocation5 + $0x30] sm:$0xf]
        %v1115 = vld [vmem:[#allocation5 + $0x34] sm:$0xf]
        %v1116 = vld [vmem:[#allocation5 + $0x38] sm:$0xf]
        %v1117 = vld [vmem:[#allocation5 + $0x3c] sm:$0xf]
        %v1118 = vld [vmem:[#allocation2 + $0xc] sm:$0x3]
        %s1119 = scalar_lea.vmem [#allocation5], 64
        %v1120 = vld [vmem:[%s1119] sm:$0xf]
        %v1121 = vld [vmem:[%s1119 + $0x4] sm:$0xf]
        %v1122 = vld [vmem:[%s1119 + $0x8] sm:$0xf]
        %v1123 = vld [vmem:[%s1119 + $0xc] sm:$0xf]
        %v1124 = vld [vmem:[%s1119 + $0x10] sm:$0xf]
        %v1125 = vld [vmem:[%s1119 + $0x14] sm:$0xf]
        %v1126 = vld [vmem:[%s1119 + $0x18] sm:$0xf]
        %v1127 = vld [vmem:[%s1119 + $0x1c] sm:$0xf]
        %v1128 = vld [vmem:[%s1119 + $0x20] sm:$0xf]
        %v1129 = vld [vmem:[%s1119 + $0x24] sm:$0xf]
        %v1130 = vld [vmem:[%s1119 + $0x28] sm:$0xf]
        %v1131 = vld [vmem:[%s1119 + $0x2c] sm:$0xf]
        %v1132 = vld [vmem:[%s1119 + $0x30] sm:$0xf]
        %v1133 = vld [vmem:[%s1119 + $0x34] sm:$0xf]
        %v1134 = vld [vmem:[%s1119 + $0x38] sm:$0xf]
        %v1135 = vld [vmem:[%s1119 + $0x3c] sm:$0xf]
        %v1139 = vunpack.c.l.b16 %v1099
        %v1140 = vunpack.c.l.b16 %v1100
        %v1141 = vunpack.c.l.b16 %v1118
        %v1142 = vpack.c.b16 %v1140, %v1139
        %v1143 = vpack.c.b16 %v1141, %v1141
        %v1145 = vshrl.u32 %v1142, 16
        %v1147 = vrot.slane %v1145, 1
        %v1148 = vshll.u32 %v1142, 16
        %v1150 = vrot.slane %v1148, 2
        %v1151 = vor.u32 %v1147, %v1150
        %v1153 = vshrl.u32 %v1143, 16
        %v1155 = vrot.slane %v1153, 1
        %v1156 = vshll.u32 %v1143, 16
        %v1158 = vrot.slane %v1156, 2
        %v1159 = vor.u32 %v1155, %v1158
        %v1160 = vsel %vm383, %v1151, %v1159
        %v1178 = vunpack.c.l.b16 %v1120
        %v1179 = vunpack.c.l.b16 %v1121
        %v1180 = vunpack.c.l.b16 %v1122
        %v1181 = vunpack.c.l.b16 %v1123
        %v1182 = vunpack.c.l.b16 %v1124
        %v1183 = vunpack.c.l.b16 %v1125
        %v1184 = vunpack.c.l.b16 %v1126
        %v1185 = vunpack.c.l.b16 %v1127
        %v1186 = vunpack.c.l.b16 %v1128
        %v1187 = vunpack.c.l.b16 %v1129
        %v1188 = vunpack.c.l.b16 %v1130
        %v1189 = vunpack.c.l.b16 %v1131
        %v1190 = vunpack.c.l.b16 %v1132
        %v1191 = vunpack.c.l.b16 %v1133
        %v1192 = vunpack.c.l.b16 %v1134
        %v1193 = vunpack.c.l.b16 %v1135
        %v1194 = vpack.c.b16 %v1179, %v1178
        %v1195 = vpack.c.b16 %v1181, %v1180
        %v1196 = vpack.c.b16 %v1183, %v1182
        %v1197 = vpack.c.b16 %v1185, %v1184
        %v1198 = vpack.c.b16 %v1187, %v1186
        %v1199 = vpack.c.b16 %v1189, %v1188
        %v1200 = vpack.c.b16 %v1191, %v1190
        %v1201 = vpack.c.b16 %v1193, %v1192
        %1210 = vmatpush.bf16.msra.mxu0 %v1201
        %1211 = vmatpush.bf16.msra.mxu0 %v1200
        %1212 = vmatpush.bf16.msra.mxu0 %v1199
        %1213 = vmatpush.bf16.msra.mxu0 %v1198
        %1214 = vmatpush.bf16.msra.mxu0 %v1197
        %1215 = vmatpush.bf16.msra.mxu0 %v1196
        %1216 = vmatpush.bf16.msra.mxu0 %v1195
        %1217 = vmatpush.bf16.msra.mxu0 %v1194
        %1218 = vmatmul.bf16.gmra.mxu0 %v1160
        %v1219 = vpop.f32.mrf.mxu0
        %v1220 = vadd.f32 0.0, %v1219
        %v1221 = vpop.f32.mrf.mxu0
        %v1222 = vadd.f32 0.0, %v1221
        %1223 = vdwg.mxu0
        %v1225 = vunpack.c.l.b16 %v1101
        %v1226 = vpack.c.b16 %v1225, %v1225
        %v1227 = vrot.slane %v1142, 1
        %v1228 = vrot.slane %v1226, 1
        %v1229 = vsel %vm467, %v1227, %v1228
        %v1247 = vunpack.c.l.b16 %v1102
        %v1248 = vunpack.c.l.b16 %v1103
        %v1249 = vunpack.c.l.b16 %v1104
        %v1250 = vunpack.c.l.b16 %v1105
        %v1251 = vunpack.c.l.b16 %v1106
        %v1252 = vunpack.c.l.b16 %v1107
        %v1253 = vunpack.c.l.b16 %v1108
        %v1254 = vunpack.c.l.b16 %v1109
        %v1255 = vunpack.c.l.b16 %v1110
        %v1256 = vunpack.c.l.b16 %v1111
        %v1257 = vunpack.c.l.b16 %v1112
        %v1258 = vunpack.c.l.b16 %v1113
        %v1259 = vunpack.c.l.b16 %v1114
        %v1260 = vunpack.c.l.b16 %v1115
        %v1261 = vunpack.c.l.b16 %v1116
        %v1262 = vunpack.c.l.b16 %v1117
        %v1263 = vpack.c.b16 %v1248, %v1247
        %v1264 = vpack.c.b16 %v1250, %v1249
        %v1265 = vpack.c.b16 %v1252, %v1251
        %v1266 = vpack.c.b16 %v1254, %v1253
        %v1267 = vpack.c.b16 %v1256, %v1255
        %v1268 = vpack.c.b16 %v1258, %v1257
        %v1269 = vpack.c.b16 %v1260, %v1259
        %v1270 = vpack.c.b16 %v1262, %v1261
        %1279 = vmatpush.bf16.msra.mxu0 %v1270
        %1280 = vmatpush.bf16.msra.mxu0 %v1269
        %1281 = vmatpush.bf16.msra.mxu0 %v1268
        %1282 = vmatpush.bf16.msra.mxu0 %v1267
        %1283 = vmatpush.bf16.msra.mxu0 %v1266
        %1284 = vmatpush.bf16.msra.mxu0 %v1265
        %1285 = vmatpush.bf16.msra.mxu0 %v1264
        %1286 = vmatpush.bf16.msra.mxu0 %v1263
        %1287 = vmatmul.bf16.gmra.mxu0 %v1229
        %v1288 = vpop.f32.mrf.mxu0
        %v1289 = vadd.f32 %v1220, %v1288
        %v1290 = vpop.f32.mrf.mxu0
        %v1291 = vadd.f32 %v1222, %v1290
        %1292 = vdwg.mxu0
        %v1293 = vld [vmem:[#allocation2 + $0x4] sm:$0xc]
        %s1294 = scalar_lea.vmem [#allocation5], 128
        %v1295 = vld [vmem:[%s1294] sm:$0xf]
        %v1296 = vld [vmem:[%s1294 + $0x4] sm:$0xf]
        %v1297 = vld [vmem:[%s1294 + $0x8] sm:$0xf]
        %v1298 = vld [vmem:[%s1294 + $0xc] sm:$0xf]
        %v1299 = vld [vmem:[%s1294 + $0x10] sm:$0xf]
        %v1300 = vld [vmem:[%s1294 + $0x14] sm:$0xf]
        %v1301 = vld [vmem:[%s1294 + $0x18] sm:$0xf]
        %v1302 = vld [vmem:[%s1294 + $0x1c] sm:$0xf]
        %v1303 = vld [vmem:[%s1294 + $0x20] sm:$0xf]
        %v1304 = vld [vmem:[%s1294 + $0x24] sm:$0xf]
        %v1305 = vld [vmem:[%s1294 + $0x28] sm:$0xf]
        %v1306 = vld [vmem:[%s1294 + $0x2c] sm:$0xf]
        %v1307 = vld [vmem:[%s1294 + $0x30] sm:$0xf]
        %v1308 = vld [vmem:[%s1294 + $0x34] sm:$0xf]
        %v1309 = vld [vmem:[%s1294 + $0x38] sm:$0xf]
        %v1310 = vld [vmem:[%s1294 + $0x3c] sm:$0xf]
        %v1312 = vunpack.c.l.b16 %v1293
        %v1313 = vpack.c.b16 %v1140, %v1312
        %v1314 = vrot.slane %v1313, 2
        %v1315 = vrot.slane %v1143, 2
        %v1316 = vsel %vm555, %v1314, %v1315
        %v1334 = vunpack.c.l.b16 %v1295
        %v1335 = vunpack.c.l.b16 %v1296
        %v1336 = vunpack.c.l.b16 %v1297
        %v1337 = vunpack.c.l.b16 %v1298
        %v1338 = vunpack.c.l.b16 %v1299
        %v1339 = vunpack.c.l.b16 %v1300
        %v1340 = vunpack.c.l.b16 %v1301
        %v1341 = vunpack.c.l.b16 %v1302
        %v1342 = vunpack.c.l.b16 %v1303
        %v1343 = vunpack.c.l.b16 %v1304
        %v1344 = vunpack.c.l.b16 %v1305
        %v1345 = vunpack.c.l.b16 %v1306
        %v1346 = vunpack.c.l.b16 %v1307
        %v1347 = vunpack.c.l.b16 %v1308
        %v1348 = vunpack.c.l.b16 %v1309
        %v1349 = vunpack.c.l.b16 %v1310
        %v1350 = vpack.c.b16 %v1335, %v1334
        %v1351 = vpack.c.b16 %v1337, %v1336
        %v1352 = vpack.c.b16 %v1339, %v1338
        %v1353 = vpack.c.b16 %v1341, %v1340
        %v1354 = vpack.c.b16 %v1343, %v1342
        %v1355 = vpack.c.b16 %v1345, %v1344
        %v1356 = vpack.c.b16 %v1347, %v1346
        %v1357 = vpack.c.b16 %v1349, %v1348
        %1366 = vmatpush.bf16.msra.mxu0 %v1357
        %1367 = vmatpush.bf16.msra.mxu0 %v1356
        %1368 = vmatpush.bf16.msra.mxu0 %v1355
        %1369 = vmatpush.bf16.msra.mxu0 %v1354
        %1370 = vmatpush.bf16.msra.mxu0 %v1353
        %1371 = vmatpush.bf16.msra.mxu0 %v1352
        %1372 = vmatpush.bf16.msra.mxu0 %v1351
        %1373 = vmatpush.bf16.msra.mxu0 %v1350
        %1374 = vmatmul.bf16.gmra.mxu0 %v1316
        %v1375 = vpop.f32.mrf.mxu0
        %v1376 = vadd.f32 0.0, %v1375
        %v1377 = vpop.f32.mrf.mxu0
        %v1378 = vadd.f32 0.0, %v1377
        %1379 = vdwg.mxu0
        %v1380 = vadd.f32 %v1289, %v1376
        %v1381 = vadd.f32 %v1291, %v1378
        %v1382 = vld [vmem:[#allocation2 + $0xc] sm:$0x7]
        %s1383 = scalar_lea.vmem [#allocation5], 192
        %v1384 = vld [vmem:[%s1383] sm:$0xf]
        %v1385 = vld [vmem:[%s1383 + $0x4] sm:$0xf]
        %v1386 = vld [vmem:[%s1383 + $0x8] sm:$0xf]
        %v1387 = vld [vmem:[%s1383 + $0xc] sm:$0xf]
        %v1388 = vld [vmem:[%s1383 + $0x10] sm:$0xf]
        %v1389 = vld [vmem:[%s1383 + $0x14] sm:$0xf]
        %v1390 = vld [vmem:[%s1383 + $0x18] sm:$0xf]
        %v1391 = vld [vmem:[%s1383 + $0x1c] sm:$0xf]
        %v1392 = vld [vmem:[%s1383 + $0x20] sm:$0xf]
        %v1393 = vld [vmem:[%s1383 + $0x24] sm:$0xf]
        %v1394 = vld [vmem:[%s1383 + $0x28] sm:$0xf]
        %v1395 = vld [vmem:[%s1383 + $0x2c] sm:$0xf]
        %v1396 = vld [vmem:[%s1383 + $0x30] sm:$0xf]
        %v1397 = vld [vmem:[%s1383 + $0x34] sm:$0xf]
        %v1398 = vld [vmem:[%s1383 + $0x38] sm:$0xf]
        %v1399 = vld [vmem:[%s1383 + $0x3c] sm:$0xf]
        %v1401 = vunpack.c.l.b16 %v1382
        %v1402 = vpack.c.b16 %v1401, %v1401
        %v1404 = vshrl.u32 %v1313, 16
        %v1406 = vrot.slane %v1404, 2
        %v1407 = vshll.u32 %v1313, 16
        %v1409 = vrot.slane %v1407, 3
        %v1410 = vor.u32 %v1406, %v1409
        %v1412 = vshrl.u32 %v1402, 16
        %v1414 = vrot.slane %v1412, 2
        %v1415 = vshll.u32 %v1402, 16
        %v1417 = vrot.slane %v1415, 3
        %v1418 = vor.u32 %v1414, %v1417
        %v1419 = vsel %vm645, %v1410, %v1418
        %v1437 = vunpack.c.l.b16 %v1384
        %v1438 = vunpack.c.l.b16 %v1385
        %v1439 = vunpack.c.l.b16 %v1386
        %v1440 = vunpack.c.l.b16 %v1387
        %v1441 = vunpack.c.l.b16 %v1388
        %v1442 = vunpack.c.l.b16 %v1389
        %v1443 = vunpack.c.l.b16 %v1390
        %v1444 = vunpack.c.l.b16 %v1391
        %v1445 = vunpack.c.l.b16 %v1392
        %v1446 = vunpack.c.l.b16 %v1393
        %v1447 = vunpack.c.l.b16 %v1394
        %v1448 = vunpack.c.l.b16 %v1395
        %v1449 = vunpack.c.l.b16 %v1396
        %v1450 = vunpack.c.l.b16 %v1397
        %v1451 = vunpack.c.l.b16 %v1398
        %v1452 = vunpack.c.l.b16 %v1399
        %v1453 = vpack.c.b16 %v1438, %v1437
        %v1454 = vpack.c.b16 %v1440, %v1439
        %v1455 = vpack.c.b16 %v1442, %v1441
        %v1456 = vpack.c.b16 %v1444, %v1443
        %v1457 = vpack.c.b16 %v1446, %v1445
        %v1458 = vpack.c.b16 %v1448, %v1447
        %v1459 = vpack.c.b16 %v1450, %v1449
        %v1460 = vpack.c.b16 %v1452, %v1451
        %1469 = vmatpush.bf16.msra.mxu0 %v1460
        %1470 = vmatpush.bf16.msra.mxu0 %v1459
        %1471 = vmatpush.bf16.msra.mxu0 %v1458
        %1472 = vmatpush.bf16.msra.mxu0 %v1457
        %1473 = vmatpush.bf16.msra.mxu0 %v1456
        %1474 = vmatpush.bf16.msra.mxu0 %v1455
        %1475 = vmatpush.bf16.msra.mxu0 %v1454
        %1476 = vmatpush.bf16.msra.mxu0 %v1453
        %1477 = vmatmul.bf16.gmra.mxu0 %v1419
        %v1478 = vpop.f32.mrf.mxu0
        %v1479 = vadd.f32 0.0, %v1478
        %v1480 = vpop.f32.mrf.mxu0
        %v1481 = vadd.f32 0.0, %v1480
        %1482 = vdwg.mxu0
        %v1483 = vadd.f32 %v1380, %v1479
        %v1484 = vadd.f32 %v1381, %v1481
        %v1485 = vld [vmem:[#allocation2 + $0x4] sm:$0x8]
        %s1486 = scalar_lea.vmem [#allocation5], 256
        %v1487 = vld [vmem:[%s1486] sm:$0xf]
        %v1488 = vld [vmem:[%s1486 + $0x4] sm:$0xf]
        %v1489 = vld [vmem:[%s1486 + $0x8] sm:$0xf]
        %v1490 = vld [vmem:[%s1486 + $0xc] sm:$0xf]
        %v1491 = vld [vmem:[%s1486 + $0x10] sm:$0xf]
        %v1492 = vld [vmem:[%s1486 + $0x14] sm:$0xf]
        %v1493 = vld [vmem:[%s1486 + $0x18] sm:$0xf]
        %v1494 = vld [vmem:[%s1486 + $0x1c] sm:$0xf]
        %v1495 = vld [vmem:[%s1486 + $0x20] sm:$0xf]
        %v1496 = vld [vmem:[%s1486 + $0x24] sm:$0xf]
        %v1497 = vld [vmem:[%s1486 + $0x28] sm:$0xf]
        %v1498 = vld [vmem:[%s1486 + $0x2c] sm:$0xf]
        %v1499 = vld [vmem:[%s1486 + $0x30] sm:$0xf]
        %v1500 = vld [vmem:[%s1486 + $0x34] sm:$0xf]
        %v1501 = vld [vmem:[%s1486 + $0x38] sm:$0xf]
        %v1502 = vld [vmem:[%s1486 + $0x3c] sm:$0xf]
        %v1504 = vunpack.c.l.b16 %v1485
        %v1505 = vpack.c.b16 %v1140, %v1504
        %v1506 = vrot.slane %v1505, 3
        %v1507 = vrot.slane %v1402, 3
        %v1508 = vsel %vm749, %v1506, %v1507
        %v1526 = vunpack.c.l.b16 %v1487
        %v1527 = vunpack.c.l.b16 %v1488
        %v1528 = vunpack.c.l.b16 %v1489
        %v1529 = vunpack.c.l.b16 %v1490
        %v1530 = vunpack.c.l.b16 %v1491
        %v1531 = vunpack.c.l.b16 %v1492
        %v1532 = vunpack.c.l.b16 %v1493
        %v1533 = vunpack.c.l.b16 %v1494
        %v1534 = vunpack.c.l.b16 %v1495
        %v1535 = vunpack.c.l.b16 %v1496
        %v1536 = vunpack.c.l.b16 %v1497
        %v1537 = vunpack.c.l.b16 %v1498
        %v1538 = vunpack.c.l.b16 %v1499
        %v1539 = vunpack.c.l.b16 %v1500
        %v1540 = vunpack.c.l.b16 %v1501
        %v1541 = vunpack.c.l.b16 %v1502
        %v1542 = vpack.c.b16 %v1527, %v1526
        %v1543 = vpack.c.b16 %v1529, %v1528
        %v1544 = vpack.c.b16 %v1531, %v1530
        %v1545 = vpack.c.b16 %v1533, %v1532
        %v1546 = vpack.c.b16 %v1535, %v1534
        %v1547 = vpack.c.b16 %v1537, %v1536
        %v1548 = vpack.c.b16 %v1539, %v1538
        %v1549 = vpack.c.b16 %v1541, %v1540
        %1558 = vmatpush.bf16.msra.mxu0 %v1549
        %1559 = vmatpush.bf16.msra.mxu0 %v1548
        %1560 = vmatpush.bf16.msra.mxu0 %v1547
        %1561 = vmatpush.bf16.msra.mxu0 %v1546
        %1562 = vmatpush.bf16.msra.mxu0 %v1545
        %1563 = vmatpush.bf16.msra.mxu0 %v1544
        %1564 = vmatpush.bf16.msra.mxu0 %v1543
        %1565 = vmatpush.bf16.msra.mxu0 %v1542
        %1566 = vmatmul.bf16.gmra.mxu0 %v1508
        %v1567 = vpop.f32.mrf.mxu0
        %v1568 = vadd.f32 0.0, %v1567
        %v1569 = vpop.f32.mrf.mxu0
        %v1570 = vadd.f32 0.0, %v1569
        %1571 = vdwg.mxu0
        %v1572 = vadd.f32 %v1483, %v1568
        %v1573 = vadd.f32 %v1484, %v1570
        %v1574 = vld [vmem:[#allocation2 + $0xc] sm:$0xf]
        %s1575 = scalar_lea.vmem [#allocation5], 320
        %v1576 = vld [vmem:[%s1575] sm:$0xf]
        %v1577 = vld [vmem:[%s1575 + $0x4] sm:$0xf]
        %v1578 = vld [vmem:[%s1575 + $0x8] sm:$0xf]
        %v1579 = vld [vmem:[%s1575 + $0xc] sm:$0xf]
        %v1580 = vld [vmem:[%s1575 + $0x10] sm:$0xf]
        %v1581 = vld [vmem:[%s1575 + $0x14] sm:$0xf]
        %v1582 = vld [vmem:[%s1575 + $0x18] sm:$0xf]
        %v1583 = vld [vmem:[%s1575 + $0x1c] sm:$0xf]
        %v1584 = vld [vmem:[%s1575 + $0x20] sm:$0xf]
        %v1585 = vld [vmem:[%s1575 + $0x24] sm:$0xf]
        %v1586 = vld [vmem:[%s1575 + $0x28] sm:$0xf]
        %v1587 = vld [vmem:[%s1575 + $0x2c] sm:$0xf]
        %v1588 = vld [vmem:[%s1575 + $0x30] sm:$0xf]
        %v1589 = vld [vmem:[%s1575 + $0x34] sm:$0xf]
        %v1590 = vld [vmem:[%s1575 + $0x38] sm:$0xf]
        %v1591 = vld [vmem:[%s1575 + $0x3c] sm:$0xf]
        %v1593 = vunpack.c.l.b16 %v1574
        %v1594 = vpack.c.b16 %v1593, %v1593
        %v1596 = vshrl.u32 %v1505, 16
        %v1598 = vrot.slane %v1596, 3
        %v1599 = vshll.u32 %v1505, 16
        %v1601 = vrot.slane %v1599, 4
        %v1602 = vor.u32 %v1598, %v1601
        %v1604 = vshrl.u32 %v1594, 16
        %v1606 = vrot.slane %v1604, 3
        %v1607 = vshll.u32 %v1594, 16
        %v1609 = vrot.slane %v1607, 4
        %v1610 = vor.u32 %v1606, %v1609
        %v1611 = vsel %vm839, %v1602, %v1610
        %v1629 = vunpack.c.l.b16 %v1576
        %v1630 = vunpack.c.l.b16 %v1577
        %v1631 = vunpack.c.l.b16 %v1578
        %v1632 = vunpack.c.l.b16 %v1579
        %v1633 = vunpack.c.l.b16 %v1580
        %v1634 = vunpack.c.l.b16 %v1581
        %v1635 = vunpack.c.l.b16 %v1582
        %v1636 = vunpack.c.l.b16 %v1583
        %v1637 = vunpack.c.l.b16 %v1584
        %v1638 = vunpack.c.l.b16 %v1585
        %v1639 = vunpack.c.l.b16 %v1586
        %v1640 = vunpack.c.l.b16 %v1587
        %v1641 = vunpack.c.l.b16 %v1588
        %v1642 = vunpack.c.l.b16 %v1589
        %v1643 = vunpack.c.l.b16 %v1590
        %v1644 = vunpack.c.l.b16 %v1591
        %v1645 = vpack.c.b16 %v1630, %v1629
        %v1646 = vpack.c.b16 %v1632, %v1631
        %v1647 = vpack.c.b16 %v1634, %v1633
        %v1648 = vpack.c.b16 %v1636, %v1635
        %v1649 = vpack.c.b16 %v1638, %v1637
        %v1650 = vpack.c.b16 %v1640, %v1639
        %v1651 = vpack.c.b16 %v1642, %v1641
        %v1652 = vpack.c.b16 %v1644, %v1643
        %1661 = vmatpush.bf16.msra.mxu0 %v1652
        %1662 = vmatpush.bf16.msra.mxu0 %v1651
        %1663 = vmatpush.bf16.msra.mxu0 %v1650
        %1664 = vmatpush.bf16.msra.mxu0 %v1649
        %1665 = vmatpush.bf16.msra.mxu0 %v1648
        %1666 = vmatpush.bf16.msra.mxu0 %v1647
        %1667 = vmatpush.bf16.msra.mxu0 %v1646
        %1668 = vmatpush.bf16.msra.mxu0 %v1645
        %1669 = vmatmul.bf16.gmra.mxu0 %v1611
        %v1670 = vpop.f32.mrf.mxu0
        %v1671 = vadd.f32 0.0, %v1670
        %v1672 = vpop.f32.mrf.mxu0
        %v1673 = vadd.f32 0.0, %v1672
        %1674 = vdwg.mxu0
        %v1675 = vadd.f32 %v1572, %v1671
        %v1676 = vadd.f32 %v1573, %v1673
        %s1677 = scalar_lea.vmem [#allocation5], 384
        %v1678 = vld [vmem:[%s1677] sm:$0xf]
        %v1679 = vld [vmem:[%s1677 + $0x4] sm:$0xf]
        %v1680 = vld [vmem:[%s1677 + $0x8] sm:$0xf]
        %v1681 = vld [vmem:[%s1677 + $0xc] sm:$0xf]
        %v1682 = vld [vmem:[%s1677 + $0x10] sm:$0xf]
        %v1683 = vld [vmem:[%s1677 + $0x14] sm:$0xf]
        %v1684 = vld [vmem:[%s1677 + $0x18] sm:$0xf]
        %v1685 = vld [vmem:[%s1677 + $0x1c] sm:$0xf]
        %v1686 = vld [vmem:[%s1677 + $0x20] sm:$0xf]
        %v1687 = vld [vmem:[%s1677 + $0x24] sm:$0xf]
        %v1688 = vld [vmem:[%s1677 + $0x28] sm:$0xf]
        %v1689 = vld [vmem:[%s1677 + $0x2c] sm:$0xf]
        %v1690 = vld [vmem:[%s1677 + $0x30] sm:$0xf]
        %v1691 = vld [vmem:[%s1677 + $0x34] sm:$0xf]
        %v1692 = vld [vmem:[%s1677 + $0x38] sm:$0xf]
        %v1693 = vld [vmem:[%s1677 + $0x3c] sm:$0xf]
        %v1694 = vpack.c.b16 %v1593, %v1140
        %v1712 = vunpack.c.l.b16 %v1678
        %v1713 = vunpack.c.l.b16 %v1679
        %v1714 = vunpack.c.l.b16 %v1680
        %v1715 = vunpack.c.l.b16 %v1681
        %v1716 = vunpack.c.l.b16 %v1682
        %v1717 = vunpack.c.l.b16 %v1683
        %v1718 = vunpack.c.l.b16 %v1684
        %v1719 = vunpack.c.l.b16 %v1685
        %v1720 = vunpack.c.l.b16 %v1686
        %v1721 = vunpack.c.l.b16 %v1687
        %v1722 = vunpack.c.l.b16 %v1688
        %v1723 = vunpack.c.l.b16 %v1689
        %v1724 = vunpack.c.l.b16 %v1690
        %v1725 = vunpack.c.l.b16 %v1691
        %v1726 = vunpack.c.l.b16 %v1692
        %v1727 = vunpack.c.l.b16 %v1693
        %v1728 = vpack.c.b16 %v1713, %v1712
        %v1729 = vpack.c.b16 %v1715, %v1714
        %v1730 = vpack.c.b16 %v1717, %v1716
        %v1731 = vpack.c.b16 %v1719, %v1718
        %v1732 = vpack.c.b16 %v1721, %v1720
        %v1733 = vpack.c.b16 %v1723, %v1722
        %v1734 = vpack.c.b16 %v1725, %v1724
        %v1735 = vpack.c.b16 %v1727, %v1726
        %1744 = vmatpush.bf16.msra.mxu0 %v1735
        %1745 = vmatpush.bf16.msra.mxu0 %v1734
        %1746 = vmatpush.bf16.msra.mxu0 %v1733
        %1747 = vmatpush.bf16.msra.mxu0 %v1732
        %1748 = vmatpush.bf16.msra.mxu0 %v1731
        %1749 = vmatpush.bf16.msra.mxu0 %v1730
        %1750 = vmatpush.bf16.msra.mxu0 %v1729
        %1751 = vmatpush.bf16.msra.mxu0 %v1728
        %1752 = vmatmul.bf16.gmra.mxu0 %v1694
        %v1753 = vpop.f32.mrf.mxu0
        %v1754 = vadd.f32 0.0, %v1753
        %v1755 = vpop.f32.mrf.mxu0
        %v1756 = vadd.f32 0.0, %v1755
        %1757 = vdwg.mxu0
        %v1758 = vadd.f32 %v1675, %v1754
        %v1759 = vadd.f32 %v1676, %v1756
        %v1760 = vld [vmem:[%s4] sm:$0x1]
        %v1762 = vperm.slane %v1760, 0
        %v1764 = vadd.f32 %v1758, %v1762
        %v1765 = vadd.f32 %v1759, %v1762
        %v1766 = vmax.f32 %v1764, 0.0
        %v1767 = vmax.f32 %v1765, 0.0
        %v1768 = vadd.f32 %v1766, %v1091
        %v1769 = vadd.f32 %v1767, %v1093
        %v1770 = vmax.f32 %v1768, 0.0
        %v1771 = vmax.f32 %v1769, 0.0
        %v1772 = vpack.c.bf16 %v1770, %v1770
        %v1773 = vpack.c.bf16 %v1771, %v1771
        %1774 = vst [vmem:[%s326] sm:$0xf] %v1772
        %1775 = vst [vmem:[%s326 + $0x4] sm:$0xf] %v1773
        %p1776 = scmp.lt.s32.totalorder %s20, 1
        %s1777 = scalar_select %p1776, %s20, 1
        %s1778 = smul.addr %s1777, 2
        %s1779 = smul.addr %s1778, 4
        %s1780 = scalar_lea.vmem %s7, %s1779
        // Predicated region
        $region61: #{forward.2} parent=47 // pred_check
          %p1781 = pneg %p190
        $region62: #{forward.2} parent=47 // pred_check_branch
          %1783 = sbr.rel (%p1781) target = $region64
        $region63: #{forward.2} parent=47 // pred_region
          _
        $region64: #{forward.2} parent=47 // pred_fallthru
          _
      $region48: #{forward.2} parent=5 // pred_fallthru
        _
      %p1784 = scmp.le.s32.totalorder 2, %s15
      // Predicated region
      $region65: #{forward.2} parent=5 // pred_check
        %p1785 = pneg %p1784
      $region66: #{forward.2} parent=5 // pred_check_branch
        %1787 = sbr.rel (%p1785) target = $region68
      $region67: #{forward.2} parent=5 // pred_region
        %s1788 = ssub.s32 %s15, 2
        // Predicated region
        $region69: #{forward.2} parent=67 // pred_check
          %p1789 = pneg %p196
        $region70: #{forward.2} parent=67 // pred_check_branch
          %1791 = sbr.rel (%p1789) target = $region72
        $region71: #{forward.2} parent=67 // pred_region
          %p1792 = scmp.lt.s32.totalorder %s21, 1
          %s1793 = scalar_select %p1792, %s21, 1
          %s1794 = smul.addr %s1793, 2
          %s1795 = smul.addr %s1794, 4
          %s1796 = scalar_lea.vmem %s7, %s1795
        $region72: #{forward.2} parent=67 // pred_fallthru
          _
      $region68: #{forward.2} parent=5 // pred_fallthru
        _
    $region6: #{forward.2} parent=1 // loop_footer
      %s19 = sadd.s32 1, %s15
    $region7: #{forward.2} parent=1 // loop_footer_branch
      %14 = sbr.rel target = $region3
    $region8: #{forward.2} parent=1 // loop_exit
      _
    %1797 = vsyncpa [#allocation4], 1
    %s1798 = scalar_lea.sflag [#allocation4], 1
    %1799 = vsyncpa %s1798, 1
    %1800 = vsyncpa [#allocation6], 1

</llo_original>
